<compile_context>
chip_gen: v6e
topology: v6e:2x2x1
jax: 0.10.0
libtpu: 0.0.40
codegen_flags: <defaults>
</compile_context>

<pallas_src>
import functools

import numpy as np
import jax
import jax.numpy as jnp
from jax.experimental import pallas as pl
from jax.experimental.pallas import tpu as pltpu


def _bilinear_matrix(out_size: int, in_size: int) -> np.ndarray:
    """Interpolation matrix matching F.interpolate(mode='bilinear', align_corners=False)."""
    scale = in_size / out_size
    W = np.zeros((out_size, in_size), dtype=np.float32)
    for o in range(out_size):
        real = scale * (o + 0.5) - 0.5
        src = max(real, 0.0)
        i0 = min(int(np.floor(src)), in_size - 1)
        i1 = i0 + 1 if i0 < in_size - 1 else i0
        lam1 = src - i0
        lam0 = 1.0 - lam1
        W[o, i0] += lam0
        W[o, i1] += lam1
    return W


def _tap_coeffs(Hi, Wi, Hs, Ws, K, pad, Ho, Wo) -> np.ndarray:
    """(Hi*Wi, K*K, Ho*Wo): coefficient of input pixel q in the upsampled, zero-padded pixel
    seen by conv tap t=(ki,kj) at output position p=(oh,ow)."""
    wh = _bilinear_matrix(Hs, Hi)                      # (Hs, Hi)
    ww = _bilinear_matrix(Ws, Wi)                      # (Ws, Wi)
    B = np.einsum("ia,jb->abij", wh, ww).reshape(Hi * Wi, Hs, Ws)
    Bp = np.pad(B, ((0, 0), (pad, pad), (pad, pad)))   # zero padding baked into coefficients
    taps = [Bp[:, ki:ki + Ho, kj:kj + Wo].reshape(Hi * Wi, Ho * Wo)
            for ki in range(K) for kj in range(K)]
    return np.stack(taps, axis=1).astype(np.float32)   # (HiWi, KK, HoWo)


def conv_up_kernel(a_ref, sred_ref, sbc_ref, x_ref, o_ref, *, eps, neg_slope):
    x = x_ref[0]                                                       # (Nb, C_in*HiWi)

    # Fused upsample + pad + conv: ONE big-contraction GEMM, f32 accumulation on the MXU.
    y = jnp.dot(x, a_ref[...], preferred_element_type=jnp.float32)    # (Nb, C_out*HoWo) f32

    # InstanceNorm2d stats on the MXU via block-diagonal reduce / broadcast matrices.
    sred = sred_ref[...]                                # (C_out*HoWo, C_pad): 1/HoWo blocks
    sbc = sbc_ref[...]                                  # (C_pad, C_out*HoWo): ones blocks
    mean = jnp.dot(y, sred, preferred_element_type=jnp.float32)        # (Nb, C_pad)
    mean_full = jnp.dot(mean, sbc, preferred_element_type=jnp.float32)  # (Nb, C_out*HoWo)
    cen = y - mean_full
    var = jnp.dot(cen * cen, sred, preferred_element_type=jnp.float32)  # centered (stable)
    inv = jax.lax.rsqrt(var + eps)                      # tiny (Nb, C_pad) on the EUP
    inv_full = jnp.dot(inv, sbc, preferred_element_type=jnp.float32)
    normed = cen * inv_full
    out = jnp.where(normed >= 0, normed, neg_slope * normed)           # LeakyReLU(0.2)

    # Single lane-dense (2048-lane) unmasked store per grid step.
    o_ref[0] = out.astype(o_ref.dtype)


def conv_up(x, conv_weight, size, *, stride=1, padding=0, dilation=1, groups=1,
            eps=1e-5, neg_slope=0.2, images_per_step=None, compute_dtype=jnp.float32):
    """Forward of ConvUp: interpolate(size, bilinear) -> Conv2d -> InstanceNorm2d -> LeakyReLU."""
    N, C_in, Hi, Wi = x.shape
    C_out, C_in_w, K, K2 = conv_weight.shape
    assert C_in_w == C_in and K == K2
    if stride != 1 or dilation != 1 or groups != 1:
        # TODO(synk): general stride/dilation/groups not implemented in this synthetic kernel.
        raise NotImplementedError("only stride=1, dilation=1, groups=1 supported")
    Hs, Ws = size
    Ho = Hs + 2 * padding - K + 1
    Wo = Ws + 2 * padding - K + 1
    KK, HiWi, HoWo = K * K, Hi * Wi, Ho * Wo
    CinHiWi, CoutHoWo = C_in * HiWi, C_out * HoWo

    # ---- Host-side fusion: upsample/pad/tap coefficients x conv weights -> single matrix A.
    # TODO(synk): for large spatial sizes switch to the separable (wh/ww + im2col) form and
    # tile A's output columns; the dense A scales as C_in*Hi*Wi*C_out*Ho*Wo.
    b_taps = jnp.asarray(_tap_coeffs(Hi, Wi, Hs, Ws, K, padding, Ho, Wo))   # (HiWi, KK, HoWo)
    w_r = jnp.asarray(conv_weight, jnp.float32).reshape(C_out, C_in, KK)
    a_mat = jnp.einsum("qtp,oct->cqop", b_taps, w_r,
                       precision=jax.lax.Precision.HIGHEST)
    a_mat = a_mat.reshape(CinHiWi, CoutHoWo).astype(compute_dtype)

    # ---- Block-diagonal InstanceNorm helper matrices, padded to a 128-lane multiple.
    C_pad = ((C_out + 127) // 128) * 128
    s_red_np = np.zeros((CoutHoWo, C_pad), np.float32)
    s_bc_np = np.zeros((C_pad, CoutHoWo), np.float32)
    for o in range(C_out):
        s_red_np[o * HoWo:(o + 1) * HoWo, o] = 1.0 / HoWo
        s_bc_np[o, o * HoWo:(o + 1) * HoWo] = 1.0
    s_red = jnp.asarray(s_red_np)
    s_bc = jnp.asarray(s_bc_np)

    # ---- Batch images per grid step (fills the GEMM's M dim); keep >=2 steps for v7x TCs.
    if images_per_step is None:
        images_per_step = max(1, min(8, N // 2)) if N >= 2 else 1
    Nb = images_per_step
    grid_n = pl.cdiv(N, Nb)
    N_pad = grid_n * Nb

    x_flat = jnp.asarray(x, compute_dtype).reshape(N, CinHiWi)
    if N_pad != N:
        x_flat = jnp.concatenate(
            [x_flat, jnp.zeros((N_pad - N, CinHiWi), x_flat.dtype)], axis=0)
    x_blk = x_flat.reshape(grid_n, Nb, CinHiWi)

    kernel = functools.partial(conv_up_kernel, eps=eps, neg_slope=neg_slope)

    # Explicit VMEM budget: constant-index inputs (A, stats) are double-buffered by Pallas.
    in_itemsize = a_mat.dtype.itemsize
    vmem_bytes = 2 * (a_mat.size * in_itemsize + (s_red.size + s_bc.size) * 4
                      + Nb * CinHiWi * in_itemsize + Nb * CoutHoWo * 4) + (16 << 20)
    vmem_limit = int(min(vmem_bytes, 96 << 20))

    flops = 2 * N_pad * CinHiWi * CoutHoWo + 8 * N_pad * CoutHoWo * C_pad
    cost = pl.CostEstimate(
        flops=int(flops),
        transcendentals=int(N_pad * C_pad),
        bytes_accessed=int(a_mat.size * in_itemsize + (s_red.size + s_bc.size) * 4
                           + N_pad * CinHiWi * in_itemsize + N_pad * CoutHoWo * 4),
    )

    out_blk = pl.pallas_call(
        kernel,
        out_shape=jax.ShapeDtypeStruct((grid_n, Nb, CoutHoWo), jnp.float32),
        grid_spec=pltpu.PrefetchScalarGridSpec(
            num_scalar_prefetch=0,
            grid=(grid_n,),
            in_specs=[
                pl.BlockSpec((CinHiWi, CoutHoWo), lambda g: (0, 0)),   # fused conv matrix A
                pl.BlockSpec((CoutHoWo, C_pad), lambda g: (0, 0)),     # norm reduce matrix
                pl.BlockSpec((C_pad, CoutHoWo), lambda g: (0, 0)),     # norm broadcast matrix
                pl.BlockSpec((1, Nb, CinHiWi), lambda g: (g, 0, 0)),   # Nb input images
            ],
            out_specs=pl.BlockSpec((1, Nb, CoutHoWo), lambda g: (g, 0, 0)),
        ),
        compiler_params=pltpu.CompilerParams(
            dimension_semantics=("parallel",),
            vmem_limit_bytes=vmem_limit),
        cost_estimate=cost,
    )(a_mat, s_red, s_bc, x_blk)

    return out_blk.reshape(N_pad, C_out, Ho, Wo)[:N]


def conv_up_reference(x, conv_weight, size, *, padding=0, eps=1e-5, neg_slope=0.2):
    """Pure-JAX reference of the PyTorch module (f32, highest precision)."""
    N, C_in, Hi, Wi = x.shape
    Hs, Ws = size
    wh = jnp.asarray(_bilinear_matrix(Hs, Hi))
    ww = jnp.asarray(_bilinear_matrix(Ws, Wi))
    up = jnp.einsum("ha,ncab,wb->nchw", wh, x, ww, precision=jax.lax.Precision.HIGHEST)
    y = jax.lax.conv_general_dilated(
        up, conv_weight, window_strides=(1, 1),
        padding=[(padding, padding), (padding, padding)],
        dimension_numbers=("NCHW", "OIHW", "NCHW"),
        precision=jax.lax.Precision.HIGHEST)
    mean = y.mean(axis=(2, 3), keepdims=True)
    var = ((y - mean) ** 2).mean(axis=(2, 3), keepdims=True)
    yn = (y - mean) * jax.lax.rsqrt(var + eps)
    return jnp.where(yn >= 0, yn, neg_slope * yn)


if __name__ == "__main__":
    key = jax.random.PRNGKey(0)
    k_x, k_w = jax.random.split(key)

    # ConvUp(in_c=4, out_c=8, kernel=3, stride=1, padding=1, bias=False)
    N, C_in, Hi, Wi = 2, 4, 8, 8
    C_out, K = 8, 3
    size = (16, 16)

    x = jax.random.normal(k_x, (N, C_in, Hi, Wi), dtype=jnp.float32)
    fan_in = C_in * K * K
    bound = 1.0 / np.sqrt(fan_in)
    conv_weight = jax.random.uniform(
        k_w, (C_out, C_in, K, K), minval=-bound, maxval=bound, dtype=jnp.float32)

    ref = conv_up_reference(x, conv_weight, size, padding=1)

    # f32-operand path: exact parity with the reference semantics.
    out = jax.block_until_ready(conv_up(x, conv_weight, size, stride=1, padding=1))
    assert out.shape == (N, C_out, size[0], size[1])
    assert bool(jnp.all(jnp.isfinite(out)))
    max_err = float(jnp.max(jnp.abs(out - ref)))
    assert max_err < 1e-2, f"f32 mismatch vs reference: max abs err {max_err}"

    # bf16 GEMM-operand path (recommended on v6e/v7x); accumulation + norm stay f32.
    out_bf16 = jax.block_until_ready(
        conv_up(x, conv_weight, size, stride=1, padding=1, compute_dtype=jnp.bfloat16))
    assert bool(jnp.all(jnp.isfinite(out_bf16)))
    bf16_err = float(jnp.max(jnp.abs(out_bf16 - ref)))
    assert bf16_err < 1e-1, f"bf16 mismatch vs reference: max abs err {bf16_err}"

    print("KERNEL_OK")
</pallas_src>

<mosaic_0001>
module attributes {stable_mosaic.version = 11 : i64} {
  func.func @conv_up_kernel(%arg0: i32, %arg1: memref<256x2048xf32, #tpu.memory_space<vmem>>, %arg2: memref<2048x128xf32, #tpu.memory_space<vmem>>, %arg3: memref<128x2048xf32, #tpu.memory_space<vmem>>, %arg4: memref<1x1x256xf32, #tpu.memory_space<vmem>>, %arg5: memref<1x1x2048xf32, #tpu.memory_space<vmem>>) attributes {dimension_semantics = [#tpu.dimension_semantics<parallel>], iteration_bounds = array<i64: 2>, scalar_prefetch = 0 : i64, scratch_operands = 0 : i64, tpu.core_type = #tpu.core_type<tc>, window_params = [{pipeline_mode = #tpu.pipeline_mode<synchronous>, transform_indices = @transform_0, window_bounds = array<i64: 256, 2048>}, {pipeline_mode = #tpu.pipeline_mode<synchronous>, transform_indices = @transform_1, window_bounds = array<i64: 2048, 128>}, {pipeline_mode = #tpu.pipeline_mode<synchronous>, transform_indices = @transform_2, window_bounds = array<i64: 128, 2048>}, {transform_indices = @transform_3, window_bounds = array<i64: 1, 1, 256>}, {transform_indices = @transform_4, window_bounds = array<i64: 1, 1, 2048>}]} {
    %c0 = arith.constant 0 : index
    %c0_0 = arith.constant 0 : index
    %c0_1 = arith.constant 0 : index
    %0 = vector.load %arg4[%c0, %c0_0, %c0_1] : memref<1x1x256xf32, #tpu.memory_space<vmem>>, vector<1x1x256xf32>
    %1 = vector.shape_cast %0 : vector<1x1x256xf32> to vector<1x256xf32>
    %c0_2 = arith.constant 0 : index
    %c0_3 = arith.constant 0 : index
    %2 = vector.load %arg1[%c0_2, %c0_3] : memref<256x2048xf32, #tpu.memory_space<vmem>>, vector<256x2048xf32>
    %cst = arith.constant dense<0.000000e+00> : vector<1x2048xf32>
    %3 = tpu.matmul %1, %2, %cst {dimension_numbers = #tpu.dot_dimension_numbers<[1], [0], [0], [1], [0, 0, 1, 1], [], []>} : vector<1x256xf32>, vector<256x2048xf32>, vector<1x2048xf32> -> vector<1x2048xf32>
    %c0_4 = arith.constant 0 : index
    %c0_5 = arith.constant 0 : index
    %4 = vector.load %arg2[%c0_4, %c0_5] : memref<2048x128xf32, #tpu.memory_space<vmem>>, vector<2048x128xf32>
    %c0_6 = arith.constant 0 : index
    %c0_7 = arith.constant 0 : index
    %5 = vector.load %arg3[%c0_6, %c0_7] : memref<128x2048xf32, #tpu.memory_space<vmem>>, vector<128x2048xf32>
    %cst_8 = arith.constant dense<0.000000e+00> : vector<1x128xf32>
    %6 = tpu.matmul %3, %4, %cst_8 {dimension_numbers = #tpu.dot_dimension_numbers<[1], [0], [0], [1], [0, 0, 1, 1], [], []>} : vector<1x2048xf32>, vector<2048x128xf32>, vector<1x128xf32> -> vector<1x128xf32>
    %cst_9 = arith.constant dense<0.000000e+00> : vector<1x2048xf32>
    %7 = tpu.matmul %6, %5, %cst_9 {dimension_numbers = #tpu.dot_dimension_numbers<[1], [0], [0], [1], [0, 0, 1, 1], [], []>} : vector<1x128xf32>, vector<128x2048xf32>, vector<1x2048xf32> -> vector<1x2048xf32>
    %8 = arith.subf %3, %7 : vector<1x2048xf32>
    %9 = arith.mulf %8, %8 : vector<1x2048xf32>
    %cst_10 = arith.constant dense<0.000000e+00> : vector<1x128xf32>
    %10 = tpu.matmul %9, %4, %cst_10 {dimension_numbers = #tpu.dot_dimension_numbers<[1], [0], [0], [1], [0, 0, 1, 1], [], []>} : vector<1x2048xf32>, vector<2048x128xf32>, vector<1x128xf32> -> vector<1x128xf32>
    %cst_11 = arith.constant 9.99999974E-6 : f32
    %11 = vector.broadcast %cst_11 : f32 to vector<1x128xf32>
    %12 = arith.addf %10, %11 : vector<1x128xf32>
    %13 = math.rsqrt %12 : vector<1x128xf32>
    %cst_12 = arith.constant dense<0.000000e+00> : vector<1x2048xf32>
    %14 = tpu.matmul %13, %5, %cst_12 {dimension_numbers = #tpu.dot_dimension_numbers<[1], [0], [0], [1], [0, 0, 1, 1], [], []>} : vector<1x128xf32>, vector<128x2048xf32>, vector<1x2048xf32> -> vector<1x2048xf32>
    %15 = arith.mulf %8, %14 : vector<1x2048xf32>
    %cst_13 = arith.constant 0.000000e+00 : f32
    %16 = vector.broadcast %cst_13 : f32 to vector<1x2048xf32>
    %17 = arith.cmpf oge, %15, %16 : vector<1x2048xf32>
    %cst_14 = arith.constant 2.000000e-01 : f32
    %18 = vector.broadcast %cst_14 : f32 to vector<1x2048xf32>
    %19 = arith.mulf %18, %15 : vector<1x2048xf32>
    %20 = arith.select %17, %15, %19 : vector<1x2048xi1>, vector<1x2048xf32>
    %c0_15 = arith.constant 0 : index
    %c0_16 = arith.constant 0 : index
    %c0_17 = arith.constant 0 : index
    %21 = vector.load %arg5[%c0_15, %c0_16, %c0_17] : memref<1x1x2048xf32, #tpu.memory_space<vmem>>, vector<1x1x2048xf32>
    %22 = vector.shape_cast %21 : vector<1x1x2048xf32> to vector<1x2048xf32>
    %23 = vector.shape_cast %20 : vector<1x2048xf32> to vector<1x1x2048xf32>
    tpu.vector_store %arg5[%c0_15, %c0_16, %c0_17], %23 {strides = array<i32>} : memref<1x1x2048xf32, #tpu.memory_space<vmem>>, vector<1x1x2048xf32>,
    return
  }
  func.func @transform_0(%arg0: i32) -> (i32, i32) {
    %c0_i32 = arith.constant 0 : i32
    %c0_i32_0 = arith.constant 0 : i32
    %c0_i32_1 = arith.constant 0 : i32
    return %c0_i32, %c0_i32_0 : i32, i32
  }
  func.func @transform_1(%arg0: i32) -> (i32, i32) {
    %c0_i32 = arith.constant 0 : i32
    %c0_i32_0 = arith.constant 0 : i32
    %c0_i32_1 = arith.constant 0 : i32
    return %c0_i32, %c0_i32_0 : i32, i32
  }
  func.func @transform_2(%arg0: i32) -> (i32, i32) {
    %c0_i32 = arith.constant 0 : i32
    %c0_i32_0 = arith.constant 0 : i32
    %c0_i32_1 = arith.constant 0 : i32
    return %c0_i32, %c0_i32_0 : i32, i32
  }
  func.func @transform_3(%arg0: i32) -> (i32, i32, i32) {
    %c0_i32 = arith.constant 0 : i32
    %c0_i32_0 = arith.constant 0 : i32
    %c0_i32_1 = arith.constant 0 : i32
    return %arg0, %c0_i32, %c0_i32_0 : i32, i32, i32
  }
  func.func @transform_4(%arg0: i32) -> (i32, i32, i32) {
    %c0_i32 = arith.constant 0 : i32
    %c0_i32_0 = arith.constant 0 : i32
    %c0_i32_1 = arith.constant 0 : i32
    return %arg0, %c0_i32, %c0_i32_0 : i32, i32, i32
  }
}

</mosaic_0001>

<llo_original>
// kernel: tpu_custom_call.1
$region0: #{tpu_custom_call.1}
  #allocation0 [shape = 'u32[]', space=smem, size = 0x4, offset = 0x4, fixed_abs, tag = 'smem constant byte address 0x4 - core index']
  #allocation1 [shape = 'u32[144,128]{1,0:T(1,128)}', space=vmem, size = 0x12000, scoped, tag = 'internal scratch']
  %s0 = inlined_call_operand.hbm [shape: f32[256,2048], index: 0, kind: input, shape index: {}]
  %s1 = inlined_call_operand.hbm [shape: f32[2048,128], index: 1, kind: input, shape index: {}]
  %s2 = inlined_call_operand.hbm [shape: f32[128,2048], index: 2, kind: input, shape index: {}]
  %s3 = inlined_call_operand.hbm [shape: f32[2,1,256], index: 3, kind: input, shape index: {}]
  %s4 = inlined_call_operand.hbm [shape: f32[2,1,2048], index: 4, kind: output, shape index: {}]
  %s5 = sld [smem:[#allocation0]]
  $region65: #{tpu_custom_call.1} parent=0
    _
  %s7 = ssub.s32 1, %s5
  %s8 = scalar_select 0, %s7, %s5
  $region1: #{tpu_custom_call.1} parent=0
    #allocation2 [shape = 'u8[2097152]{0}', space=vmem, size = 0x200000, scoped, tag = 'input window, operand 0, single buffered']
    #allocation3 [shape = 's32[2]{0}', space=sflag, size = 0x8, scoped, tag = 'scoped memory for tpu_custom_call.1']
    #allocation4 [shape = 's32[2]{0}', space=sflag, size = 0x8, scoped, tag = 'scoped memory for tpu_custom_call.1']
    #allocation5 [shape = 'u8[1048576]{0}', space=vmem, size = 0x100000, scoped, tag = 'input window, operand 1, single buffered']
    #allocation6 [shape = 's32[1]{0}', space=sflag, size = 0x4, scoped, tag = 'scoped memory for tpu_custom_call.1']
    #allocation7 [shape = 'u8[1048576]{0}', space=vmem, size = 0x100000, scoped, tag = 'input window, operand 2, single buffered']
    #allocation8 [shape = 'u8[2048]{0}', space=vmem, size = 0x800, scoped, tag = 'input window, operand 3']
    #allocation9 [shape = 's32[2]{0}', space=sflag, size = 0x8, scoped, tag = 'scoped memory for tpu_custom_call.1']
    #allocation10 [shape = 'u8[16384]{0}', space=vmem, size = 0x4000, scoped, tag = 'output window, operand 0']
    %9 = vsyncpa [#allocation3], 0
    %10 = vsyncpa [#allocation6], 0
    %11 = vsyncpa [#allocation9], 0
    %s12 = scalar_lea.sflag [#allocation9], 1
    %13 = vsyncpa %s12, 0
    %14 = vsyncpa [#allocation4], 0
    %s15 = scalar_lea.sflag [#allocation4], 1
    %16 = vsyncpa %s15, 0
    loop: start=0, step=1, limit=4
    $region2: #{tpu_custom_call.1} parent=1 // loop_pre_header
      _
    $region3: #{tpu_custom_call.1} parent=1 // loop_header
      %s18 = sphi 0, %s22
      %p19 = scmp.ge.s32.totalorder %s18, 4
      %s26 = sphi 0, %s26
      %s28 = sphi 0, %s26
      %s29 = sphi 0, %s28
      %s43 = sphi 0, %s29
      %s47 = sphi 0, %s47
      %s49 = sphi 0, %s47
      %s50 = sphi 0, %s49
      %s64 = sphi 0, %s50
      %s68 = sphi 0, %s68
      %s70 = sphi 0, %s68
      %s71 = sphi 0, %s70
      %s85 = sphi 0, %s71
      %s91 = sphi 0, %s93
      %s94 = sphi 0, %s91
      %s95 = sphi 0, %s94
      %s111 = sphi 0, %s95
      %s117 = sphi 0, %s119
      %s120 = sphi 0, %s117
      %s121 = sphi 0, %s120
      %s137 = sphi 0, %s121
    $region4: #{tpu_custom_call.1} parent=1 // loop_header_branch
      %21 = sbr.rel (%p19) target = $region8
    $region5: #{tpu_custom_call.1} parent=1 // loop_body
      %s23 = ssub.s32 %s18, 1
      %s24 = ssub.s32 %s18, 2
      %s25 = sadd.s32 %s18, 1
      %s27 = sadd.s32 %s26, 1
      %p30 = scmp.eq.s32.totalorder %s18, 1
      %p31 = scmp.ne.s32.totalorder %s26, %s28
      %p32 = scmp.eq.s32.totalorder %s18, 0
      %p33 = por %p31, %p32
      %p34 = scmp.ne.s32.totalorder %s26, %s28
      %p35 = scmp.eq.s32.totalorder %s23, 1
      %p36 = por %p34, %p35
      %p37 = scmp.ne.s32.totalorder %s28, %s29
      %p38 = scmp.eq.s32.totalorder %s23, 0
      %p39 = por %p37, %p38
      %p40 = scmp.ne.s32.totalorder %s28, %s29
      %p41 = scmp.eq.s32.totalorder %s24, 1
      %p42 = por %p40, %p41
      %p44 = scmp.ne.s32.totalorder %s29, %s43
      %p45 = scmp.eq.s32.totalorder %s24, 0
      %p46 = por %p44, %p45
      %s48 = sadd.s32 %s47, 1
      %p51 = scmp.eq.s32.totalorder %s18, 1
      %p52 = scmp.ne.s32.totalorder %s47, %s49
      %p53 = scmp.eq.s32.totalorder %s18, 0
      %p54 = por %p52, %p53
      %p55 = scmp.ne.s32.totalorder %s47, %s49
      %p56 = scmp.eq.s32.totalorder %s23, 1
      %p57 = por %p55, %p56
      %p58 = scmp.ne.s32.totalorder %s49, %s50
      %p59 = scmp.eq.s32.totalorder %s23, 0
      %p60 = por %p58, %p59
      %p61 = scmp.ne.s32.totalorder %s49, %s50
      %p62 = scmp.eq.s32.totalorder %s24, 1
      %p63 = por %p61, %p62
      %p65 = scmp.ne.s32.totalorder %s50, %s64
      %p66 = scmp.eq.s32.totalorder %s24, 0
      %p67 = por %p65, %p66
      %s69 = sadd.s32 %s68, 1
      %p72 = scmp.eq.s32.totalorder %s18, 1
      %p73 = scmp.ne.s32.totalorder %s68, %s70
      %p74 = scmp.eq.s32.totalorder %s18, 0
      %p75 = por %p73, %p74
      %p76 = scmp.ne.s32.totalorder %s68, %s70
      %p77 = scmp.eq.s32.totalorder %s23, 1
      %p78 = por %p76, %p77
      %p79 = scmp.ne.s32.totalorder %s70, %s71
      %p80 = scmp.eq.s32.totalorder %s23, 0
      %p81 = por %p79, %p80
      %p82 = scmp.ne.s32.totalorder %s70, %s71
      %p83 = scmp.eq.s32.totalorder %s24, 1
      %p84 = por %p82, %p83
      %p86 = scmp.ne.s32.totalorder %s71, %s85
      %p87 = scmp.eq.s32.totalorder %s24, 0
      %p88 = por %p86, %p87
      %s89 = ssub.s32 %s18, %s25
      %p90 = scmp.eq.s32.totalorder %s89, 0
      %s92 = sadd.s32 %s91, 1
      %s93 = scalar_select %p90, %s91, %s92
      %p96 = pneg %p90
      %p97 = scmp.eq.s32.totalorder %s18, 1
      %p98 = por %p96, %p97
      %p99 = scmp.ne.s32.totalorder %s91, %s94
      %p100 = scmp.eq.s32.totalorder %s18, 0
      %p101 = por %p99, %p100
      %p102 = scmp.ne.s32.totalorder %s91, %s94
      %p103 = scmp.eq.s32.totalorder %s23, 1
      %p104 = por %p102, %p103
      %p105 = scmp.ne.s32.totalorder %s94, %s95
      %p106 = scmp.eq.s32.totalorder %s23, 0
      %p107 = por %p105, %p106
      %p108 = scmp.ne.s32.totalorder %s94, %s95
      %p109 = scmp.eq.s32.totalorder %s24, 1
      %p110 = por %p108, %p109
      %p112 = scmp.ne.s32.totalorder %s95, %s111
      %p113 = scmp.eq.s32.totalorder %s24, 0
      %p114 = por %p112, %p113
      %s115 = ssub.s32 %s18, %s25
      %p116 = scmp.eq.s32.totalorder %s115, 0
      %s118 = sadd.s32 %s117, 1
      %s119 = scalar_select %p116, %s117, %s118
      %p122 = pneg %p116
      %p123 = scmp.eq.s32.totalorder %s18, 1
      %p124 = por %p122, %p123
      %p125 = scmp.ne.s32.totalorder %s117, %s120
      %p126 = scmp.eq.s32.totalorder %s18, 0
      %p127 = por %p125, %p126
      %p128 = scmp.ne.s32.totalorder %s117, %s120
      %p129 = scmp.eq.s32.totalorder %s23, 1
      %p130 = por %p128, %p129
      %p131 = scmp.ne.s32.totalorder %s120, %s121
      %p132 = scmp.eq.s32.totalorder %s23, 0
      %p133 = por %p131, %p132
      %p134 = scmp.ne.s32.totalorder %s120, %s121
      %p135 = scmp.eq.s32.totalorder %s24, 1
      %p136 = por %p134, %p135
      %p138 = scmp.ne.s32.totalorder %s121, %s137
      %p139 = scmp.eq.s32.totalorder %s24, 0
      %p140 = por %p138, %p139
      %p141 = scmp.le.s32.totalorder 1, %s18
      %p142 = scmp.lt.s32.totalorder %s18, 3
      %p143 = pnand %p141, %p142
      %p144 = pneg %p143
      // Predicated region
      $region9: #{tpu_custom_call.1} parent=5 // pred_check
        _
      $region10: #{tpu_custom_call.1} parent=5 // pred_check_branch
        %146 = sbr.rel (%p143) target = $region12
      $region11: #{tpu_custom_call.1} parent=5 // pred_region
        %s147 = ssub.s32 %s18, 1
        // Predicated region
        $region13: #{tpu_custom_call.1} parent=11 // pred_check
          %p148 = pneg %p39
        $region14: #{tpu_custom_call.1} parent=11 // pred_check_branch
          %150 = sbr.rel (%p148) target = $region16
        $region15: #{tpu_custom_call.1} parent=11 // pred_region
          %s152 = ssub.s32 65536, 65536
          %153 = vsyncadd [#allocation3], %s152
          %s154 = sshll.u32 [#allocation2], 4
          %s155 = int_to_ptr.vmem [resolvable:$true] %s154
          %160 = dma.hbm_to_vmem [thread:$0]  %s0, 65536, %s155, [#allocation3], 2048, 2048, 128
        $region16: #{tpu_custom_call.1} parent=11 // pred_fallthru
          _
        // Predicated region
        $region17: #{tpu_custom_call.1} parent=11 // pred_check
          %p161 = pneg %p60
        $region18: #{tpu_custom_call.1} parent=11 // pred_check_branch
          %163 = sbr.rel (%p161) target = $region20
        $region19: #{tpu_custom_call.1} parent=11 // pred_region
          %s165 = ssub.s32 32768, 32768
          %166 = vsyncadd [#allocation6], %s165
          %s167 = sshll.u32 [#allocation5], 4
          %s168 = int_to_ptr.vmem [resolvable:$true] %s167
          %173 = dma.hbm_to_vmem [thread:$0]  %s1, 32768, %s168, [#allocation6], 128, 128, 8
        $region20: #{tpu_custom_call.1} parent=11 // pred_fallthru
          _
        // Predicated region
        $region21: #{tpu_custom_call.1} parent=11 // pred_check
          %p174 = pneg %p81
        $region22: #{tpu_custom_call.1} parent=11 // pred_check_branch
          %176 = sbr.rel (%p174) target = $region24
        $region23: #{tpu_custom_call.1} parent=11 // pred_region
          %s178 = ssub.s32 32768, 32768
          %179 = vsyncadd [#allocation6], %s178
          %s180 = sshll.u32 [#allocation7], 4
          %s181 = int_to_ptr.vmem [resolvable:$true] %s180
          %186 = dma.hbm_to_vmem [thread:$0]  %s2, 32768, %s181, [#allocation6], 2048, 2048, 128
        $region24: #{tpu_custom_call.1} parent=11 // pred_fallthru
          _
      $region12: #{tpu_custom_call.1} parent=5 // pred_fallthru
        _
      %p187 = scmp.lt.s32.totalorder %s18, 2
      // Predicated region
      $region25: #{tpu_custom_call.1} parent=5 // pred_check
        %p188 = pneg %p187
      $region26: #{tpu_custom_call.1} parent=5 // pred_check_branch
        %190 = sbr.rel (%p188) target = $region28
      $region27: #{tpu_custom_call.1} parent=5 // pred_region
        // Predicated region
        $region29: #{tpu_custom_call.1} parent=27 // pred_check
          %p191 = pneg %p101
        $region30: #{tpu_custom_call.1} parent=27 // pred_check_branch
          %193 = sbr.rel (%p191) target = $region32
        $region31: #{tpu_custom_call.1} parent=27 // pred_region
          %s194 = sand.u32 %s91, 1
          %s195 = scalar_lea.sflag [#allocation9], %s194
          %s196 = sand.u32 %s91, 1
          %s197 = smul.addr %s196, 2
          %s198 = scalar_lea.vmem [#allocation8], %s197
          %s200 = ssub.s32 32, 32
          %201 = vsyncadd %s195, %s200
          %s202 = smul.addr %s18, 2
          %s203 = smul.addr %s202, 16
          %s204 = scalar_lea.hbm %s3, %s203
          %s206 = sshll.u32 %s198, 4
          %s207 = int_to_ptr.vmem [resolvable:$true] %s206
          %209 = dma.hbm_to_vmem [thread:$0]  %s204, 32, %s207, %s195
        $region32: #{tpu_custom_call.1} parent=27 // pred_fallthru
          _
      $region28: #{tpu_custom_call.1} parent=5 // pred_fallthru
        _
      %p210 = scmp.le.s32.totalorder 1, %s18
      %p211 = scmp.lt.s32.totalorder %s18, 3
      %p212 = pnand %p210, %p211
      %p213 = pneg %p212
      // Predicated region
      $region33: #{tpu_custom_call.1} parent=5 // pred_check
        _
      $region34: #{tpu_custom_call.1} parent=5 // pred_check_branch
        %215 = sbr.rel (%p212) target = $region36
      $region35: #{tpu_custom_call.1} parent=5 // pred_region
        %s216 = ssub.s32 %s18, 1
        // Predicated region
        $region37: #{tpu_custom_call.1} parent=35 // pred_check
          %p217 = pneg %p39
        $region38: #{tpu_custom_call.1} parent=35 // pred_check_branch
          %219 = sbr.rel (%p217) target = $region40
        $region39: #{tpu_custom_call.1} parent=35 // pred_region
          %220 = dma.done [#allocation3], 65536
        $region40: #{tpu_custom_call.1} parent=35 // pred_fallthru
          _
        // Predicated region
        $region41: #{tpu_custom_call.1} parent=35 // pred_check
          %p221 = pneg %p60
        $region42: #{tpu_custom_call.1} parent=35 // pred_check_branch
          %223 = sbr.rel (%p221) target = $region44
        $region43: #{tpu_custom_call.1} parent=35 // pred_region
          %224 = dma.done [#allocation6], 32768
        $region44: #{tpu_custom_call.1} parent=35 // pred_fallthru
          _
        // Predicated region
        $region45: #{tpu_custom_call.1} parent=35 // pred_check
          %p225 = pneg %p81
        $region46: #{tpu_custom_call.1} parent=35 // pred_check_branch
          %227 = sbr.rel (%p225) target = $region48
        $region47: #{tpu_custom_call.1} parent=35 // pred_region
          %228 = dma.done [#allocation6], 32768
        $region48: #{tpu_custom_call.1} parent=35 // pred_fallthru
          _
        %s229 = sand.u32 %s94, 1
        %s230 = scalar_lea.sflag [#allocation9], %s229
        %s231 = sand.u32 %s94, 1
        %s232 = smul.addr %s231, 2
        %s233 = scalar_lea.vmem [#allocation8], %s232
        // Predicated region
        $region49: #{tpu_custom_call.1} parent=35 // pred_check
          %p234 = pneg %p107
        $region50: #{tpu_custom_call.1} parent=35 // pred_check_branch
          %236 = sbr.rel (%p234) target = $region52
        $region51: #{tpu_custom_call.1} parent=35 // pred_region
          %237 = dma.done %s230, 32
        $region52: #{tpu_custom_call.1} parent=35 // pred_fallthru
          _
        %p238 = pneg %p39
        %p239 = pneg %p36
        %p240 = pneg %p60
        %p241 = pneg %p57
        %p242 = pneg %p81
        %p243 = pneg %p78
        %s244 = sand.u32 %s94, 1
        %s245 = scalar_lea.sflag [#allocation9], %s244
        %s246 = sand.u32 %s94, 1
        %s247 = smul.addr %s246, 2
        %s248 = scalar_lea.vmem [#allocation8], %s247
        %p249 = pneg %p107
        %p250 = pneg %p104
        %p251 = pneg %p133
        %p252 = pneg %p130
        %s253 = sand.u32 %s120, 1
        %s254 = scalar_lea.sflag [#allocation4], %s253
        %s255 = sand.u32 %s120, 1
        %s256 = smul.addr %s255, 16
        %s257 = scalar_lea.vmem [#allocation10], %s256
        %v258 = vld [vmem:[%s233] sm:$0x3]
        %v259 = vld [vmem:[#allocation2] sm:$0xff]
        %v260 = vld [vmem:[#allocation2 + $0x8] sm:$0xff]
        %v261 = vld [vmem:[#allocation2 + $0x10] sm:$0xff]
        %v262 = vld [vmem:[#allocation2 + $0x18] sm:$0xff]
        %v263 = vld [vmem:[#allocation2 + $0x20] sm:$0xff]
        %v264 = vld [vmem:[#allocation2 + $0x28] sm:$0xff]
        %v265 = vld [vmem:[#allocation2 + $0x30] sm:$0xff]
        %v266 = vld [vmem:[#allocation2 + $0x38] sm:$0xff]
        %v267 = vld [vmem:[#allocation2 + $0x40] sm:$0xff]
        %v268 = vld [vmem:[#allocation2 + $0x48] sm:$0xff]
        %v269 = vld [vmem:[#allocation2 + $0x50] sm:$0xff]
        %v270 = vld [vmem:[#allocation2 + $0x58] sm:$0xff]
        %v271 = vld [vmem:[#allocation2 + $0x60] sm:$0xff]
        %v272 = vld [vmem:[#allocation2 + $0x68] sm:$0xff]
        %v273 = vld [vmem:[#allocation2 + $0x70] sm:$0xff]
        %v274 = vld [vmem:[#allocation2 + $0x78] sm:$0xff]
        %v275 = vld [vmem:[#allocation2 + $0x80] sm:$0xff]
        %v276 = vld [vmem:[#allocation2 + $0x88] sm:$0xff]
        %v277 = vld [vmem:[#allocation2 + $0x90] sm:$0xff]
        %v278 = vld [vmem:[#allocation2 + $0x98] sm:$0xff]
        %v279 = vld [vmem:[#allocation2 + $0xa0] sm:$0xff]
        %v280 = vld [vmem:[#allocation2 + $0xa8] sm:$0xff]
        %v281 = vld [vmem:[#allocation2 + $0xb0] sm:$0xff]
        %v282 = vld [vmem:[#allocation2 + $0xb8] sm:$0xff]
        %v283 = vld [vmem:[#allocation2 + $0xc0] sm:$0xff]
        %v284 = vld [vmem:[#allocation2 + $0xc8] sm:$0xff]
        %v285 = vld [vmem:[#allocation2 + $0xd0] sm:$0xff]
        %v286 = vld [vmem:[#allocation2 + $0xd8] sm:$0xff]
        %v287 = vld [vmem:[#allocation2 + $0xe0] sm:$0xff]
        %v288 = vld [vmem:[#allocation2 + $0xe8] sm:$0xff]
        %v289 = vld [vmem:[#allocation2 + $0xf0] sm:$0xff]
        %v290 = vld [vmem:[#allocation2 + $0xf8] sm:$0xff]
        %v291 = vld [vmem:[#allocation2 + $0x100] sm:$0xff]
        %v292 = vld [vmem:[#allocation2 + $0x108] sm:$0xff]
        %v293 = vld [vmem:[#allocation2 + $0x110] sm:$0xff]
        %v294 = vld [vmem:[#allocation2 + $0x118] sm:$0xff]
        %v295 = vld [vmem:[#allocation2 + $0x120] sm:$0xff]
        %v296 = vld [vmem:[#allocation2 + $0x128] sm:$0xff]
        %v297 = vld [vmem:[#allocation2 + $0x130] sm:$0xff]
        %v298 = vld [vmem:[#allocation2 + $0x138] sm:$0xff]
        %v299 = vld [vmem:[#allocation2 + $0x140] sm:$0xff]
        %v300 = vld [vmem:[#allocation2 + $0x148] sm:$0xff]
        %v301 = vld [vmem:[#allocation2 + $0x150] sm:$0xff]
        %v302 = vld [vmem:[#allocation2 + $0x158] sm:$0xff]
        %v303 = vld [vmem:[#allocation2 + $0x160] sm:$0xff]
        %v304 = vld [vmem:[#allocation2 + $0x168] sm:$0xff]
        %v305 = vld [vmem:[#allocation2 + $0x170] sm:$0xff]
        %v306 = vld [vmem:[#allocation2 + $0x178] sm:$0xff]
        %v307 = vld [vmem:[#allocation2 + $0x180] sm:$0xff]
        %v308 = vld [vmem:[#allocation2 + $0x188] sm:$0xff]
        %v309 = vld [vmem:[#allocation2 + $0x190] sm:$0xff]
        %v310 = vld [vmem:[#allocation2 + $0x198] sm:$0xff]
        %v311 = vld [vmem:[#allocation2 + $0x1a0] sm:$0xff]
        %v312 = vld [vmem:[#allocation2 + $0x1a8] sm:$0xff]
        %v313 = vld [vmem:[#allocation2 + $0x1b0] sm:$0xff]
        %v314 = vld [vmem:[#allocation2 + $0x1b8] sm:$0xff]
        %v315 = vld [vmem:[#allocation2 + $0x1c0] sm:$0xff]
        %v316 = vld [vmem:[#allocation2 + $0x1c8] sm:$0xff]
        %v317 = vld [vmem:[#allocation2 + $0x1d0] sm:$0xff]
        %v318 = vld [vmem:[#allocation2 + $0x1d8] sm:$0xff]
        %v319 = vld [vmem:[#allocation2 + $0x1e0] sm:$0xff]
        %v320 = vld [vmem:[#allocation2 + $0x1e8] sm:$0xff]
        %v321 = vld [vmem:[#allocation2 + $0x1f0] sm:$0xff]
        %v322 = vld [vmem:[#allocation2 + $0x1f8] sm:$0xff]
        %v323 = vld [vmem:[#allocation2 + $0x200] sm:$0xff]
        %v324 = vld [vmem:[#allocation2 + $0x208] sm:$0xff]
        %v325 = vld [vmem:[#allocation2 + $0x210] sm:$0xff]
        %v326 = vld [vmem:[#allocation2 + $0x218] sm:$0xff]
        %v327 = vld [vmem:[#allocation2 + $0x220] sm:$0xff]
        %v328 = vld [vmem:[#allocation2 + $0x228] sm:$0xff]
        %v329 = vld [vmem:[#allocation2 + $0x230] sm:$0xff]
        %v330 = vld [vmem:[#allocation2 + $0x238] sm:$0xff]
        %v331 = vld [vmem:[#allocation2 + $0x240] sm:$0xff]
        %v332 = vld [vmem:[#allocation2 + $0x248] sm:$0xff]
        %v333 = vld [vmem:[#allocation2 + $0x250] sm:$0xff]
        %v334 = vld [vmem:[#allocation2 + $0x258] sm:$0xff]
        %v335 = vld [vmem:[#allocation2 + $0x260] sm:$0xff]
        %v336 = vld [vmem:[#allocation2 + $0x268] sm:$0xff]
        %v337 = vld [vmem:[#allocation2 + $0x270] sm:$0xff]
        %v338 = vld [vmem:[#allocation2 + $0x278] sm:$0xff]
        %v339 = vld [vmem:[#allocation2 + $0x280] sm:$0xff]
        %v340 = vld [vmem:[#allocation2 + $0x288] sm:$0xff]
        %v341 = vld [vmem:[#allocation2 + $0x290] sm:$0xff]
        %v342 = vld [vmem:[#allocation2 + $0x298] sm:$0xff]
        %v343 = vld [vmem:[#allocation2 + $0x2a0] sm:$0xff]
        %v344 = vld [vmem:[#allocation2 + $0x2a8] sm:$0xff]
        %v345 = vld [vmem:[#allocation2 + $0x2b0] sm:$0xff]
        %v346 = vld [vmem:[#allocation2 + $0x2b8] sm:$0xff]
        %v347 = vld [vmem:[#allocation2 + $0x2c0] sm:$0xff]
        %v348 = vld [vmem:[#allocation2 + $0x2c8] sm:$0xff]
        %v349 = vld [vmem:[#allocation2 + $0x2d0] sm:$0xff]
        %v350 = vld [vmem:[#allocation2 + $0x2d8] sm:$0xff]
        %v351 = vld [vmem:[#allocation2 + $0x2e0] sm:$0xff]
        %v352 = vld [vmem:[#allocation2 + $0x2e8] sm:$0xff]
        %v353 = vld [vmem:[#allocation2 + $0x2f0] sm:$0xff]
        %v354 = vld [vmem:[#allocation2 + $0x2f8] sm:$0xff]
        %v355 = vld [vmem:[#allocation2 + $0x300] sm:$0xff]
        %v356 = vld [vmem:[#allocation2 + $0x308] sm:$0xff]
        %v357 = vld [vmem:[#allocation2 + $0x310] sm:$0xff]
        %v358 = vld [vmem:[#allocation2 + $0x318] sm:$0xff]
        %v359 = vld [vmem:[#allocation2 + $0x320] sm:$0xff]
        %v360 = vld [vmem:[#allocation2 + $0x328] sm:$0xff]
        %v361 = vld [vmem:[#allocation2 + $0x330] sm:$0xff]
        %v362 = vld [vmem:[#allocation2 + $0x338] sm:$0xff]
        %v363 = vld [vmem:[#allocation2 + $0x340] sm:$0xff]
        %v364 = vld [vmem:[#allocation2 + $0x348] sm:$0xff]
        %v365 = vld [vmem:[#allocation2 + $0x350] sm:$0xff]
        %v366 = vld [vmem:[#allocation2 + $0x358] sm:$0xff]
        %v367 = vld [vmem:[#allocation2 + $0x360] sm:$0xff]
        %v368 = vld [vmem:[#allocation2 + $0x368] sm:$0xff]
        %v369 = vld [vmem:[#allocation2 + $0x370] sm:$0xff]
        %v370 = vld [vmem:[#allocation2 + $0x378] sm:$0xff]
        %v371 = vld [vmem:[#allocation2 + $0x380] sm:$0xff]
        %v372 = vld [vmem:[#allocation2 + $0x388] sm:$0xff]
        %v373 = vld [vmem:[#allocation2 + $0x390] sm:$0xff]
        %v374 = vld [vmem:[#allocation2 + $0x398] sm:$0xff]
        %v375 = vld [vmem:[#allocation2 + $0x3a0] sm:$0xff]
        %v376 = vld [vmem:[#allocation2 + $0x3a8] sm:$0xff]
        %v377 = vld [vmem:[#allocation2 + $0x3b0] sm:$0xff]
        %v378 = vld [vmem:[#allocation2 + $0x3b8] sm:$0xff]
        %v379 = vld [vmem:[#allocation2 + $0x3c0] sm:$0xff]
        %v380 = vld [vmem:[#allocation2 + $0x3c8] sm:$0xff]
        %v381 = vld [vmem:[#allocation2 + $0x3d0] sm:$0xff]
        %v382 = vld [vmem:[#allocation2 + $0x3d8] sm:$0xff]
        %v383 = vld [vmem:[#allocation2 + $0x3e0] sm:$0xff]
        %v384 = vld [vmem:[#allocation2 + $0x3e8] sm:$0xff]
        %v385 = vld [vmem:[#allocation2 + $0x3f0] sm:$0xff]
        %v386 = vld [vmem:[#allocation2 + $0x3f8] sm:$0xff]
        %v387 = vld [vmem:[#allocation2 + $0x400] sm:$0xff]
        %v388 = vld [vmem:[#allocation2 + $0x408] sm:$0xff]
        %v389 = vld [vmem:[#allocation2 + $0x410] sm:$0xff]
        %v390 = vld [vmem:[#allocation2 + $0x418] sm:$0xff]
        %v391 = vld [vmem:[#allocation2 + $0x420] sm:$0xff]
        %v392 = vld [vmem:[#allocation2 + $0x428] sm:$0xff]
        %v393 = vld [vmem:[#allocation2 + $0x430] sm:$0xff]
        %v394 = vld [vmem:[#allocation2 + $0x438] sm:$0xff]
        %v395 = vld [vmem:[#allocation2 + $0x440] sm:$0xff]
        %v396 = vld [vmem:[#allocation2 + $0x448] sm:$0xff]
        %v397 = vld [vmem:[#allocation2 + $0x450] sm:$0xff]
        %v398 = vld [vmem:[#allocation2 + $0x458] sm:$0xff]
        %v399 = vld [vmem:[#allocation2 + $0x460] sm:$0xff]
        %v400 = vld [vmem:[#allocation2 + $0x468] sm:$0xff]
        %v401 = vld [vmem:[#allocation2 + $0x470] sm:$0xff]
        %v402 = vld [vmem:[#allocation2 + $0x478] sm:$0xff]
        %v403 = vld [vmem:[#allocation2 + $0x480] sm:$0xff]
        %v404 = vld [vmem:[#allocation2 + $0x488] sm:$0xff]
        %v405 = vld [vmem:[#allocation2 + $0x490] sm:$0xff]
        %v406 = vld [vmem:[#allocation2 + $0x498] sm:$0xff]
        %v407 = vld [vmem:[#allocation2 + $0x4a0] sm:$0xff]
        %v408 = vld [vmem:[#allocation2 + $0x4a8] sm:$0xff]
        %v409 = vld [vmem:[#allocation2 + $0x4b0] sm:$0xff]
        %v410 = vld [vmem:[#allocation2 + $0x4b8] sm:$0xff]
        %v411 = vld [vmem:[#allocation2 + $0x4c0] sm:$0xff]
        %v412 = vld [vmem:[#allocation2 + $0x4c8] sm:$0xff]
        %v413 = vld [vmem:[#allocation2 + $0x4d0] sm:$0xff]
        %v414 = vld [vmem:[#allocation2 + $0x4d8] sm:$0xff]
        %v415 = vld [vmem:[#allocation2 + $0x4e0] sm:$0xff]
        %v416 = vld [vmem:[#allocation2 + $0x4e8] sm:$0xff]
        %v417 = vld [vmem:[#allocation2 + $0x4f0] sm:$0xff]
        %v418 = vld [vmem:[#allocation2 + $0x4f8] sm:$0xff]
        %v419 = vld [vmem:[#allocation2 + $0x500] sm:$0xff]
        %v420 = vld [vmem:[#allocation2 + $0x508] sm:$0xff]
        %v421 = vld [vmem:[#allocation2 + $0x510] sm:$0xff]
        %v422 = vld [vmem:[#allocation2 + $0x518] sm:$0xff]
        %v423 = vld [vmem:[#allocation2 + $0x520] sm:$0xff]
        %v424 = vld [vmem:[#allocation2 + $0x528] sm:$0xff]
        %v425 = vld [vmem:[#allocation2 + $0x530] sm:$0xff]
        %v426 = vld [vmem:[#allocation2 + $0x538] sm:$0xff]
        %v427 = vld [vmem:[#allocation2 + $0x540] sm:$0xff]
        %v428 = vld [vmem:[#allocation2 + $0x548] sm:$0xff]
        %v429 = vld [vmem:[#allocation2 + $0x550] sm:$0xff]
        %v430 = vld [vmem:[#allocation2 + $0x558] sm:$0xff]
        %v431 = vld [vmem:[#allocation2 + $0x560] sm:$0xff]
        %v432 = vld [vmem:[#allocation2 + $0x568] sm:$0xff]
        %v433 = vld [vmem:[#allocation2 + $0x570] sm:$0xff]
        %v434 = vld [vmem:[#allocation2 + $0x578] sm:$0xff]
        %v435 = vld [vmem:[#allocation2 + $0x580] sm:$0xff]
        %v436 = vld [vmem:[#allocation2 + $0x588] sm:$0xff]
        %v437 = vld [vmem:[#allocation2 + $0x590] sm:$0xff]
        %v438 = vld [vmem:[#allocation2 + $0x598] sm:$0xff]
        %v439 = vld [vmem:[#allocation2 + $0x5a0] sm:$0xff]
        %v440 = vld [vmem:[#allocation2 + $0x5a8] sm:$0xff]
        %v441 = vld [vmem:[#allocation2 + $0x5b0] sm:$0xff]
        %v442 = vld [vmem:[#allocation2 + $0x5b8] sm:$0xff]
        %v443 = vld [vmem:[#allocation2 + $0x5c0] sm:$0xff]
        %v444 = vld [vmem:[#allocation2 + $0x5c8] sm:$0xff]
        %v445 = vld [vmem:[#allocation2 + $0x5d0] sm:$0xff]
        %v446 = vld [vmem:[#allocation2 + $0x5d8] sm:$0xff]
        %v447 = vld [vmem:[#allocation2 + $0x5e0] sm:$0xff]
        %v448 = vld [vmem:[#allocation2 + $0x5e8] sm:$0xff]
        %v449 = vld [vmem:[#allocation2 + $0x5f0] sm:$0xff]
        %v450 = vld [vmem:[#allocation2 + $0x5f8] sm:$0xff]
        %v451 = vld [vmem:[#allocation2 + $0x600] sm:$0xff]
        %v452 = vld [vmem:[#allocation2 + $0x608] sm:$0xff]
        %v453 = vld [vmem:[#allocation2 + $0x610] sm:$0xff]
        %v454 = vld [vmem:[#allocation2 + $0x618] sm:$0xff]
        %v455 = vld [vmem:[#allocation2 + $0x620] sm:$0xff]
        %v456 = vld [vmem:[#allocation2 + $0x628] sm:$0xff]
        %v457 = vld [vmem:[#allocation2 + $0x630] sm:$0xff]
        %v458 = vld [vmem:[#allocation2 + $0x638] sm:$0xff]
        %v459 = vld [vmem:[#allocation2 + $0x640] sm:$0xff]
        %v460 = vld [vmem:[#allocation2 + $0x648] sm:$0xff]
        %v461 = vld [vmem:[#allocation2 + $0x650] sm:$0xff]
        %v462 = vld [vmem:[#allocation2 + $0x658] sm:$0xff]
        %v463 = vld [vmem:[#allocation2 + $0x660] sm:$0xff]
        %v464 = vld [vmem:[#allocation2 + $0x668] sm:$0xff]
        %v465 = vld [vmem:[#allocation2 + $0x670] sm:$0xff]
        %v466 = vld [vmem:[#allocation2 + $0x678] sm:$0xff]
        %v467 = vld [vmem:[#allocation2 + $0x680] sm:$0xff]
        %v468 = vld [vmem:[#allocation2 + $0x688] sm:$0xff]
        %v469 = vld [vmem:[#allocation2 + $0x690] sm:$0xff]
        %v470 = vld [vmem:[#allocation2 + $0x698] sm:$0xff]
        %v471 = vld [vmem:[#allocation2 + $0x6a0] sm:$0xff]
        %v472 = vld [vmem:[#allocation2 + $0x6a8] sm:$0xff]
        %v473 = vld [vmem:[#allocation2 + $0x6b0] sm:$0xff]
        %v474 = vld [vmem:[#allocation2 + $0x6b8] sm:$0xff]
        %v475 = vld [vmem:[#allocation2 + $0x6c0] sm:$0xff]
        %v476 = vld [vmem:[#allocation2 + $0x6c8] sm:$0xff]
        %v477 = vld [vmem:[#allocation2 + $0x6d0] sm:$0xff]
        %v478 = vld [vmem:[#allocation2 + $0x6d8] sm:$0xff]
        %v479 = vld [vmem:[#allocation2 + $0x6e0] sm:$0xff]
        %v480 = vld [vmem:[#allocation2 + $0x6e8] sm:$0xff]
        %v481 = vld [vmem:[#allocation2 + $0x6f0] sm:$0xff]
        %v482 = vld [vmem:[#allocation2 + $0x6f8] sm:$0xff]
        %v483 = vld [vmem:[#allocation2 + $0x700] sm:$0xff]
        %v484 = vld [vmem:[#allocation2 + $0x708] sm:$0xff]
        %v485 = vld [vmem:[#allocation2 + $0x710] sm:$0xff]
        %v486 = vld [vmem:[#allocation2 + $0x718] sm:$0xff]
        %v487 = vld [vmem:[#allocation2 + $0x720] sm:$0xff]
        %v488 = vld [vmem:[#allocation2 + $0x728] sm:$0xff]
        %v489 = vld [vmem:[#allocation2 + $0x730] sm:$0xff]
        %v490 = vld [vmem:[#allocation2 + $0x738] sm:$0xff]
        %v491 = vld [vmem:[#allocation2 + $0x740] sm:$0xff]
        %v492 = vld [vmem:[#allocation2 + $0x748] sm:$0xff]
        %v493 = vld [vmem:[#allocation2 + $0x750] sm:$0xff]
        %v494 = vld [vmem:[#allocation2 + $0x758] sm:$0xff]
        %v495 = vld [vmem:[#allocation2 + $0x760] sm:$0xff]
        %v496 = vld [vmem:[#allocation2 + $0x768] sm:$0xff]
        %v497 = vld [vmem:[#allocation2 + $0x770] sm:$0xff]
        %v498 = vld [vmem:[#allocation2 + $0x778] sm:$0xff]
        %v499 = vld [vmem:[#allocation2 + $0x780] sm:$0xff]
        %v500 = vld [vmem:[#allocation2 + $0x788] sm:$0xff]
        %v501 = vld [vmem:[#allocation2 + $0x790] sm:$0xff]
        %v502 = vld [vmem:[#allocation2 + $0x798] sm:$0xff]
        %v503 = vld [vmem:[#allocation2 + $0x7a0] sm:$0xff]
        %v504 = vld [vmem:[#allocation2 + $0x7a8] sm:$0xff]
        %v505 = vld [vmem:[#allocation2 + $0x7b0] sm:$0xff]
        %v506 = vld [vmem:[#allocation2 + $0x7b8] sm:$0xff]
        %v507 = vld [vmem:[#allocation2 + $0x7c0] sm:$0xff]
        %v508 = vld [vmem:[#allocation2 + $0x7c8] sm:$0xff]
        %v509 = vld [vmem:[#allocation2 + $0x7d0] sm:$0xff]
        %v510 = vld [vmem:[#allocation2 + $0x7d8] sm:$0xff]
        %v511 = vld [vmem:[#allocation2 + $0x7e0] sm:$0xff]
        %v512 = vld [vmem:[#allocation2 + $0x7e8] sm:$0xff]
        %v513 = vld [vmem:[#allocation2 + $0x7f0] sm:$0xff]
        %v514 = vld [vmem:[#allocation2 + $0x7f8] sm:$0xff]
        %v515 = vld [vmem:[#allocation2 + $0x800] sm:$0xff]
        %v516 = vld [vmem:[#allocation2 + $0x808] sm:$0xff]
        %v517 = vld [vmem:[#allocation2 + $0x810] sm:$0xff]
        %v518 = vld [vmem:[#allocation2 + $0x818] sm:$0xff]
        %v519 = vld [vmem:[#allocation2 + $0x820] sm:$0xff]
        %v520 = vld [vmem:[#allocation2 + $0x828] sm:$0xff]
        %v521 = vld [vmem:[#allocation2 + $0x830] sm:$0xff]
        %v522 = vld [vmem:[#allocation2 + $0x838] sm:$0xff]
        %v523 = vld [vmem:[#allocation2 + $0x840] sm:$0xff]
        %v524 = vld [vmem:[#allocation2 + $0x848] sm:$0xff]
        %v525 = vld [vmem:[#allocation2 + $0x850] sm:$0xff]
        %v526 = vld [vmem:[#allocation2 + $0x858] sm:$0xff]
        %v527 = vld [vmem:[#allocation2 + $0x860] sm:$0xff]
        %v528 = vld [vmem:[#allocation2 + $0x868] sm:$0xff]
        %v529 = vld [vmem:[#allocation2 + $0x870] sm:$0xff]
        %v530 = vld [vmem:[#allocation2 + $0x878] sm:$0xff]
        %v531 = vld [vmem:[#allocation2 + $0x880] sm:$0xff]
        %v532 = vld [vmem:[#allocation2 + $0x888] sm:$0xff]
        %v533 = vld [vmem:[#allocation2 + $0x890] sm:$0xff]
        %v534 = vld [vmem:[#allocation2 + $0x898] sm:$0xff]
        %v535 = vld [vmem:[#allocation2 + $0x8a0] sm:$0xff]
        %v536 = vld [vmem:[#allocation2 + $0x8a8] sm:$0xff]
        %v537 = vld [vmem:[#allocation2 + $0x8b0] sm:$0xff]
        %v538 = vld [vmem:[#allocation2 + $0x8b8] sm:$0xff]
        %v539 = vld [vmem:[#allocation2 + $0x8c0] sm:$0xff]
        %v540 = vld [vmem:[#allocation2 + $0x8c8] sm:$0xff]
        %v541 = vld [vmem:[#allocation2 + $0x8d0] sm:$0xff]
        %v542 = vld [vmem:[#allocation2 + $0x8d8] sm:$0xff]
        %v543 = vld [vmem:[#allocation2 + $0x8e0] sm:$0xff]
        %v544 = vld [vmem:[#allocation2 + $0x8e8] sm:$0xff]
        %v545 = vld [vmem:[#allocation2 + $0x8f0] sm:$0xff]
        %v546 = vld [vmem:[#allocation2 + $0x8f8] sm:$0xff]
        %v547 = vld [vmem:[#allocation2 + $0x900] sm:$0xff]
        %v548 = vld [vmem:[#allocation2 + $0x908] sm:$0xff]
        %v549 = vld [vmem:[#allocation2 + $0x910] sm:$0xff]
        %v550 = vld [vmem:[#allocation2 + $0x918] sm:$0xff]
        %v551 = vld [vmem:[#allocation2 + $0x920] sm:$0xff]
        %v552 = vld [vmem:[#allocation2 + $0x928] sm:$0xff]
        %v553 = vld [vmem:[#allocation2 + $0x930] sm:$0xff]
        %v554 = vld [vmem:[#allocation2 + $0x938] sm:$0xff]
        %v555 = vld [vmem:[#allocation2 + $0x940] sm:$0xff]
        %v556 = vld [vmem:[#allocation2 + $0x948] sm:$0xff]
        %v557 = vld [vmem:[#allocation2 + $0x950] sm:$0xff]
        %v558 = vld [vmem:[#allocation2 + $0x958] sm:$0xff]
        %v559 = vld [vmem:[#allocation2 + $0x960] sm:$0xff]
        %v560 = vld [vmem:[#allocation2 + $0x968] sm:$0xff]
        %v561 = vld [vmem:[#allocation2 + $0x970] sm:$0xff]
        %v562 = vld [vmem:[#allocation2 + $0x978] sm:$0xff]
        %v563 = vld [vmem:[#allocation2 + $0x980] sm:$0xff]
        %v564 = vld [vmem:[#allocation2 + $0x988] sm:$0xff]
        %v565 = vld [vmem:[#allocation2 + $0x990] sm:$0xff]
        %v566 = vld [vmem:[#allocation2 + $0x998] sm:$0xff]
        %v567 = vld [vmem:[#allocation2 + $0x9a0] sm:$0xff]
        %v568 = vld [vmem:[#allocation2 + $0x9a8] sm:$0xff]
        %v569 = vld [vmem:[#allocation2 + $0x9b0] sm:$0xff]
        %v570 = vld [vmem:[#allocation2 + $0x9b8] sm:$0xff]
        %v571 = vld [vmem:[#allocation2 + $0x9c0] sm:$0xff]
        %v572 = vld [vmem:[#allocation2 + $0x9c8] sm:$0xff]
        %v573 = vld [vmem:[#allocation2 + $0x9d0] sm:$0xff]
        %v574 = vld [vmem:[#allocation2 + $0x9d8] sm:$0xff]
        %v575 = vld [vmem:[#allocation2 + $0x9e0] sm:$0xff]
        %v576 = vld [vmem:[#allocation2 + $0x9e8] sm:$0xff]
        %v577 = vld [vmem:[#allocation2 + $0x9f0] sm:$0xff]
        %v578 = vld [vmem:[#allocation2 + $0x9f8] sm:$0xff]
        %v579 = vld [vmem:[#allocation2 + $0xa00] sm:$0xff]
        %v580 = vld [vmem:[#allocation2 + $0xa08] sm:$0xff]
        %v581 = vld [vmem:[#allocation2 + $0xa10] sm:$0xff]
        %v582 = vld [vmem:[#allocation2 + $0xa18] sm:$0xff]
        %v583 = vld [vmem:[#allocation2 + $0xa20] sm:$0xff]
        %v584 = vld [vmem:[#allocation2 + $0xa28] sm:$0xff]
        %v585 = vld [vmem:[#allocation2 + $0xa30] sm:$0xff]
        %v586 = vld [vmem:[#allocation2 + $0xa38] sm:$0xff]
        %v587 = vld [vmem:[#allocation2 + $0xa40] sm:$0xff]
        %v588 = vld [vmem:[#allocation2 + $0xa48] sm:$0xff]
        %v589 = vld [vmem:[#allocation2 + $0xa50] sm:$0xff]
        %v590 = vld [vmem:[#allocation2 + $0xa58] sm:$0xff]
        %v591 = vld [vmem:[#allocation2 + $0xa60] sm:$0xff]
        %v592 = vld [vmem:[#allocation2 + $0xa68] sm:$0xff]
        %v593 = vld [vmem:[#allocation2 + $0xa70] sm:$0xff]
        %v594 = vld [vmem:[#allocation2 + $0xa78] sm:$0xff]
        %v595 = vld [vmem:[#allocation2 + $0xa80] sm:$0xff]
        %v596 = vld [vmem:[#allocation2 + $0xa88] sm:$0xff]
        %v597 = vld [vmem:[#allocation2 + $0xa90] sm:$0xff]
        %v598 = vld [vmem:[#allocation2 + $0xa98] sm:$0xff]
        %v599 = vld [vmem:[#allocation2 + $0xaa0] sm:$0xff]
        %v600 = vld [vmem:[#allocation2 + $0xaa8] sm:$0xff]
        %v601 = vld [vmem:[#allocation2 + $0xab0] sm:$0xff]
        %v602 = vld [vmem:[#allocation2 + $0xab8] sm:$0xff]
        %v603 = vld [vmem:[#allocation2 + $0xac0] sm:$0xff]
        %v604 = vld [vmem:[#allocation2 + $0xac8] sm:$0xff]
        %v605 = vld [vmem:[#allocation2 + $0xad0] sm:$0xff]
        %v606 = vld [vmem:[#allocation2 + $0xad8] sm:$0xff]
        %v607 = vld [vmem:[#allocation2 + $0xae0] sm:$0xff]
        %v608 = vld [vmem:[#allocation2 + $0xae8] sm:$0xff]
        %v609 = vld [vmem:[#allocation2 + $0xaf0] sm:$0xff]
        %v610 = vld [vmem:[#allocation2 + $0xaf8] sm:$0xff]
        %v611 = vld [vmem:[#allocation2 + $0xb00] sm:$0xff]
        %v612 = vld [vmem:[#allocation2 + $0xb08] sm:$0xff]
        %v613 = vld [vmem:[#allocation2 + $0xb10] sm:$0xff]
        %v614 = vld [vmem:[#allocation2 + $0xb18] sm:$0xff]
        %v615 = vld [vmem:[#allocation2 + $0xb20] sm:$0xff]
        %v616 = vld [vmem:[#allocation2 + $0xb28] sm:$0xff]
        %v617 = vld [vmem:[#allocation2 + $0xb30] sm:$0xff]
        %v618 = vld [vmem:[#allocation2 + $0xb38] sm:$0xff]
        %v619 = vld [vmem:[#allocation2 + $0xb40] sm:$0xff]
        %v620 = vld [vmem:[#allocation2 + $0xb48] sm:$0xff]
        %v621 = vld [vmem:[#allocation2 + $0xb50] sm:$0xff]
        %v622 = vld [vmem:[#allocation2 + $0xb58] sm:$0xff]
        %v623 = vld [vmem:[#allocation2 + $0xb60] sm:$0xff]
        %v624 = vld [vmem:[#allocation2 + $0xb68] sm:$0xff]
        %v625 = vld [vmem:[#allocation2 + $0xb70] sm:$0xff]
        %v626 = vld [vmem:[#allocation2 + $0xb78] sm:$0xff]
        %v627 = vld [vmem:[#allocation2 + $0xb80] sm:$0xff]
        %v628 = vld [vmem:[#allocation2 + $0xb88] sm:$0xff]
        %v629 = vld [vmem:[#allocation2 + $0xb90] sm:$0xff]
        %v630 = vld [vmem:[#allocation2 + $0xb98] sm:$0xff]
        %v631 = vld [vmem:[#allocation2 + $0xba0] sm:$0xff]
        %v632 = vld [vmem:[#allocation2 + $0xba8] sm:$0xff]
        %v633 = vld [vmem:[#allocation2 + $0xbb0] sm:$0xff]
        %v634 = vld [vmem:[#allocation2 + $0xbb8] sm:$0xff]
        %v635 = vld [vmem:[#allocation2 + $0xbc0] sm:$0xff]
        %v636 = vld [vmem:[#allocation2 + $0xbc8] sm:$0xff]
        %v637 = vld [vmem:[#allocation2 + $0xbd0] sm:$0xff]
        %v638 = vld [vmem:[#allocation2 + $0xbd8] sm:$0xff]
        %v639 = vld [vmem:[#allocation2 + $0xbe0] sm:$0xff]
        %v640 = vld [vmem:[#allocation2 + $0xbe8] sm:$0xff]
        %v641 = vld [vmem:[#allocation2 + $0xbf0] sm:$0xff]
        %v642 = vld [vmem:[#allocation2 + $0xbf8] sm:$0xff]
        %v643 = vld [vmem:[#allocation2 + $0xc00] sm:$0xff]
        %v644 = vld [vmem:[#allocation2 + $0xc08] sm:$0xff]
        %v645 = vld [vmem:[#allocation2 + $0xc10] sm:$0xff]
        %v646 = vld [vmem:[#allocation2 + $0xc18] sm:$0xff]
        %v647 = vld [vmem:[#allocation2 + $0xc20] sm:$0xff]
        %v648 = vld [vmem:[#allocation2 + $0xc28] sm:$0xff]
        %v649 = vld [vmem:[#allocation2 + $0xc30] sm:$0xff]
        %v650 = vld [vmem:[#allocation2 + $0xc38] sm:$0xff]
        %v651 = vld [vmem:[#allocation2 + $0xc40] sm:$0xff]
        %v652 = vld [vmem:[#allocation2 + $0xc48] sm:$0xff]
        %v653 = vld [vmem:[#allocation2 + $0xc50] sm:$0xff]
        %v654 = vld [vmem:[#allocation2 + $0xc58] sm:$0xff]
        %v655 = vld [vmem:[#allocation2 + $0xc60] sm:$0xff]
        %v656 = vld [vmem:[#allocation2 + $0xc68] sm:$0xff]
        %v657 = vld [vmem:[#allocation2 + $0xc70] sm:$0xff]
        %v658 = vld [vmem:[#allocation2 + $0xc78] sm:$0xff]
        %v659 = vld [vmem:[#allocation2 + $0xc80] sm:$0xff]
        %v660 = vld [vmem:[#allocation2 + $0xc88] sm:$0xff]
        %v661 = vld [vmem:[#allocation2 + $0xc90] sm:$0xff]
        %v662 = vld [vmem:[#allocation2 + $0xc98] sm:$0xff]
        %v663 = vld [vmem:[#allocation2 + $0xca0] sm:$0xff]
        %v664 = vld [vmem:[#allocation2 + $0xca8] sm:$0xff]
        %v665 = vld [vmem:[#allocation2 + $0xcb0] sm:$0xff]
        %v666 = vld [vmem:[#allocation2 + $0xcb8] sm:$0xff]
        %v667 = vld [vmem:[#allocation2 + $0xcc0] sm:$0xff]
        %v668 = vld [vmem:[#allocation2 + $0xcc8] sm:$0xff]
        %v669 = vld [vmem:[#allocation2 + $0xcd0] sm:$0xff]
        %v670 = vld [vmem:[#allocation2 + $0xcd8] sm:$0xff]
        %v671 = vld [vmem:[#allocation2 + $0xce0] sm:$0xff]
        %v672 = vld [vmem:[#allocation2 + $0xce8] sm:$0xff]
        %v673 = vld [vmem:[#allocation2 + $0xcf0] sm:$0xff]
        %v674 = vld [vmem:[#allocation2 + $0xcf8] sm:$0xff]
        %v675 = vld [vmem:[#allocation2 + $0xd00] sm:$0xff]
        %v676 = vld [vmem:[#allocation2 + $0xd08] sm:$0xff]
        %v677 = vld [vmem:[#allocation2 + $0xd10] sm:$0xff]
        %v678 = vld [vmem:[#allocation2 + $0xd18] sm:$0xff]
        %v679 = vld [vmem:[#allocation2 + $0xd20] sm:$0xff]
        %v680 = vld [vmem:[#allocation2 + $0xd28] sm:$0xff]
        %v681 = vld [vmem:[#allocation2 + $0xd30] sm:$0xff]
        %v682 = vld [vmem:[#allocation2 + $0xd38] sm:$0xff]
        %v683 = vld [vmem:[#allocation2 + $0xd40] sm:$0xff]
        %v684 = vld [vmem:[#allocation2 + $0xd48] sm:$0xff]
        %v685 = vld [vmem:[#allocation2 + $0xd50] sm:$0xff]
        %v686 = vld [vmem:[#allocation2 + $0xd58] sm:$0xff]
        %v687 = vld [vmem:[#allocation2 + $0xd60] sm:$0xff]
        %v688 = vld [vmem:[#allocation2 + $0xd68] sm:$0xff]
        %v689 = vld [vmem:[#allocation2 + $0xd70] sm:$0xff]
        %v690 = vld [vmem:[#allocation2 + $0xd78] sm:$0xff]
        %v691 = vld [vmem:[#allocation2 + $0xd80] sm:$0xff]
        %v692 = vld [vmem:[#allocation2 + $0xd88] sm:$0xff]
        %v693 = vld [vmem:[#allocation2 + $0xd90] sm:$0xff]
        %v694 = vld [vmem:[#allocation2 + $0xd98] sm:$0xff]
        %v695 = vld [vmem:[#allocation2 + $0xda0] sm:$0xff]
        %v696 = vld [vmem:[#allocation2 + $0xda8] sm:$0xff]
        %v697 = vld [vmem:[#allocation2 + $0xdb0] sm:$0xff]
        %v698 = vld [vmem:[#allocation2 + $0xdb8] sm:$0xff]
        %v699 = vld [vmem:[#allocation2 + $0xdc0] sm:$0xff]
        %v700 = vld [vmem:[#allocation2 + $0xdc8] sm:$0xff]
        %v701 = vld [vmem:[#allocation2 + $0xdd0] sm:$0xff]
        %v702 = vld [vmem:[#allocation2 + $0xdd8] sm:$0xff]
        %v703 = vld [vmem:[#allocation2 + $0xde0] sm:$0xff]
        %v704 = vld [vmem:[#allocation2 + $0xde8] sm:$0xff]
        %v705 = vld [vmem:[#allocation2 + $0xdf0] sm:$0xff]
        %v706 = vld [vmem:[#allocation2 + $0xdf8] sm:$0xff]
        %v707 = vld [vmem:[#allocation2 + $0xe00] sm:$0xff]
        %v708 = vld [vmem:[#allocation2 + $0xe08] sm:$0xff]
        %v709 = vld [vmem:[#allocation2 + $0xe10] sm:$0xff]
        %v710 = vld [vmem:[#allocation2 + $0xe18] sm:$0xff]
        %v711 = vld [vmem:[#allocation2 + $0xe20] sm:$0xff]
        %v712 = vld [vmem:[#allocation2 + $0xe28] sm:$0xff]
        %v713 = vld [vmem:[#allocation2 + $0xe30] sm:$0xff]
        %v714 = vld [vmem:[#allocation2 + $0xe38] sm:$0xff]
        %v715 = vld [vmem:[#allocation2 + $0xe40] sm:$0xff]
        %v716 = vld [vmem:[#allocation2 + $0xe48] sm:$0xff]
        %v717 = vld [vmem:[#allocation2 + $0xe50] sm:$0xff]
        %v718 = vld [vmem:[#allocation2 + $0xe58] sm:$0xff]
        %v719 = vld [vmem:[#allocation2 + $0xe60] sm:$0xff]
        %v720 = vld [vmem:[#allocation2 + $0xe68] sm:$0xff]
        %v721 = vld [vmem:[#allocation2 + $0xe70] sm:$0xff]
        %v722 = vld [vmem:[#allocation2 + $0xe78] sm:$0xff]
        %v723 = vld [vmem:[#allocation2 + $0xe80] sm:$0xff]
        %v724 = vld [vmem:[#allocation2 + $0xe88] sm:$0xff]
        %v725 = vld [vmem:[#allocation2 + $0xe90] sm:$0xff]
        %v726 = vld [vmem:[#allocation2 + $0xe98] sm:$0xff]
        %v727 = vld [vmem:[#allocation2 + $0xea0] sm:$0xff]
        %v728 = vld [vmem:[#allocation2 + $0xea8] sm:$0xff]
        %v729 = vld [vmem:[#allocation2 + $0xeb0] sm:$0xff]
        %v730 = vld [vmem:[#allocation2 + $0xeb8] sm:$0xff]
        %v731 = vld [vmem:[#allocation2 + $0xec0] sm:$0xff]
        %v732 = vld [vmem:[#allocation2 + $0xec8] sm:$0xff]
        %v733 = vld [vmem:[#allocation2 + $0xed0] sm:$0xff]
        %v734 = vld [vmem:[#allocation2 + $0xed8] sm:$0xff]
        %v735 = vld [vmem:[#allocation2 + $0xee0] sm:$0xff]
        %v736 = vld [vmem:[#allocation2 + $0xee8] sm:$0xff]
        %v737 = vld [vmem:[#allocation2 + $0xef0] sm:$0xff]
        %v738 = vld [vmem:[#allocation2 + $0xef8] sm:$0xff]
        %v739 = vld [vmem:[#allocation2 + $0xf00] sm:$0xff]
        %v740 = vld [vmem:[#allocation2 + $0xf08] sm:$0xff]
        %v741 = vld [vmem:[#allocation2 + $0xf10] sm:$0xff]
        %v742 = vld [vmem:[#allocation2 + $0xf18] sm:$0xff]
        %v743 = vld [vmem:[#allocation2 + $0xf20] sm:$0xff]
        %v744 = vld [vmem:[#allocation2 + $0xf28] sm:$0xff]
        %v745 = vld [vmem:[#allocation2 + $0xf30] sm:$0xff]
        %v746 = vld [vmem:[#allocation2 + $0xf38] sm:$0xff]
        %v747 = vld [vmem:[#allocation2 + $0xf40] sm:$0xff]
        %v748 = vld [vmem:[#allocation2 + $0xf48] sm:$0xff]
        %v749 = vld [vmem:[#allocation2 + $0xf50] sm:$0xff]
        %v750 = vld [vmem:[#allocation2 + $0xf58] sm:$0xff]
        %v751 = vld [vmem:[#allocation2 + $0xf60] sm:$0xff]
        %v752 = vld [vmem:[#allocation2 + $0xf68] sm:$0xff]
        %v753 = vld [vmem:[#allocation2 + $0xf70] sm:$0xff]
        %v754 = vld [vmem:[#allocation2 + $0xf78] sm:$0xff]
        %v755 = vld [vmem:[#allocation2 + $0xf80] sm:$0xff]
        %v756 = vld [vmem:[#allocation2 + $0xf88] sm:$0xff]
        %v757 = vld [vmem:[#allocation2 + $0xf90] sm:$0xff]
        %v758 = vld [vmem:[#allocation2 + $0xf98] sm:$0xff]
        %v759 = vld [vmem:[#allocation2 + $0xfa0] sm:$0xff]
        %v760 = vld [vmem:[#allocation2 + $0xfa8] sm:$0xff]
        %v761 = vld [vmem:[#allocation2 + $0xfb0] sm:$0xff]
        %v762 = vld [vmem:[#allocation2 + $0xfb8] sm:$0xff]
        %v763 = vld [vmem:[#allocation2 + $0xfc0] sm:$0xff]
        %v764 = vld [vmem:[#allocation2 + $0xfc8] sm:$0xff]
        %v765 = vld [vmem:[#allocation2 + $0xfd0] sm:$0xff]
        %v766 = vld [vmem:[#allocation2 + $0xfd8] sm:$0xff]
        %v767 = vld [vmem:[#allocation2 + $0xfe0] sm:$0xff]
        %v768 = vld [vmem:[#allocation2 + $0xfe8] sm:$0xff]
        %v769 = vld [vmem:[#allocation2 + $0xff0] sm:$0xff]
        %v770 = vld [vmem:[#allocation2 + $0xff8] sm:$0xff]
        %v772 = vlaneseq
        %v773 = vshrl.u32 %v772, 7
        %v774 = vsub.s32 0, %v773
        %v775 = vrot.slane %v258, %v774
        %v776 = vlaneseq
        %v777 = vshrl.u32 %v776, 7
        %v778 = vsub.s32 1, %v777
        %v779 = vrot.slane %v258, %v778
        %782 = vmatprep.subr.mxu0 %v500
        %783 = vmatpush1.msra.mxu0 %v499
        %784 = vmatprep.subr.mxu0 %v484
        %785 = vmatpush1.msra.mxu0 %v483
        %786 = vmatprep.subr.mxu0 %v468
        %787 = vmatpush1.msra.mxu0 %v467
        %788 = vmatprep.subr.mxu0 %v452
        %789 = vmatpush1.msra.mxu0 %v451
        %790 = vmatprep.subr.mxu0 %v436
        %791 = vmatpush1.msra.mxu0 %v435
        %792 = vmatprep.subr.mxu0 %v420
        %793 = vmatpush1.msra.mxu0 %v419
        %794 = vmatprep.subr.mxu0 %v404
        %795 = vmatpush1.msra.mxu0 %v403
        %796 = vmatprep.subr.mxu0 %v388
        %797 = vmatpush1.msra.mxu0 %v387
        %798 = vmatprep.subr.mxu0 %v372
        %799 = vmatpush1.msra.mxu0 %v371
        %800 = vmatprep.subr.mxu0 %v356
        %801 = vmatpush1.msra.mxu0 %v355
        %802 = vmatprep.subr.mxu0 %v340
        %803 = vmatpush1.msra.mxu0 %v339
        %804 = vmatprep.subr.mxu0 %v324
        %805 = vmatpush1.msra.mxu0 %v323
        %806 = vmatprep.subr.mxu0 %v308
        %807 = vmatpush1.msra.mxu0 %v307
        %808 = vmatprep.subr.mxu0 %v292
        %809 = vmatpush1.msra.mxu0 %v291
        %810 = vmatprep.subr.mxu0 %v276
        %811 = vmatpush1.msra.mxu0 %v275
        %812 = vmatprep.subr.mxu0 %v260
        %813 = vmatpush1.msra.mxu0 %v259
        %814 = vmatprep.subr.mxu0 %v756
        %815 = vmatpush2.msra.mxu0 %v755
        %816 = vmatprep.subr.mxu0 %v740
        %817 = vmatpush2.msra.mxu0 %v739
        %818 = vmatprep.subr.mxu0 %v724
        %819 = vmatpush2.msra.mxu0 %v723
        %820 = vmatprep.subr.mxu0 %v708
        %821 = vmatpush2.msra.mxu0 %v707
        %822 = vmatprep.subr.mxu0 %v692
        %823 = vmatpush2.msra.mxu0 %v691
        %824 = vmatprep.subr.mxu0 %v676
        %825 = vmatpush2.msra.mxu0 %v675
        %826 = vmatprep.subr.mxu0 %v660
        %827 = vmatpush2.msra.mxu0 %v659
        %828 = vmatprep.subr.mxu0 %v644
        %829 = vmatpush2.msra.mxu0 %v643
        %830 = vmatprep.subr.mxu0 %v628
        %831 = vmatpush2.msra.mxu0 %v627
        %832 = vmatprep.subr.mxu0 %v612
        %833 = vmatpush2.msra.mxu0 %v611
        %834 = vmatprep.subr.mxu0 %v596
        %835 = vmatpush2.msra.mxu0 %v595
        %836 = vmatprep.subr.mxu0 %v580
        %837 = vmatpush2.msra.mxu0 %v579
        %838 = vmatprep.subr.mxu0 %v564
        %839 = vmatpush2.msra.mxu0 %v563
        %840 = vmatprep.subr.mxu0 %v548
        %841 = vmatpush2.msra.mxu0 %v547
        %842 = vmatprep.subr.mxu0 %v532
        %843 = vmatpush2.msra.mxu0 %v531
        %844 = vmatprep.subr.mxu0 %v516
        %845 = vmatpush2.msra.mxu0 %v515
        %846 = vmatprep.mubr.f32.mxu0 %v779
        %847 = vmatmul.mubr.f32.gmra.mxu0 %v775
        %v848 = vpop.f32.mrf.mxu0
        %v849 = vadd.f32 0.0, %v848
        %v850 = vpop.f32.mrf.mxu0
        %v851 = vadd.f32 0.0, %v850
        %852 = vdwg.mxu0
        %853 = vmatprep.subr.mxu0 %v502
        %854 = vmatpush1.msra.mxu0 %v501
        %855 = vmatprep.subr.mxu0 %v486
        %856 = vmatpush1.msra.mxu0 %v485
        %857 = vmatprep.subr.mxu0 %v470
        %858 = vmatpush1.msra.mxu0 %v469
        %859 = vmatprep.subr.mxu0 %v454
        %860 = vmatpush1.msra.mxu0 %v453
        %861 = vmatprep.subr.mxu0 %v438
        %862 = vmatpush1.msra.mxu0 %v437
        %863 = vmatprep.subr.mxu0 %v422
        %864 = vmatpush1.msra.mxu0 %v421
        %865 = vmatprep.subr.mxu0 %v406
        %866 = vmatpush1.msra.mxu0 %v405
        %867 = vmatprep.subr.mxu0 %v390
        %868 = vmatpush1.msra.mxu0 %v389
        %869 = vmatprep.subr.mxu0 %v374
        %870 = vmatpush1.msra.mxu0 %v373
        %871 = vmatprep.subr.mxu0 %v358
        %872 = vmatpush1.msra.mxu0 %v357
        %873 = vmatprep.subr.mxu0 %v342
        %874 = vmatpush1.msra.mxu0 %v341
        %875 = vmatprep.subr.mxu0 %v326
        %876 = vmatpush1.msra.mxu0 %v325
        %877 = vmatprep.subr.mxu0 %v310
        %878 = vmatpush1.msra.mxu0 %v309
        %879 = vmatprep.subr.mxu0 %v294
        %880 = vmatpush1.msra.mxu0 %v293
        %881 = vmatprep.subr.mxu0 %v278
        %882 = vmatpush1.msra.mxu0 %v277
        %883 = vmatprep.subr.mxu0 %v262
        %884 = vmatpush1.msra.mxu0 %v261
        %885 = vmatprep.subr.mxu0 %v758
        %886 = vmatpush2.msra.mxu0 %v757
        %887 = vmatprep.subr.mxu0 %v742
        %888 = vmatpush2.msra.mxu0 %v741
        %889 = vmatprep.subr.mxu0 %v726
        %890 = vmatpush2.msra.mxu0 %v725
        %891 = vmatprep.subr.mxu0 %v710
        %892 = vmatpush2.msra.mxu0 %v709
        %893 = vmatprep.subr.mxu0 %v694
        %894 = vmatpush2.msra.mxu0 %v693
        %895 = vmatprep.subr.mxu0 %v678
        %896 = vmatpush2.msra.mxu0 %v677
        %897 = vmatprep.subr.mxu0 %v662
        %898 = vmatpush2.msra.mxu0 %v661
        %899 = vmatprep.subr.mxu0 %v646
        %900 = vmatpush2.msra.mxu0 %v645
        %901 = vmatprep.subr.mxu0 %v630
        %902 = vmatpush2.msra.mxu0 %v629
        %903 = vmatprep.subr.mxu0 %v614
        %904 = vmatpush2.msra.mxu0 %v613
        %905 = vmatprep.subr.mxu0 %v598
        %906 = vmatpush2.msra.mxu0 %v597
        %907 = vmatprep.subr.mxu0 %v582
        %908 = vmatpush2.msra.mxu0 %v581
        %909 = vmatprep.subr.mxu0 %v566
        %910 = vmatpush2.msra.mxu0 %v565
        %911 = vmatprep.subr.mxu0 %v550
        %912 = vmatpush2.msra.mxu0 %v549
        %913 = vmatprep.subr.mxu0 %v534
        %914 = vmatpush2.msra.mxu0 %v533
        %915 = vmatprep.subr.mxu0 %v518
        %916 = vmatpush2.msra.mxu0 %v517
        %917 = vmatprep.mubr.f32.mxu0 %v779
        %918 = vmatmul.mubr.f32.gmra.mxu0 %v775
        %v919 = vpop.f32.mrf.mxu0
        %v920 = vadd.f32 0.0, %v919
        %v921 = vpop.f32.mrf.mxu0
        %v922 = vadd.f32 0.0, %v921
        %923 = vdwg.mxu0
        %924 = vmatprep.subr.mxu0 %v504
        %925 = vmatpush1.msra.mxu0 %v503
        %926 = vmatprep.subr.mxu0 %v488
        %927 = vmatpush1.msra.mxu0 %v487
        %928 = vmatprep.subr.mxu0 %v472
        %929 = vmatpush1.msra.mxu0 %v471
        %930 = vmatprep.subr.mxu0 %v456
        %931 = vmatpush1.msra.mxu0 %v455
        %932 = vmatprep.subr.mxu0 %v440
        %933 = vmatpush1.msra.mxu0 %v439
        %934 = vmatprep.subr.mxu0 %v424
        %935 = vmatpush1.msra.mxu0 %v423
        %936 = vmatprep.subr.mxu0 %v408
        %937 = vmatpush1.msra.mxu0 %v407
        %938 = vmatprep.subr.mxu0 %v392
        %939 = vmatpush1.msra.mxu0 %v391
        %940 = vmatprep.subr.mxu0 %v376
        %941 = vmatpush1.msra.mxu0 %v375
        %942 = vmatprep.subr.mxu0 %v360
        %943 = vmatpush1.msra.mxu0 %v359
        %944 = vmatprep.subr.mxu0 %v344
        %945 = vmatpush1.msra.mxu0 %v343
        %946 = vmatprep.subr.mxu0 %v328
        %947 = vmatpush1.msra.mxu0 %v327
        %948 = vmatprep.subr.mxu0 %v312
        %949 = vmatpush1.msra.mxu0 %v311
        %950 = vmatprep.subr.mxu0 %v296
        %951 = vmatpush1.msra.mxu0 %v295
        %952 = vmatprep.subr.mxu0 %v280
        %953 = vmatpush1.msra.mxu0 %v279
        %954 = vmatprep.subr.mxu0 %v264
        %955 = vmatpush1.msra.mxu0 %v263
        %956 = vmatprep.subr.mxu0 %v760
        %957 = vmatpush2.msra.mxu0 %v759
        %958 = vmatprep.subr.mxu0 %v744
        %959 = vmatpush2.msra.mxu0 %v743
        %960 = vmatprep.subr.mxu0 %v728
        %961 = vmatpush2.msra.mxu0 %v727
        %962 = vmatprep.subr.mxu0 %v712
        %963 = vmatpush2.msra.mxu0 %v711
        %964 = vmatprep.subr.mxu0 %v696
        %965 = vmatpush2.msra.mxu0 %v695
        %966 = vmatprep.subr.mxu0 %v680
        %967 = vmatpush2.msra.mxu0 %v679
        %968 = vmatprep.subr.mxu0 %v664
        %969 = vmatpush2.msra.mxu0 %v663
        %970 = vmatprep.subr.mxu0 %v648
        %971 = vmatpush2.msra.mxu0 %v647
        %972 = vmatprep.subr.mxu0 %v632
        %973 = vmatpush2.msra.mxu0 %v631
        %974 = vmatprep.subr.mxu0 %v616
        %975 = vmatpush2.msra.mxu0 %v615
        %976 = vmatprep.subr.mxu0 %v600
        %977 = vmatpush2.msra.mxu0 %v599
        %978 = vmatprep.subr.mxu0 %v584
        %979 = vmatpush2.msra.mxu0 %v583
        %980 = vmatprep.subr.mxu0 %v568
        %981 = vmatpush2.msra.mxu0 %v567
        %982 = vmatprep.subr.mxu0 %v552
        %983 = vmatpush2.msra.mxu0 %v551
        %984 = vmatprep.subr.mxu0 %v536
        %985 = vmatpush2.msra.mxu0 %v535
        %986 = vmatprep.subr.mxu0 %v520
        %987 = vmatpush2.msra.mxu0 %v519
        %988 = vmatprep.mubr.f32.mxu0 %v779
        %989 = vmatmul.mubr.f32.gmra.mxu0 %v775
        %v990 = vpop.f32.mrf.mxu0
        %v991 = vadd.f32 0.0, %v990
        %v992 = vpop.f32.mrf.mxu0
        %v993 = vadd.f32 0.0, %v992
        %994 = vdwg.mxu0
        %995 = vmatprep.subr.mxu0 %v506
        %996 = vmatpush1.msra.mxu0 %v505
        %997 = vmatprep.subr.mxu0 %v490
        %998 = vmatpush1.msra.mxu0 %v489
        %999 = vmatprep.subr.mxu0 %v474
        %1000 = vmatpush1.msra.mxu0 %v473
        %1001 = vmatprep.subr.mxu0 %v458
        %1002 = vmatpush1.msra.mxu0 %v457
        %1003 = vmatprep.subr.mxu0 %v442
        %1004 = vmatpush1.msra.mxu0 %v441
        %1005 = vmatprep.subr.mxu0 %v426
        %1006 = vmatpush1.msra.mxu0 %v425
        %1007 = vmatprep.subr.mxu0 %v410
        %1008 = vmatpush1.msra.mxu0 %v409
        %1009 = vmatprep.subr.mxu0 %v394
        %1010 = vmatpush1.msra.mxu0 %v393
        %1011 = vmatprep.subr.mxu0 %v378
        %1012 = vmatpush1.msra.mxu0 %v377
        %1013 = vmatprep.subr.mxu0 %v362
        %1014 = vmatpush1.msra.mxu0 %v361
        %1015 = vmatprep.subr.mxu0 %v346
        %1016 = vmatpush1.msra.mxu0 %v345
        %1017 = vmatprep.subr.mxu0 %v330
        %1018 = vmatpush1.msra.mxu0 %v329
        %1019 = vmatprep.subr.mxu0 %v314
        %1020 = vmatpush1.msra.mxu0 %v313
        %1021 = vmatprep.subr.mxu0 %v298
        %1022 = vmatpush1.msra.mxu0 %v297
        %1023 = vmatprep.subr.mxu0 %v282
        %1024 = vmatpush1.msra.mxu0 %v281
        %1025 = vmatprep.subr.mxu0 %v266
        %1026 = vmatpush1.msra.mxu0 %v265
        %1027 = vmatprep.subr.mxu0 %v762
        %1028 = vmatpush2.msra.mxu0 %v761
        %1029 = vmatprep.subr.mxu0 %v746
        %1030 = vmatpush2.msra.mxu0 %v745
        %1031 = vmatprep.subr.mxu0 %v730
        %1032 = vmatpush2.msra.mxu0 %v729
        %1033 = vmatprep.subr.mxu0 %v714
        %1034 = vmatpush2.msra.mxu0 %v713
        %1035 = vmatprep.subr.mxu0 %v698
        %1036 = vmatpush2.msra.mxu0 %v697
        %1037 = vmatprep.subr.mxu0 %v682
        %1038 = vmatpush2.msra.mxu0 %v681
        %1039 = vmatprep.subr.mxu0 %v666
        %1040 = vmatpush2.msra.mxu0 %v665
        %1041 = vmatprep.subr.mxu0 %v650
        %1042 = vmatpush2.msra.mxu0 %v649
        %1043 = vmatprep.subr.mxu0 %v634
        %1044 = vmatpush2.msra.mxu0 %v633
        %1045 = vmatprep.subr.mxu0 %v618
        %1046 = vmatpush2.msra.mxu0 %v617
        %1047 = vmatprep.subr.mxu0 %v602
        %1048 = vmatpush2.msra.mxu0 %v601
        %1049 = vmatprep.subr.mxu0 %v586
        %1050 = vmatpush2.msra.mxu0 %v585
        %1051 = vmatprep.subr.mxu0 %v570
        %1052 = vmatpush2.msra.mxu0 %v569
        %1053 = vmatprep.subr.mxu0 %v554
        %1054 = vmatpush2.msra.mxu0 %v553
        %1055 = vmatprep.subr.mxu0 %v538
        %1056 = vmatpush2.msra.mxu0 %v537
        %1057 = vmatprep.subr.mxu0 %v522
        %1058 = vmatpush2.msra.mxu0 %v521
        %1059 = vmatprep.mubr.f32.mxu0 %v779
        %1060 = vmatmul.mubr.f32.gmra.mxu0 %v775
        %v1061 = vpop.f32.mrf.mxu0
        %v1062 = vadd.f32 0.0, %v1061
        %v1063 = vpop.f32.mrf.mxu0
        %v1064 = vadd.f32 0.0, %v1063
        %1065 = vdwg.mxu0
        %1066 = vmatprep.subr.mxu0 %v508
        %1067 = vmatpush1.msra.mxu0 %v507
        %1068 = vmatprep.subr.mxu0 %v492
        %1069 = vmatpush1.msra.mxu0 %v491
        %1070 = vmatprep.subr.mxu0 %v476
        %1071 = vmatpush1.msra.mxu0 %v475
        %1072 = vmatprep.subr.mxu0 %v460
        %1073 = vmatpush1.msra.mxu0 %v459
        %1074 = vmatprep.subr.mxu0 %v444
        %1075 = vmatpush1.msra.mxu0 %v443
        %1076 = vmatprep.subr.mxu0 %v428
        %1077 = vmatpush1.msra.mxu0 %v427
        %1078 = vmatprep.subr.mxu0 %v412
        %1079 = vmatpush1.msra.mxu0 %v411
        %1080 = vmatprep.subr.mxu0 %v396
        %1081 = vmatpush1.msra.mxu0 %v395
        %1082 = vmatprep.subr.mxu0 %v380
        %1083 = vmatpush1.msra.mxu0 %v379
        %1084 = vmatprep.subr.mxu0 %v364
        %1085 = vmatpush1.msra.mxu0 %v363
        %1086 = vmatprep.subr.mxu0 %v348
        %1087 = vmatpush1.msra.mxu0 %v347
        %1088 = vmatprep.subr.mxu0 %v332
        %1089 = vmatpush1.msra.mxu0 %v331
        %1090 = vmatprep.subr.mxu0 %v316
        %1091 = vmatpush1.msra.mxu0 %v315
        %1092 = vmatprep.subr.mxu0 %v300
        %1093 = vmatpush1.msra.mxu0 %v299
        %1094 = vmatprep.subr.mxu0 %v284
        %1095 = vmatpush1.msra.mxu0 %v283
        %1096 = vmatprep.subr.mxu0 %v268
        %1097 = vmatpush1.msra.mxu0 %v267
        %1098 = vmatprep.subr.mxu0 %v764
        %1099 = vmatpush2.msra.mxu0 %v763
        %1100 = vmatprep.subr.mxu0 %v748
        %1101 = vmatpush2.msra.mxu0 %v747
        %1102 = vmatprep.subr.mxu0 %v732
        %1103 = vmatpush2.msra.mxu0 %v731
        %1104 = vmatprep.subr.mxu0 %v716
        %1105 = vmatpush2.msra.mxu0 %v715
        %1106 = vmatprep.subr.mxu0 %v700
        %1107 = vmatpush2.msra.mxu0 %v699
        %1108 = vmatprep.subr.mxu0 %v684
        %1109 = vmatpush2.msra.mxu0 %v683
        %1110 = vmatprep.subr.mxu0 %v668
        %1111 = vmatpush2.msra.mxu0 %v667
        %1112 = vmatprep.subr.mxu0 %v652
        %1113 = vmatpush2.msra.mxu0 %v651
        %1114 = vmatprep.subr.mxu0 %v636
        %1115 = vmatpush2.msra.mxu0 %v635
        %1116 = vmatprep.subr.mxu0 %v620
        %1117 = vmatpush2.msra.mxu0 %v619
        %1118 = vmatprep.subr.mxu0 %v604
        %1119 = vmatpush2.msra.mxu0 %v603
        %1120 = vmatprep.subr.mxu0 %v588
        %1121 = vmatpush2.msra.mxu0 %v587
        %1122 = vmatprep.subr.mxu0 %v572
        %1123 = vmatpush2.msra.mxu0 %v571
        %1124 = vmatprep.subr.mxu0 %v556
        %1125 = vmatpush2.msra.mxu0 %v555
        %1126 = vmatprep.subr.mxu0 %v540
        %1127 = vmatpush2.msra.mxu0 %v539
        %1128 = vmatprep.subr.mxu0 %v524
        %1129 = vmatpush2.msra.mxu0 %v523
        %1130 = vmatprep.mubr.f32.mxu0 %v779
        %1131 = vmatmul.mubr.f32.gmra.mxu0 %v775
        %v1132 = vpop.f32.mrf.mxu0
        %v1133 = vadd.f32 0.0, %v1132
        %v1134 = vpop.f32.mrf.mxu0
        %v1135 = vadd.f32 0.0, %v1134
        %1136 = vdwg.mxu0
        %1137 = vmatprep.subr.mxu0 %v510
        %1138 = vmatpush1.msra.mxu0 %v509
        %1139 = vmatprep.subr.mxu0 %v494
        %1140 = vmatpush1.msra.mxu0 %v493
        %1141 = vmatprep.subr.mxu0 %v478
        %1142 = vmatpush1.msra.mxu0 %v477
        %1143 = vmatprep.subr.mxu0 %v462
        %1144 = vmatpush1.msra.mxu0 %v461
        %1145 = vmatprep.subr.mxu0 %v446
        %1146 = vmatpush1.msra.mxu0 %v445
        %1147 = vmatprep.subr.mxu0 %v430
        %1148 = vmatpush1.msra.mxu0 %v429
        %1149 = vmatprep.subr.mxu0 %v414
        %1150 = vmatpush1.msra.mxu0 %v413
        %1151 = vmatprep.subr.mxu0 %v398
        %1152 = vmatpush1.msra.mxu0 %v397
        %1153 = vmatprep.subr.mxu0 %v382
        %1154 = vmatpush1.msra.mxu0 %v381
        %1155 = vmatprep.subr.mxu0 %v366
        %1156 = vmatpush1.msra.mxu0 %v365
        %1157 = vmatprep.subr.mxu0 %v350
        %1158 = vmatpush1.msra.mxu0 %v349
        %1159 = vmatprep.subr.mxu0 %v334
        %1160 = vmatpush1.msra.mxu0 %v333
        %1161 = vmatprep.subr.mxu0 %v318
        %1162 = vmatpush1.msra.mxu0 %v317
        %1163 = vmatprep.subr.mxu0 %v302
        %1164 = vmatpush1.msra.mxu0 %v301
        %1165 = vmatprep.subr.mxu0 %v286
        %1166 = vmatpush1.msra.mxu0 %v285
        %1167 = vmatprep.subr.mxu0 %v270
        %1168 = vmatpush1.msra.mxu0 %v269
        %1169 = vmatprep.subr.mxu0 %v766
        %1170 = vmatpush2.msra.mxu0 %v765
        %1171 = vmatprep.subr.mxu0 %v750
        %1172 = vmatpush2.msra.mxu0 %v749
        %1173 = vmatprep.subr.mxu0 %v734
        %1174 = vmatpush2.msra.mxu0 %v733
        %1175 = vmatprep.subr.mxu0 %v718
        %1176 = vmatpush2.msra.mxu0 %v717
        %1177 = vmatprep.subr.mxu0 %v702
        %1178 = vmatpush2.msra.mxu0 %v701
        %1179 = vmatprep.subr.mxu0 %v686
        %1180 = vmatpush2.msra.mxu0 %v685
        %1181 = vmatprep.subr.mxu0 %v670
        %1182 = vmatpush2.msra.mxu0 %v669
        %1183 = vmatprep.subr.mxu0 %v654
        %1184 = vmatpush2.msra.mxu0 %v653
        %1185 = vmatprep.subr.mxu0 %v638
        %1186 = vmatpush2.msra.mxu0 %v637
        %1187 = vmatprep.subr.mxu0 %v622
        %1188 = vmatpush2.msra.mxu0 %v621
        %1189 = vmatprep.subr.mxu0 %v606
        %1190 = vmatpush2.msra.mxu0 %v605
        %1191 = vmatprep.subr.mxu0 %v590
        %1192 = vmatpush2.msra.mxu0 %v589
        %1193 = vmatprep.subr.mxu0 %v574
        %1194 = vmatpush2.msra.mxu0 %v573
        %1195 = vmatprep.subr.mxu0 %v558
        %1196 = vmatpush2.msra.mxu0 %v557
        %1197 = vmatprep.subr.mxu0 %v542
        %1198 = vmatpush2.msra.mxu0 %v541
        %1199 = vmatprep.subr.mxu0 %v526
        %1200 = vmatpush2.msra.mxu0 %v525
        %1201 = vmatprep.mubr.f32.mxu0 %v779
        %1202 = vmatmul.mubr.f32.gmra.mxu0 %v775
        %v1203 = vpop.f32.mrf.mxu0
        %v1204 = vadd.f32 0.0, %v1203
        %v1205 = vpop.f32.mrf.mxu0
        %v1206 = vadd.f32 0.0, %v1205
        %1207 = vdwg.mxu0
        %1208 = vmatprep.subr.mxu0 %v512
        %1209 = vmatpush1.msra.mxu0 %v511
        %1210 = vmatprep.subr.mxu0 %v496
        %1211 = vmatpush1.msra.mxu0 %v495
        %1212 = vmatprep.subr.mxu0 %v480
        %1213 = vmatpush1.msra.mxu0 %v479
        %1214 = vmatprep.subr.mxu0 %v464
        %1215 = vmatpush1.msra.mxu0 %v463
        %1216 = vmatprep.subr.mxu0 %v448
        %1217 = vmatpush1.msra.mxu0 %v447
        %1218 = vmatprep.subr.mxu0 %v432
        %1219 = vmatpush1.msra.mxu0 %v431
        %1220 = vmatprep.subr.mxu0 %v416
        %1221 = vmatpush1.msra.mxu0 %v415
        %1222 = vmatprep.subr.mxu0 %v400
        %1223 = vmatpush1.msra.mxu0 %v399
        %1224 = vmatprep.subr.mxu0 %v384
        %1225 = vmatpush1.msra.mxu0 %v383
        %1226 = vmatprep.subr.mxu0 %v368
        %1227 = vmatpush1.msra.mxu0 %v367
        %1228 = vmatprep.subr.mxu0 %v352
        %1229 = vmatpush1.msra.mxu0 %v351
        %1230 = vmatprep.subr.mxu0 %v336
        %1231 = vmatpush1.msra.mxu0 %v335
        %1232 = vmatprep.subr.mxu0 %v320
        %1233 = vmatpush1.msra.mxu0 %v319
        %1234 = vmatprep.subr.mxu0 %v304
        %1235 = vmatpush1.msra.mxu0 %v303
        %1236 = vmatprep.subr.mxu0 %v288
        %1237 = vmatpush1.msra.mxu0 %v287
        %1238 = vmatprep.subr.mxu0 %v272
        %1239 = vmatpush1.msra.mxu0 %v271
        %1240 = vmatprep.subr.mxu0 %v768
        %1241 = vmatpush2.msra.mxu0 %v767
        %1242 = vmatprep.subr.mxu0 %v752
        %1243 = vmatpush2.msra.mxu0 %v751
        %1244 = vmatprep.subr.mxu0 %v736
        %1245 = vmatpush2.msra.mxu0 %v735
        %1246 = vmatprep.subr.mxu0 %v720
        %1247 = vmatpush2.msra.mxu0 %v719
        %1248 = vmatprep.subr.mxu0 %v704
        %1249 = vmatpush2.msra.mxu0 %v703
        %1250 = vmatprep.subr.mxu0 %v688
        %1251 = vmatpush2.msra.mxu0 %v687
        %1252 = vmatprep.subr.mxu0 %v672
        %1253 = vmatpush2.msra.mxu0 %v671
        %1254 = vmatprep.subr.mxu0 %v656
        %1255 = vmatpush2.msra.mxu0 %v655
        %1256 = vmatprep.subr.mxu0 %v640
        %1257 = vmatpush2.msra.mxu0 %v639
        %1258 = vmatprep.subr.mxu0 %v624
        %1259 = vmatpush2.msra.mxu0 %v623
        %1260 = vmatprep.subr.mxu0 %v608
        %1261 = vmatpush2.msra.mxu0 %v607
        %1262 = vmatprep.subr.mxu0 %v592
        %1263 = vmatpush2.msra.mxu0 %v591
        %1264 = vmatprep.subr.mxu0 %v576
        %1265 = vmatpush2.msra.mxu0 %v575
        %1266 = vmatprep.subr.mxu0 %v560
        %1267 = vmatpush2.msra.mxu0 %v559
        %1268 = vmatprep.subr.mxu0 %v544
        %1269 = vmatpush2.msra.mxu0 %v543
        %1270 = vmatprep.subr.mxu0 %v528
        %1271 = vmatpush2.msra.mxu0 %v527
        %1272 = vmatprep.mubr.f32.mxu0 %v779
        %1273 = vmatmul.mubr.f32.gmra.mxu0 %v775
        %v1274 = vpop.f32.mrf.mxu0
        %v1275 = vadd.f32 0.0, %v1274
        %v1276 = vpop.f32.mrf.mxu0
        %v1277 = vadd.f32 0.0, %v1276
        %1278 = vdwg.mxu0
        %1279 = vmatprep.subr.mxu0 %v514
        %1280 = vmatpush1.msra.mxu0 %v513
        %1281 = vmatprep.subr.mxu0 %v498
        %1282 = vmatpush1.msra.mxu0 %v497
        %1283 = vmatprep.subr.mxu0 %v482
        %1284 = vmatpush1.msra.mxu0 %v481
        %1285 = vmatprep.subr.mxu0 %v466
        %1286 = vmatpush1.msra.mxu0 %v465
        %1287 = vmatprep.subr.mxu0 %v450
        %1288 = vmatpush1.msra.mxu0 %v449
        %1289 = vmatprep.subr.mxu0 %v434
        %1290 = vmatpush1.msra.mxu0 %v433
        %1291 = vmatprep.subr.mxu0 %v418
        %1292 = vmatpush1.msra.mxu0 %v417
        %1293 = vmatprep.subr.mxu0 %v402
        %1294 = vmatpush1.msra.mxu0 %v401
        %1295 = vmatprep.subr.mxu0 %v386
        %1296 = vmatpush1.msra.mxu0 %v385
        %1297 = vmatprep.subr.mxu0 %v370
        %1298 = vmatpush1.msra.mxu0 %v369
        %1299 = vmatprep.subr.mxu0 %v354
        %1300 = vmatpush1.msra.mxu0 %v353
        %1301 = vmatprep.subr.mxu0 %v338
        %1302 = vmatpush1.msra.mxu0 %v337
        %1303 = vmatprep.subr.mxu0 %v322
        %1304 = vmatpush1.msra.mxu0 %v321
        %1305 = vmatprep.subr.mxu0 %v306
        %1306 = vmatpush1.msra.mxu0 %v305
        %1307 = vmatprep.subr.mxu0 %v290
        %1308 = vmatpush1.msra.mxu0 %v289
        %1309 = vmatprep.subr.mxu0 %v274
        %1310 = vmatpush1.msra.mxu0 %v273
        %1311 = vmatprep.subr.mxu0 %v770
        %1312 = vmatpush2.msra.mxu0 %v769
        %1313 = vmatprep.subr.mxu0 %v754
        %1314 = vmatpush2.msra.mxu0 %v753
        %1315 = vmatprep.subr.mxu0 %v738
        %1316 = vmatpush2.msra.mxu0 %v737
        %1317 = vmatprep.subr.mxu0 %v722
        %1318 = vmatpush2.msra.mxu0 %v721
        %1319 = vmatprep.subr.mxu0 %v706
        %1320 = vmatpush2.msra.mxu0 %v705
        %1321 = vmatprep.subr.mxu0 %v690
        %1322 = vmatpush2.msra.mxu0 %v689
        %1323 = vmatprep.subr.mxu0 %v674
        %1324 = vmatpush2.msra.mxu0 %v673
        %1325 = vmatprep.subr.mxu0 %v658
        %1326 = vmatpush2.msra.mxu0 %v657
        %1327 = vmatprep.subr.mxu0 %v642
        %1328 = vmatpush2.msra.mxu0 %v641
        %1329 = vmatprep.subr.mxu0 %v626
        %1330 = vmatpush2.msra.mxu0 %v625
        %1331 = vmatprep.subr.mxu0 %v610
        %1332 = vmatpush2.msra.mxu0 %v609
        %1333 = vmatprep.subr.mxu0 %v594
        %1334 = vmatpush2.msra.mxu0 %v593
        %1335 = vmatprep.subr.mxu0 %v578
        %1336 = vmatpush2.msra.mxu0 %v577
        %1337 = vmatprep.subr.mxu0 %v562
        %1338 = vmatpush2.msra.mxu0 %v561
        %1339 = vmatprep.subr.mxu0 %v546
        %1340 = vmatpush2.msra.mxu0 %v545
        %1341 = vmatprep.subr.mxu0 %v530
        %1342 = vmatpush2.msra.mxu0 %v529
        %1343 = vmatprep.mubr.f32.mxu0 %v779
        %1344 = vmatmul.mubr.f32.gmra.mxu0 %v775
        %v1345 = vpop.f32.mrf.mxu0
        %v1346 = vadd.f32 0.0, %v1345
        %v1347 = vpop.f32.mrf.mxu0
        %v1348 = vadd.f32 0.0, %v1347
        %1349 = vdwg.mxu0
        %v1350 = vld [vmem:[#allocation5] sm:$0xff]
        %v1351 = vld [vmem:[#allocation5 + $0x8] sm:$0xff]
        %v1352 = vld [vmem:[#allocation5 + $0x10] sm:$0xff]
        %v1353 = vld [vmem:[#allocation5 + $0x18] sm:$0xff]
        %v1354 = vld [vmem:[#allocation5 + $0x20] sm:$0xff]
        %v1355 = vld [vmem:[#allocation5 + $0x28] sm:$0xff]
        %v1356 = vld [vmem:[#allocation5 + $0x30] sm:$0xff]
        %v1357 = vld [vmem:[#allocation5 + $0x38] sm:$0xff]
        %v1358 = vld [vmem:[#allocation5 + $0x40] sm:$0xff]
        %v1359 = vld [vmem:[#allocation5 + $0x48] sm:$0xff]
        %v1360 = vld [vmem:[#allocation5 + $0x50] sm:$0xff]
        %v1361 = vld [vmem:[#allocation5 + $0x58] sm:$0xff]
        %v1362 = vld [vmem:[#allocation5 + $0x60] sm:$0xff]
        %v1363 = vld [vmem:[#allocation5 + $0x68] sm:$0xff]
        %v1364 = vld [vmem:[#allocation5 + $0x70] sm:$0xff]
        %v1365 = vld [vmem:[#allocation5 + $0x78] sm:$0xff]
        %v1366 = vld [vmem:[#allocation5 + $0x80] sm:$0xff]
        %v1367 = vld [vmem:[#allocation5 + $0x88] sm:$0xff]
        %v1368 = vld [vmem:[#allocation5 + $0x90] sm:$0xff]
        %v1369 = vld [vmem:[#allocation5 + $0x98] sm:$0xff]
        %v1370 = vld [vmem:[#allocation5 + $0xa0] sm:$0xff]
        %v1371 = vld [vmem:[#allocation5 + $0xa8] sm:$0xff]
        %v1372 = vld [vmem:[#allocation5 + $0xb0] sm:$0xff]
        %v1373 = vld [vmem:[#allocation5 + $0xb8] sm:$0xff]
        %v1374 = vld [vmem:[#allocation5 + $0xc0] sm:$0xff]
        %v1375 = vld [vmem:[#allocation5 + $0xc8] sm:$0xff]
        %v1376 = vld [vmem:[#allocation5 + $0xd0] sm:$0xff]
        %v1377 = vld [vmem:[#allocation5 + $0xd8] sm:$0xff]
        %v1378 = vld [vmem:[#allocation5 + $0xe0] sm:$0xff]
        %v1379 = vld [vmem:[#allocation5 + $0xe8] sm:$0xff]
        %v1380 = vld [vmem:[#allocation5 + $0xf0] sm:$0xff]
        %v1381 = vld [vmem:[#allocation5 + $0xf8] sm:$0xff]
        %v1382 = vld [vmem:[#allocation5 + $0x100] sm:$0xff]
        %v1383 = vld [vmem:[#allocation5 + $0x108] sm:$0xff]
        %v1384 = vld [vmem:[#allocation5 + $0x110] sm:$0xff]
        %v1385 = vld [vmem:[#allocation5 + $0x118] sm:$0xff]
        %v1386 = vld [vmem:[#allocation5 + $0x120] sm:$0xff]
        %v1387 = vld [vmem:[#allocation5 + $0x128] sm:$0xff]
        %v1388 = vld [vmem:[#allocation5 + $0x130] sm:$0xff]
        %v1389 = vld [vmem:[#allocation5 + $0x138] sm:$0xff]
        %v1390 = vld [vmem:[#allocation5 + $0x140] sm:$0xff]
        %v1391 = vld [vmem:[#allocation5 + $0x148] sm:$0xff]
        %v1392 = vld [vmem:[#allocation5 + $0x150] sm:$0xff]
        %v1393 = vld [vmem:[#allocation5 + $0x158] sm:$0xff]
        %v1394 = vld [vmem:[#allocation5 + $0x160] sm:$0xff]
        %v1395 = vld [vmem:[#allocation5 + $0x168] sm:$0xff]
        %v1396 = vld [vmem:[#allocation5 + $0x170] sm:$0xff]
        %v1397 = vld [vmem:[#allocation5 + $0x178] sm:$0xff]
        %v1398 = vld [vmem:[#allocation5 + $0x180] sm:$0xff]
        %v1399 = vld [vmem:[#allocation5 + $0x188] sm:$0xff]
        %v1400 = vld [vmem:[#allocation5 + $0x190] sm:$0xff]
        %v1401 = vld [vmem:[#allocation5 + $0x198] sm:$0xff]
        %v1402 = vld [vmem:[#allocation5 + $0x1a0] sm:$0xff]
        %v1403 = vld [vmem:[#allocation5 + $0x1a8] sm:$0xff]
        %v1404 = vld [vmem:[#allocation5 + $0x1b0] sm:$0xff]
        %v1405 = vld [vmem:[#allocation5 + $0x1b8] sm:$0xff]
        %v1406 = vld [vmem:[#allocation5 + $0x1c0] sm:$0xff]
        %v1407 = vld [vmem:[#allocation5 + $0x1c8] sm:$0xff]
        %v1408 = vld [vmem:[#allocation5 + $0x1d0] sm:$0xff]
        %v1409 = vld [vmem:[#allocation5 + $0x1d8] sm:$0xff]
        %v1410 = vld [vmem:[#allocation5 + $0x1e0] sm:$0xff]
        %v1411 = vld [vmem:[#allocation5 + $0x1e8] sm:$0xff]
        %v1412 = vld [vmem:[#allocation5 + $0x1f0] sm:$0xff]
        %v1413 = vld [vmem:[#allocation5 + $0x1f8] sm:$0xff]
        %v1414 = vld [vmem:[#allocation5 + $0x200] sm:$0xff]
        %v1415 = vld [vmem:[#allocation5 + $0x208] sm:$0xff]
        %v1416 = vld [vmem:[#allocation5 + $0x210] sm:$0xff]
        %v1417 = vld [vmem:[#allocation5 + $0x218] sm:$0xff]
        %v1418 = vld [vmem:[#allocation5 + $0x220] sm:$0xff]
        %v1419 = vld [vmem:[#allocation5 + $0x228] sm:$0xff]
        %v1420 = vld [vmem:[#allocation5 + $0x230] sm:$0xff]
        %v1421 = vld [vmem:[#allocation5 + $0x238] sm:$0xff]
        %v1422 = vld [vmem:[#allocation5 + $0x240] sm:$0xff]
        %v1423 = vld [vmem:[#allocation5 + $0x248] sm:$0xff]
        %v1424 = vld [vmem:[#allocation5 + $0x250] sm:$0xff]
        %v1425 = vld [vmem:[#allocation5 + $0x258] sm:$0xff]
        %v1426 = vld [vmem:[#allocation5 + $0x260] sm:$0xff]
        %v1427 = vld [vmem:[#allocation5 + $0x268] sm:$0xff]
        %v1428 = vld [vmem:[#allocation5 + $0x270] sm:$0xff]
        %v1429 = vld [vmem:[#allocation5 + $0x278] sm:$0xff]
        %v1430 = vld [vmem:[#allocation5 + $0x280] sm:$0xff]
        %v1431 = vld [vmem:[#allocation5 + $0x288] sm:$0xff]
        %v1432 = vld [vmem:[#allocation5 + $0x290] sm:$0xff]
        %v1433 = vld [vmem:[#allocation5 + $0x298] sm:$0xff]
        %v1434 = vld [vmem:[#allocation5 + $0x2a0] sm:$0xff]
        %v1435 = vld [vmem:[#allocation5 + $0x2a8] sm:$0xff]
        %v1436 = vld [vmem:[#allocation5 + $0x2b0] sm:$0xff]
        %v1437 = vld [vmem:[#allocation5 + $0x2b8] sm:$0xff]
        %v1438 = vld [vmem:[#allocation5 + $0x2c0] sm:$0xff]
        %v1439 = vld [vmem:[#allocation5 + $0x2c8] sm:$0xff]
        %v1440 = vld [vmem:[#allocation5 + $0x2d0] sm:$0xff]
        %v1441 = vld [vmem:[#allocation5 + $0x2d8] sm:$0xff]
        %v1442 = vld [vmem:[#allocation5 + $0x2e0] sm:$0xff]
        %v1443 = vld [vmem:[#allocation5 + $0x2e8] sm:$0xff]
        %v1444 = vld [vmem:[#allocation5 + $0x2f0] sm:$0xff]
        %v1445 = vld [vmem:[#allocation5 + $0x2f8] sm:$0xff]
        %v1446 = vld [vmem:[#allocation5 + $0x300] sm:$0xff]
        %v1447 = vld [vmem:[#allocation5 + $0x308] sm:$0xff]
        %v1448 = vld [vmem:[#allocation5 + $0x310] sm:$0xff]
        %v1449 = vld [vmem:[#allocation5 + $0x318] sm:$0xff]
        %v1450 = vld [vmem:[#allocation5 + $0x320] sm:$0xff]
        %v1451 = vld [vmem:[#allocation5 + $0x328] sm:$0xff]
        %v1452 = vld [vmem:[#allocation5 + $0x330] sm:$0xff]
        %v1453 = vld [vmem:[#allocation5 + $0x338] sm:$0xff]
        %v1454 = vld [vmem:[#allocation5 + $0x340] sm:$0xff]
        %v1455 = vld [vmem:[#allocation5 + $0x348] sm:$0xff]
        %v1456 = vld [vmem:[#allocation5 + $0x350] sm:$0xff]
        %v1457 = vld [vmem:[#allocation5 + $0x358] sm:$0xff]
        %v1458 = vld [vmem:[#allocation5 + $0x360] sm:$0xff]
        %v1459 = vld [vmem:[#allocation5 + $0x368] sm:$0xff]
        %v1460 = vld [vmem:[#allocation5 + $0x370] sm:$0xff]
        %v1461 = vld [vmem:[#allocation5 + $0x378] sm:$0xff]
        %v1462 = vld [vmem:[#allocation5 + $0x380] sm:$0xff]
        %v1463 = vld [vmem:[#allocation5 + $0x388] sm:$0xff]
        %v1464 = vld [vmem:[#allocation5 + $0x390] sm:$0xff]
        %v1465 = vld [vmem:[#allocation5 + $0x398] sm:$0xff]
        %v1466 = vld [vmem:[#allocation5 + $0x3a0] sm:$0xff]
        %v1467 = vld [vmem:[#allocation5 + $0x3a8] sm:$0xff]
        %v1468 = vld [vmem:[#allocation5 + $0x3b0] sm:$0xff]
        %v1469 = vld [vmem:[#allocation5 + $0x3b8] sm:$0xff]
        %v1470 = vld [vmem:[#allocation5 + $0x3c0] sm:$0xff]
        %v1471 = vld [vmem:[#allocation5 + $0x3c8] sm:$0xff]
        %v1472 = vld [vmem:[#allocation5 + $0x3d0] sm:$0xff]
        %v1473 = vld [vmem:[#allocation5 + $0x3d8] sm:$0xff]
        %v1474 = vld [vmem:[#allocation5 + $0x3e0] sm:$0xff]
        %v1475 = vld [vmem:[#allocation5 + $0x3e8] sm:$0xff]
        %v1476 = vld [vmem:[#allocation5 + $0x3f0] sm:$0xff]
        %v1477 = vld [vmem:[#allocation5 + $0x3f8] sm:$0xff]
        %v1478 = vld [vmem:[#allocation5 + $0x400] sm:$0xff]
        %v1479 = vld [vmem:[#allocation5 + $0x408] sm:$0xff]
        %v1480 = vld [vmem:[#allocation5 + $0x410] sm:$0xff]
        %v1481 = vld [vmem:[#allocation5 + $0x418] sm:$0xff]
        %v1482 = vld [vmem:[#allocation5 + $0x420] sm:$0xff]
        %v1483 = vld [vmem:[#allocation5 + $0x428] sm:$0xff]
        %v1484 = vld [vmem:[#allocation5 + $0x430] sm:$0xff]
        %v1485 = vld [vmem:[#allocation5 + $0x438] sm:$0xff]
        %v1486 = vld [vmem:[#allocation5 + $0x440] sm:$0xff]
        %v1487 = vld [vmem:[#allocation5 + $0x448] sm:$0xff]
        %v1488 = vld [vmem:[#allocation5 + $0x450] sm:$0xff]
        %v1489 = vld [vmem:[#allocation5 + $0x458] sm:$0xff]
        %v1490 = vld [vmem:[#allocation5 + $0x460] sm:$0xff]
        %v1491 = vld [vmem:[#allocation5 + $0x468] sm:$0xff]
        %v1492 = vld [vmem:[#allocation5 + $0x470] sm:$0xff]
        %v1493 = vld [vmem:[#allocation5 + $0x478] sm:$0xff]
        %v1494 = vld [vmem:[#allocation5 + $0x480] sm:$0xff]
        %v1495 = vld [vmem:[#allocation5 + $0x488] sm:$0xff]
        %v1496 = vld [vmem:[#allocation5 + $0x490] sm:$0xff]
        %v1497 = vld [vmem:[#allocation5 + $0x498] sm:$0xff]
        %v1498 = vld [vmem:[#allocation5 + $0x4a0] sm:$0xff]
        %v1499 = vld [vmem:[#allocation5 + $0x4a8] sm:$0xff]
        %v1500 = vld [vmem:[#allocation5 + $0x4b0] sm:$0xff]
        %v1501 = vld [vmem:[#allocation5 + $0x4b8] sm:$0xff]
        %v1502 = vld [vmem:[#allocation5 + $0x4c0] sm:$0xff]
        %v1503 = vld [vmem:[#allocation5 + $0x4c8] sm:$0xff]
        %v1504 = vld [vmem:[#allocation5 + $0x4d0] sm:$0xff]
        %v1505 = vld [vmem:[#allocation5 + $0x4d8] sm:$0xff]
        %v1506 = vld [vmem:[#allocation5 + $0x4e0] sm:$0xff]
        %v1507 = vld [vmem:[#allocation5 + $0x4e8] sm:$0xff]
        %v1508 = vld [vmem:[#allocation5 + $0x4f0] sm:$0xff]
        %v1509 = vld [vmem:[#allocation5 + $0x4f8] sm:$0xff]
        %v1510 = vld [vmem:[#allocation5 + $0x500] sm:$0xff]
        %v1511 = vld [vmem:[#allocation5 + $0x508] sm:$0xff]
        %v1512 = vld [vmem:[#allocation5 + $0x510] sm:$0xff]
        %v1513 = vld [vmem:[#allocation5 + $0x518] sm:$0xff]
        %v1514 = vld [vmem:[#allocation5 + $0x520] sm:$0xff]
        %v1515 = vld [vmem:[#allocation5 + $0x528] sm:$0xff]
        %v1516 = vld [vmem:[#allocation5 + $0x530] sm:$0xff]
        %v1517 = vld [vmem:[#allocation5 + $0x538] sm:$0xff]
        %v1518 = vld [vmem:[#allocation5 + $0x540] sm:$0xff]
        %v1519 = vld [vmem:[#allocation5 + $0x548] sm:$0xff]
        %v1520 = vld [vmem:[#allocation5 + $0x550] sm:$0xff]
        %v1521 = vld [vmem:[#allocation5 + $0x558] sm:$0xff]
        %v1522 = vld [vmem:[#allocation5 + $0x560] sm:$0xff]
        %v1523 = vld [vmem:[#allocation5 + $0x568] sm:$0xff]
        %v1524 = vld [vmem:[#allocation5 + $0x570] sm:$0xff]
        %v1525 = vld [vmem:[#allocation5 + $0x578] sm:$0xff]
        %v1526 = vld [vmem:[#allocation5 + $0x580] sm:$0xff]
        %v1527 = vld [vmem:[#allocation5 + $0x588] sm:$0xff]
        %v1528 = vld [vmem:[#allocation5 + $0x590] sm:$0xff]
        %v1529 = vld [vmem:[#allocation5 + $0x598] sm:$0xff]
        %v1530 = vld [vmem:[#allocation5 + $0x5a0] sm:$0xff]
        %v1531 = vld [vmem:[#allocation5 + $0x5a8] sm:$0xff]
        %v1532 = vld [vmem:[#allocation5 + $0x5b0] sm:$0xff]
        %v1533 = vld [vmem:[#allocation5 + $0x5b8] sm:$0xff]
        %v1534 = vld [vmem:[#allocation5 + $0x5c0] sm:$0xff]
        %v1535 = vld [vmem:[#allocation5 + $0x5c8] sm:$0xff]
        %v1536 = vld [vmem:[#allocation5 + $0x5d0] sm:$0xff]
        %v1537 = vld [vmem:[#allocation5 + $0x5d8] sm:$0xff]
        %v1538 = vld [vmem:[#allocation5 + $0x5e0] sm:$0xff]
        %v1539 = vld [vmem:[#allocation5 + $0x5e8] sm:$0xff]
        %v1540 = vld [vmem:[#allocation5 + $0x5f0] sm:$0xff]
        %v1541 = vld [vmem:[#allocation5 + $0x5f8] sm:$0xff]
        %v1542 = vld [vmem:[#allocation5 + $0x600] sm:$0xff]
        %v1543 = vld [vmem:[#allocation5 + $0x608] sm:$0xff]
        %v1544 = vld [vmem:[#allocation5 + $0x610] sm:$0xff]
        %v1545 = vld [vmem:[#allocation5 + $0x618] sm:$0xff]
        %v1546 = vld [vmem:[#allocation5 + $0x620] sm:$0xff]
        %v1547 = vld [vmem:[#allocation5 + $0x628] sm:$0xff]
        %v1548 = vld [vmem:[#allocation5 + $0x630] sm:$0xff]
        %v1549 = vld [vmem:[#allocation5 + $0x638] sm:$0xff]
        %v1550 = vld [vmem:[#allocation5 + $0x640] sm:$0xff]
        %v1551 = vld [vmem:[#allocation5 + $0x648] sm:$0xff]
        %v1552 = vld [vmem:[#allocation5 + $0x650] sm:$0xff]
        %v1553 = vld [vmem:[#allocation5 + $0x658] sm:$0xff]
        %v1554 = vld [vmem:[#allocation5 + $0x660] sm:$0xff]
        %v1555 = vld [vmem:[#allocation5 + $0x668] sm:$0xff]
        %v1556 = vld [vmem:[#allocation5 + $0x670] sm:$0xff]
        %v1557 = vld [vmem:[#allocation5 + $0x678] sm:$0xff]
        %v1558 = vld [vmem:[#allocation5 + $0x680] sm:$0xff]
        %v1559 = vld [vmem:[#allocation5 + $0x688] sm:$0xff]
        %v1560 = vld [vmem:[#allocation5 + $0x690] sm:$0xff]
        %v1561 = vld [vmem:[#allocation5 + $0x698] sm:$0xff]
        %v1562 = vld [vmem:[#allocation5 + $0x6a0] sm:$0xff]
        %v1563 = vld [vmem:[#allocation5 + $0x6a8] sm:$0xff]
        %v1564 = vld [vmem:[#allocation5 + $0x6b0] sm:$0xff]
        %v1565 = vld [vmem:[#allocation5 + $0x6b8] sm:$0xff]
        %v1566 = vld [vmem:[#allocation5 + $0x6c0] sm:$0xff]
        %v1567 = vld [vmem:[#allocation5 + $0x6c8] sm:$0xff]
        %v1568 = vld [vmem:[#allocation5 + $0x6d0] sm:$0xff]
        %v1569 = vld [vmem:[#allocation5 + $0x6d8] sm:$0xff]
        %v1570 = vld [vmem:[#allocation5 + $0x6e0] sm:$0xff]
        %v1571 = vld [vmem:[#allocation5 + $0x6e8] sm:$0xff]
        %v1572 = vld [vmem:[#allocation5 + $0x6f0] sm:$0xff]
        %v1573 = vld [vmem:[#allocation5 + $0x6f8] sm:$0xff]
        %v1574 = vld [vmem:[#allocation5 + $0x700] sm:$0xff]
        %v1575 = vld [vmem:[#allocation5 + $0x708] sm:$0xff]
        %v1576 = vld [vmem:[#allocation5 + $0x710] sm:$0xff]
        %v1577 = vld [vmem:[#allocation5 + $0x718] sm:$0xff]
        %v1578 = vld [vmem:[#allocation5 + $0x720] sm:$0xff]
        %v1579 = vld [vmem:[#allocation5 + $0x728] sm:$0xff]
        %v1580 = vld [vmem:[#allocation5 + $0x730] sm:$0xff]
        %v1581 = vld [vmem:[#allocation5 + $0x738] sm:$0xff]
        %v1582 = vld [vmem:[#allocation5 + $0x740] sm:$0xff]
        %v1583 = vld [vmem:[#allocation5 + $0x748] sm:$0xff]
        %v1584 = vld [vmem:[#allocation5 + $0x750] sm:$0xff]
        %v1585 = vld [vmem:[#allocation5 + $0x758] sm:$0xff]
        %v1586 = vld [vmem:[#allocation5 + $0x760] sm:$0xff]
        %v1587 = vld [vmem:[#allocation5 + $0x768] sm:$0xff]
        %v1588 = vld [vmem:[#allocation5 + $0x770] sm:$0xff]
        %v1589 = vld [vmem:[#allocation5 + $0x778] sm:$0xff]
        %v1590 = vld [vmem:[#allocation5 + $0x780] sm:$0xff]
        %v1591 = vld [vmem:[#allocation5 + $0x788] sm:$0xff]
        %v1592 = vld [vmem:[#allocation5 + $0x790] sm:$0xff]
        %v1593 = vld [vmem:[#allocation5 + $0x798] sm:$0xff]
        %v1594 = vld [vmem:[#allocation5 + $0x7a0] sm:$0xff]
        %v1595 = vld [vmem:[#allocation5 + $0x7a8] sm:$0xff]
        %v1596 = vld [vmem:[#allocation5 + $0x7b0] sm:$0xff]
        %v1597 = vld [vmem:[#allocation5 + $0x7b8] sm:$0xff]
        %v1598 = vld [vmem:[#allocation5 + $0x7c0] sm:$0xff]
        %v1599 = vld [vmem:[#allocation5 + $0x7c8] sm:$0xff]
        %v1600 = vld [vmem:[#allocation5 + $0x7d0] sm:$0xff]
        %v1601 = vld [vmem:[#allocation5 + $0x7d8] sm:$0xff]
        %v1602 = vld [vmem:[#allocation5 + $0x7e0] sm:$0xff]
        %v1603 = vld [vmem:[#allocation5 + $0x7e8] sm:$0xff]
        %v1604 = vld [vmem:[#allocation5 + $0x7f0] sm:$0xff]
        %v1605 = vld [vmem:[#allocation5 + $0x7f8] sm:$0xff]
        %v1606 = vld [vmem:[#allocation7] sm:$0xff]
        %v1607 = vld [vmem:[#allocation7 + $0x8] sm:$0xff]
        %v1608 = vld [vmem:[#allocation7 + $0x10] sm:$0xff]
        %v1609 = vld [vmem:[#allocation7 + $0x18] sm:$0xff]
        %v1610 = vld [vmem:[#allocation7 + $0x20] sm:$0xff]
        %v1611 = vld [vmem:[#allocation7 + $0x28] sm:$0xff]
        %v1612 = vld [vmem:[#allocation7 + $0x30] sm:$0xff]
        %v1613 = vld [vmem:[#allocation7 + $0x38] sm:$0xff]
        %v1614 = vld [vmem:[#allocation7 + $0x40] sm:$0xff]
        %v1615 = vld [vmem:[#allocation7 + $0x48] sm:$0xff]
        %v1616 = vld [vmem:[#allocation7 + $0x50] sm:$0xff]
        %v1617 = vld [vmem:[#allocation7 + $0x58] sm:$0xff]
        %v1618 = vld [vmem:[#allocation7 + $0x60] sm:$0xff]
        %v1619 = vld [vmem:[#allocation7 + $0x68] sm:$0xff]
        %v1620 = vld [vmem:[#allocation7 + $0x70] sm:$0xff]
        %v1621 = vld [vmem:[#allocation7 + $0x78] sm:$0xff]
        %v1622 = vld [vmem:[#allocation7 + $0x80] sm:$0xff]
        %v1623 = vld [vmem:[#allocation7 + $0x88] sm:$0xff]
        %v1624 = vld [vmem:[#allocation7 + $0x90] sm:$0xff]
        %v1625 = vld [vmem:[#allocation7 + $0x98] sm:$0xff]
        %v1626 = vld [vmem:[#allocation7 + $0xa0] sm:$0xff]
        %v1627 = vld [vmem:[#allocation7 + $0xa8] sm:$0xff]
        %v1628 = vld [vmem:[#allocation7 + $0xb0] sm:$0xff]
        %v1629 = vld [vmem:[#allocation7 + $0xb8] sm:$0xff]
        %v1630 = vld [vmem:[#allocation7 + $0xc0] sm:$0xff]
        %v1631 = vld [vmem:[#allocation7 + $0xc8] sm:$0xff]
        %v1632 = vld [vmem:[#allocation7 + $0xd0] sm:$0xff]
        %v1633 = vld [vmem:[#allocation7 + $0xd8] sm:$0xff]
        %v1634 = vld [vmem:[#allocation7 + $0xe0] sm:$0xff]
        %v1635 = vld [vmem:[#allocation7 + $0xe8] sm:$0xff]
        %v1636 = vld [vmem:[#allocation7 + $0xf0] sm:$0xff]
        %v1637 = vld [vmem:[#allocation7 + $0xf8] sm:$0xff]
        %v1638 = vld [vmem:[#allocation7 + $0x100] sm:$0xff]
        %v1639 = vld [vmem:[#allocation7 + $0x108] sm:$0xff]
        %v1640 = vld [vmem:[#allocation7 + $0x110] sm:$0xff]
        %v1641 = vld [vmem:[#allocation7 + $0x118] sm:$0xff]
        %v1642 = vld [vmem:[#allocation7 + $0x120] sm:$0xff]
        %v1643 = vld [vmem:[#allocation7 + $0x128] sm:$0xff]
        %v1644 = vld [vmem:[#allocation7 + $0x130] sm:$0xff]
        %v1645 = vld [vmem:[#allocation7 + $0x138] sm:$0xff]
        %v1646 = vld [vmem:[#allocation7 + $0x140] sm:$0xff]
        %v1647 = vld [vmem:[#allocation7 + $0x148] sm:$0xff]
        %v1648 = vld [vmem:[#allocation7 + $0x150] sm:$0xff]
        %v1649 = vld [vmem:[#allocation7 + $0x158] sm:$0xff]
        %v1650 = vld [vmem:[#allocation7 + $0x160] sm:$0xff]
        %v1651 = vld [vmem:[#allocation7 + $0x168] sm:$0xff]
        %v1652 = vld [vmem:[#allocation7 + $0x170] sm:$0xff]
        %v1653 = vld [vmem:[#allocation7 + $0x178] sm:$0xff]
        %v1654 = vld [vmem:[#allocation7 + $0x180] sm:$0xff]
        %v1655 = vld [vmem:[#allocation7 + $0x188] sm:$0xff]
        %v1656 = vld [vmem:[#allocation7 + $0x190] sm:$0xff]
        %v1657 = vld [vmem:[#allocation7 + $0x198] sm:$0xff]
        %v1658 = vld [vmem:[#allocation7 + $0x1a0] sm:$0xff]
        %v1659 = vld [vmem:[#allocation7 + $0x1a8] sm:$0xff]
        %v1660 = vld [vmem:[#allocation7 + $0x1b0] sm:$0xff]
        %v1661 = vld [vmem:[#allocation7 + $0x1b8] sm:$0xff]
        %v1662 = vld [vmem:[#allocation7 + $0x1c0] sm:$0xff]
        %v1663 = vld [vmem:[#allocation7 + $0x1c8] sm:$0xff]
        %v1664 = vld [vmem:[#allocation7 + $0x1d0] sm:$0xff]
        %v1665 = vld [vmem:[#allocation7 + $0x1d8] sm:$0xff]
        %v1666 = vld [vmem:[#allocation7 + $0x1e0] sm:$0xff]
        %v1667 = vld [vmem:[#allocation7 + $0x1e8] sm:$0xff]
        %v1668 = vld [vmem:[#allocation7 + $0x1f0] sm:$0xff]
        %v1669 = vld [vmem:[#allocation7 + $0x1f8] sm:$0xff]
        %v1670 = vld [vmem:[#allocation7 + $0x200] sm:$0xff]
        %v1671 = vld [vmem:[#allocation7 + $0x208] sm:$0xff]
        %v1672 = vld [vmem:[#allocation7 + $0x210] sm:$0xff]
        %v1673 = vld [vmem:[#allocation7 + $0x218] sm:$0xff]
        %v1674 = vld [vmem:[#allocation7 + $0x220] sm:$0xff]
        %v1675 = vld [vmem:[#allocation7 + $0x228] sm:$0xff]
        %v1676 = vld [vmem:[#allocation7 + $0x230] sm:$0xff]
        %v1677 = vld [vmem:[#allocation7 + $0x238] sm:$0xff]
        %v1678 = vld [vmem:[#allocation7 + $0x240] sm:$0xff]
        %v1679 = vld [vmem:[#allocation7 + $0x248] sm:$0xff]
        %v1680 = vld [vmem:[#allocation7 + $0x250] sm:$0xff]
        %v1681 = vld [vmem:[#allocation7 + $0x258] sm:$0xff]
        %v1682 = vld [vmem:[#allocation7 + $0x260] sm:$0xff]
        %v1683 = vld [vmem:[#allocation7 + $0x268] sm:$0xff]
        %v1684 = vld [vmem:[#allocation7 + $0x270] sm:$0xff]
        %v1685 = vld [vmem:[#allocation7 + $0x278] sm:$0xff]
        %v1686 = vld [vmem:[#allocation7 + $0x280] sm:$0xff]
        %v1687 = vld [vmem:[#allocation7 + $0x288] sm:$0xff]
        %v1688 = vld [vmem:[#allocation7 + $0x290] sm:$0xff]
        %v1689 = vld [vmem:[#allocation7 + $0x298] sm:$0xff]
        %v1690 = vld [vmem:[#allocation7 + $0x2a0] sm:$0xff]
        %v1691 = vld [vmem:[#allocation7 + $0x2a8] sm:$0xff]
        %v1692 = vld [vmem:[#allocation7 + $0x2b0] sm:$0xff]
        %v1693 = vld [vmem:[#allocation7 + $0x2b8] sm:$0xff]
        %v1694 = vld [vmem:[#allocation7 + $0x2c0] sm:$0xff]
        %v1695 = vld [vmem:[#allocation7 + $0x2c8] sm:$0xff]
        %v1696 = vld [vmem:[#allocation7 + $0x2d0] sm:$0xff]
        %v1697 = vld [vmem:[#allocation7 + $0x2d8] sm:$0xff]
        %v1698 = vld [vmem:[#allocation7 + $0x2e0] sm:$0xff]
        %v1699 = vld [vmem:[#allocation7 + $0x2e8] sm:$0xff]
        %v1700 = vld [vmem:[#allocation7 + $0x2f0] sm:$0xff]
        %v1701 = vld [vmem:[#allocation7 + $0x2f8] sm:$0xff]
        %v1702 = vld [vmem:[#allocation7 + $0x300] sm:$0xff]
        %v1703 = vld [vmem:[#allocation7 + $0x308] sm:$0xff]
        %v1704 = vld [vmem:[#allocation7 + $0x310] sm:$0xff]
        %v1705 = vld [vmem:[#allocation7 + $0x318] sm:$0xff]
        %v1706 = vld [vmem:[#allocation7 + $0x320] sm:$0xff]
        %v1707 = vld [vmem:[#allocation7 + $0x328] sm:$0xff]
        %v1708 = vld [vmem:[#allocation7 + $0x330] sm:$0xff]
        %v1709 = vld [vmem:[#allocation7 + $0x338] sm:$0xff]
        %v1710 = vld [vmem:[#allocation7 + $0x340] sm:$0xff]
        %v1711 = vld [vmem:[#allocation7 + $0x348] sm:$0xff]
        %v1712 = vld [vmem:[#allocation7 + $0x350] sm:$0xff]
        %v1713 = vld [vmem:[#allocation7 + $0x358] sm:$0xff]
        %v1714 = vld [vmem:[#allocation7 + $0x360] sm:$0xff]
        %v1715 = vld [vmem:[#allocation7 + $0x368] sm:$0xff]
        %v1716 = vld [vmem:[#allocation7 + $0x370] sm:$0xff]
        %v1717 = vld [vmem:[#allocation7 + $0x378] sm:$0xff]
        %v1718 = vld [vmem:[#allocation7 + $0x380] sm:$0xff]
        %v1719 = vld [vmem:[#allocation7 + $0x388] sm:$0xff]
        %v1720 = vld [vmem:[#allocation7 + $0x390] sm:$0xff]
        %v1721 = vld [vmem:[#allocation7 + $0x398] sm:$0xff]
        %v1722 = vld [vmem:[#allocation7 + $0x3a0] sm:$0xff]
        %v1723 = vld [vmem:[#allocation7 + $0x3a8] sm:$0xff]
        %v1724 = vld [vmem:[#allocation7 + $0x3b0] sm:$0xff]
        %v1725 = vld [vmem:[#allocation7 + $0x3b8] sm:$0xff]
        %v1726 = vld [vmem:[#allocation7 + $0x3c0] sm:$0xff]
        %v1727 = vld [vmem:[#allocation7 + $0x3c8] sm:$0xff]
        %v1728 = vld [vmem:[#allocation7 + $0x3d0] sm:$0xff]
        %v1729 = vld [vmem:[#allocation7 + $0x3d8] sm:$0xff]
        %v1730 = vld [vmem:[#allocation7 + $0x3e0] sm:$0xff]
        %v1731 = vld [vmem:[#allocation7 + $0x3e8] sm:$0xff]
        %v1732 = vld [vmem:[#allocation7 + $0x3f0] sm:$0xff]
        %v1733 = vld [vmem:[#allocation7 + $0x3f8] sm:$0xff]
        %v1734 = vld [vmem:[#allocation7 + $0x400] sm:$0xff]
        %v1735 = vld [vmem:[#allocation7 + $0x408] sm:$0xff]
        %v1736 = vld [vmem:[#allocation7 + $0x410] sm:$0xff]
        %v1737 = vld [vmem:[#allocation7 + $0x418] sm:$0xff]
        %v1738 = vld [vmem:[#allocation7 + $0x420] sm:$0xff]
        %v1739 = vld [vmem:[#allocation7 + $0x428] sm:$0xff]
        %v1740 = vld [vmem:[#allocation7 + $0x430] sm:$0xff]
        %v1741 = vld [vmem:[#allocation7 + $0x438] sm:$0xff]
        %v1742 = vld [vmem:[#allocation7 + $0x440] sm:$0xff]
        %v1743 = vld [vmem:[#allocation7 + $0x448] sm:$0xff]
        %v1744 = vld [vmem:[#allocation7 + $0x450] sm:$0xff]
        %v1745 = vld [vmem:[#allocation7 + $0x458] sm:$0xff]
        %v1746 = vld [vmem:[#allocation7 + $0x460] sm:$0xff]
        %v1747 = vld [vmem:[#allocation7 + $0x468] sm:$0xff]
        %v1748 = vld [vmem:[#allocation7 + $0x470] sm:$0xff]
        %v1749 = vld [vmem:[#allocation7 + $0x478] sm:$0xff]
        %v1750 = vld [vmem:[#allocation7 + $0x480] sm:$0xff]
        %v1751 = vld [vmem:[#allocation7 + $0x488] sm:$0xff]
        %v1752 = vld [vmem:[#allocation7 + $0x490] sm:$0xff]
        %v1753 = vld [vmem:[#allocation7 + $0x498] sm:$0xff]
        %v1754 = vld [vmem:[#allocation7 + $0x4a0] sm:$0xff]
        %v1755 = vld [vmem:[#allocation7 + $0x4a8] sm:$0xff]
        %v1756 = vld [vmem:[#allocation7 + $0x4b0] sm:$0xff]
        %v1757 = vld [vmem:[#allocation7 + $0x4b8] sm:$0xff]
        %v1758 = vld [vmem:[#allocation7 + $0x4c0] sm:$0xff]
        %v1759 = vld [vmem:[#allocation7 + $0x4c8] sm:$0xff]
        %v1760 = vld [vmem:[#allocation7 + $0x4d0] sm:$0xff]
        %v1761 = vld [vmem:[#allocation7 + $0x4d8] sm:$0xff]
        %v1762 = vld [vmem:[#allocation7 + $0x4e0] sm:$0xff]
        %v1763 = vld [vmem:[#allocation7 + $0x4e8] sm:$0xff]
        %v1764 = vld [vmem:[#allocation7 + $0x4f0] sm:$0xff]
        %v1765 = vld [vmem:[#allocation7 + $0x4f8] sm:$0xff]
        %v1766 = vld [vmem:[#allocation7 + $0x500] sm:$0xff]
        %v1767 = vld [vmem:[#allocation7 + $0x508] sm:$0xff]
        %v1768 = vld [vmem:[#allocation7 + $0x510] sm:$0xff]
        %v1769 = vld [vmem:[#allocation7 + $0x518] sm:$0xff]
        %v1770 = vld [vmem:[#allocation7 + $0x520] sm:$0xff]
        %v1771 = vld [vmem:[#allocation7 + $0x528] sm:$0xff]
        %v1772 = vld [vmem:[#allocation7 + $0x530] sm:$0xff]
        %v1773 = vld [vmem:[#allocation7 + $0x538] sm:$0xff]
        %v1774 = vld [vmem:[#allocation7 + $0x540] sm:$0xff]
        %v1775 = vld [vmem:[#allocation7 + $0x548] sm:$0xff]
        %v1776 = vld [vmem:[#allocation7 + $0x550] sm:$0xff]
        %v1777 = vld [vmem:[#allocation7 + $0x558] sm:$0xff]
        %v1778 = vld [vmem:[#allocation7 + $0x560] sm:$0xff]
        %v1779 = vld [vmem:[#allocation7 + $0x568] sm:$0xff]
        %v1780 = vld [vmem:[#allocation7 + $0x570] sm:$0xff]
        %v1781 = vld [vmem:[#allocation7 + $0x578] sm:$0xff]
        %v1782 = vld [vmem:[#allocation7 + $0x580] sm:$0xff]
        %v1783 = vld [vmem:[#allocation7 + $0x588] sm:$0xff]
        %v1784 = vld [vmem:[#allocation7 + $0x590] sm:$0xff]
        %v1785 = vld [vmem:[#allocation7 + $0x598] sm:$0xff]
        %v1786 = vld [vmem:[#allocation7 + $0x5a0] sm:$0xff]
        %v1787 = vld [vmem:[#allocation7 + $0x5a8] sm:$0xff]
        %v1788 = vld [vmem:[#allocation7 + $0x5b0] sm:$0xff]
        %v1789 = vld [vmem:[#allocation7 + $0x5b8] sm:$0xff]
        %v1790 = vld [vmem:[#allocation7 + $0x5c0] sm:$0xff]
        %v1791 = vld [vmem:[#allocation7 + $0x5c8] sm:$0xff]
        %v1792 = vld [vmem:[#allocation7 + $0x5d0] sm:$0xff]
        %v1793 = vld [vmem:[#allocation7 + $0x5d8] sm:$0xff]
        %v1794 = vld [vmem:[#allocation7 + $0x5e0] sm:$0xff]
        %v1795 = vld [vmem:[#allocation7 + $0x5e8] sm:$0xff]
        %v1796 = vld [vmem:[#allocation7 + $0x5f0] sm:$0xff]
        %v1797 = vld [vmem:[#allocation7 + $0x5f8] sm:$0xff]
        %v1798 = vld [vmem:[#allocation7 + $0x600] sm:$0xff]
        %v1799 = vld [vmem:[#allocation7 + $0x608] sm:$0xff]
        %v1800 = vld [vmem:[#allocation7 + $0x610] sm:$0xff]
        %v1801 = vld [vmem:[#allocation7 + $0x618] sm:$0xff]
        %v1802 = vld [vmem:[#allocation7 + $0x620] sm:$0xff]
        %v1803 = vld [vmem:[#allocation7 + $0x628] sm:$0xff]
        %v1804 = vld [vmem:[#allocation7 + $0x630] sm:$0xff]
        %v1805 = vld [vmem:[#allocation7 + $0x638] sm:$0xff]
        %v1806 = vld [vmem:[#allocation7 + $0x640] sm:$0xff]
        %v1807 = vld [vmem:[#allocation7 + $0x648] sm:$0xff]
        %v1808 = vld [vmem:[#allocation7 + $0x650] sm:$0xff]
        %v1809 = vld [vmem:[#allocation7 + $0x658] sm:$0xff]
        %v1810 = vld [vmem:[#allocation7 + $0x660] sm:$0xff]
        %v1811 = vld [vmem:[#allocation7 + $0x668] sm:$0xff]
        %v1812 = vld [vmem:[#allocation7 + $0x670] sm:$0xff]
        %v1813 = vld [vmem:[#allocation7 + $0x678] sm:$0xff]
        %v1814 = vld [vmem:[#allocation7 + $0x680] sm:$0xff]
        %v1815 = vld [vmem:[#allocation7 + $0x688] sm:$0xff]
        %v1816 = vld [vmem:[#allocation7 + $0x690] sm:$0xff]
        %v1817 = vld [vmem:[#allocation7 + $0x698] sm:$0xff]
        %v1818 = vld [vmem:[#allocation7 + $0x6a0] sm:$0xff]
        %v1819 = vld [vmem:[#allocation7 + $0x6a8] sm:$0xff]
        %v1820 = vld [vmem:[#allocation7 + $0x6b0] sm:$0xff]
        %v1821 = vld [vmem:[#allocation7 + $0x6b8] sm:$0xff]
        %v1822 = vld [vmem:[#allocation7 + $0x6c0] sm:$0xff]
        %v1823 = vld [vmem:[#allocation7 + $0x6c8] sm:$0xff]
        %v1824 = vld [vmem:[#allocation7 + $0x6d0] sm:$0xff]
        %v1825 = vld [vmem:[#allocation7 + $0x6d8] sm:$0xff]
        %v1826 = vld [vmem:[#allocation7 + $0x6e0] sm:$0xff]
        %v1827 = vld [vmem:[#allocation7 + $0x6e8] sm:$0xff]
        %v1828 = vld [vmem:[#allocation7 + $0x6f0] sm:$0xff]
        %v1829 = vld [vmem:[#allocation7 + $0x6f8] sm:$0xff]
        %v1830 = vld [vmem:[#allocation7 + $0x700] sm:$0xff]
        %v1831 = vld [vmem:[#allocation7 + $0x708] sm:$0xff]
        %v1832 = vld [vmem:[#allocation7 + $0x710] sm:$0xff]
        %v1833 = vld [vmem:[#allocation7 + $0x718] sm:$0xff]
        %v1834 = vld [vmem:[#allocation7 + $0x720] sm:$0xff]
        %v1835 = vld [vmem:[#allocation7 + $0x728] sm:$0xff]
        %v1836 = vld [vmem:[#allocation7 + $0x730] sm:$0xff]
        %v1837 = vld [vmem:[#allocation7 + $0x738] sm:$0xff]
        %v1838 = vld [vmem:[#allocation7 + $0x740] sm:$0xff]
        %v1839 = vld [vmem:[#allocation7 + $0x748] sm:$0xff]
        %v1840 = vld [vmem:[#allocation7 + $0x750] sm:$0xff]
        %v1841 = vld [vmem:[#allocation7 + $0x758] sm:$0xff]
        %v1842 = vld [vmem:[#allocation7 + $0x760] sm:$0xff]
        %v1843 = vld [vmem:[#allocation7 + $0x768] sm:$0xff]
        %v1844 = vld [vmem:[#allocation7 + $0x770] sm:$0xff]
        %v1845 = vld [vmem:[#allocation7 + $0x778] sm:$0xff]
        %v1846 = vld [vmem:[#allocation7 + $0x780] sm:$0xff]
        %v1847 = vld [vmem:[#allocation7 + $0x788] sm:$0xff]
        %v1848 = vld [vmem:[#allocation7 + $0x790] sm:$0xff]
        %v1849 = vld [vmem:[#allocation7 + $0x798] sm:$0xff]
        %v1850 = vld [vmem:[#allocation7 + $0x7a0] sm:$0xff]
        %v1851 = vld [vmem:[#allocation7 + $0x7a8] sm:$0xff]
        %v1852 = vld [vmem:[#allocation7 + $0x7b0] sm:$0xff]
        %v1853 = vld [vmem:[#allocation7 + $0x7b8] sm:$0xff]
        %v1854 = vld [vmem:[#allocation7 + $0x7c0] sm:$0xff]
        %v1855 = vld [vmem:[#allocation7 + $0x7c8] sm:$0xff]
        %v1856 = vld [vmem:[#allocation7 + $0x7d0] sm:$0xff]
        %v1857 = vld [vmem:[#allocation7 + $0x7d8] sm:$0xff]
        %v1858 = vld [vmem:[#allocation7 + $0x7e0] sm:$0xff]
        %v1859 = vld [vmem:[#allocation7 + $0x7e8] sm:$0xff]
        %v1860 = vld [vmem:[#allocation7 + $0x7f0] sm:$0xff]
        %v1861 = vld [vmem:[#allocation7 + $0x7f8] sm:$0xff]
        %1862 = vmatprep.subr.mxu0 0.0
        %1863 = vmatpush1.msra.mxu0 %v1365
        %1864 = vmatprep.subr.mxu0 0.0
        %1865 = vmatpush1.msra.mxu0 %v1364
        %1866 = vmatprep.subr.mxu0 0.0
        %1867 = vmatpush1.msra.mxu0 %v1363
        %1868 = vmatprep.subr.mxu0 0.0
        %1869 = vmatpush1.msra.mxu0 %v1362
        %1870 = vmatprep.subr.mxu0 0.0
        %1871 = vmatpush1.msra.mxu0 %v1361
        %1872 = vmatprep.subr.mxu0 0.0
        %1873 = vmatpush1.msra.mxu0 %v1360
        %1874 = vmatprep.subr.mxu0 0.0
        %1875 = vmatpush1.msra.mxu0 %v1359
        %1876 = vmatprep.subr.mxu0 0.0
        %1877 = vmatpush1.msra.mxu0 %v1358
        %1878 = vmatprep.subr.mxu0 0.0
        %1879 = vmatpush1.msra.mxu0 %v1357
        %1880 = vmatprep.subr.mxu0 0.0
        %1881 = vmatpush1.msra.mxu0 %v1356
        %1882 = vmatprep.subr.mxu0 0.0
        %1883 = vmatpush1.msra.mxu0 %v1355
        %1884 = vmatprep.subr.mxu0 0.0
        %1885 = vmatpush1.msra.mxu0 %v1354
        %1886 = vmatprep.subr.mxu0 0.0
        %1887 = vmatpush1.msra.mxu0 %v1353
        %1888 = vmatprep.subr.mxu0 0.0
        %1889 = vmatpush1.msra.mxu0 %v1352
        %1890 = vmatprep.subr.mxu0 0.0
        %1891 = vmatpush1.msra.mxu0 %v1351
        %1892 = vmatprep.subr.mxu0 0.0
        %1893 = vmatpush1.msra.mxu0 %v1350
        %1894 = vmatprep.subr.mxu0 0.0
        %1895 = vmatpush2.msra.mxu0 %v1381
        %1896 = vmatprep.subr.mxu0 0.0
        %1897 = vmatpush2.msra.mxu0 %v1380
        %1898 = vmatprep.subr.mxu0 0.0
        %1899 = vmatpush2.msra.mxu0 %v1379
        %1900 = vmatprep.subr.mxu0 0.0
        %1901 = vmatpush2.msra.mxu0 %v1378
        %1902 = vmatprep.subr.mxu0 0.0
        %1903 = vmatpush2.msra.mxu0 %v1377
        %1904 = vmatprep.subr.mxu0 0.0
        %1905 = vmatpush2.msra.mxu0 %v1376
        %1906 = vmatprep.subr.mxu0 0.0
        %1907 = vmatpush2.msra.mxu0 %v1375
        %1908 = vmatprep.subr.mxu0 0.0
        %1909 = vmatpush2.msra.mxu0 %v1374
        %1910 = vmatprep.subr.mxu0 0.0
        %1911 = vmatpush2.msra.mxu0 %v1373
        %1912 = vmatprep.subr.mxu0 0.0
        %1913 = vmatpush2.msra.mxu0 %v1372
        %1914 = vmatprep.subr.mxu0 0.0
        %1915 = vmatpush2.msra.mxu0 %v1371
        %1916 = vmatprep.subr.mxu0 0.0
        %1917 = vmatpush2.msra.mxu0 %v1370
        %1918 = vmatprep.subr.mxu0 0.0
        %1919 = vmatpush2.msra.mxu0 %v1369
        %1920 = vmatprep.subr.mxu0 0.0
        %1921 = vmatpush2.msra.mxu0 %v1368
        %1922 = vmatprep.subr.mxu0 0.0
        %1923 = vmatpush2.msra.mxu0 %v1367
        %1924 = vmatprep.subr.mxu0 0.0
        %1925 = vmatpush2.msra.mxu0 %v1366
        %1926 = vmatprep.mubr.f32.mxu0 %v851
        %1927 = vmatmul.mubr.f32.gmra.mxu0 %v849
        %v1928 = vpop.f32.mrf.mxu0
        %v1929 = vadd.f32 0.0, %v1928
        %v1930 = vpop.f32.mrf.mxu0
        %1931 = vdwg.mxu0
        %1932 = vmatprep.subr.mxu0 0.0
        %1933 = vmatpush1.msra.mxu0 %v1397
        %1934 = vmatprep.subr.mxu0 0.0
        %1935 = vmatpush1.msra.mxu0 %v1396
        %1936 = vmatprep.subr.mxu0 0.0
        %1937 = vmatpush1.msra.mxu0 %v1395
        %1938 = vmatprep.subr.mxu0 0.0
        %1939 = vmatpush1.msra.mxu0 %v1394
        %1940 = vmatprep.subr.mxu0 0.0
        %1941 = vmatpush1.msra.mxu0 %v1393
        %1942 = vmatprep.subr.mxu0 0.0
        %1943 = vmatpush1.msra.mxu0 %v1392
        %1944 = vmatprep.subr.mxu0 0.0
        %1945 = vmatpush1.msra.mxu0 %v1391
        %1946 = vmatprep.subr.mxu0 0.0
        %1947 = vmatpush1.msra.mxu0 %v1390
        %1948 = vmatprep.subr.mxu0 0.0
        %1949 = vmatpush1.msra.mxu0 %v1389
        %1950 = vmatprep.subr.mxu0 0.0
        %1951 = vmatpush1.msra.mxu0 %v1388
        %1952 = vmatprep.subr.mxu0 0.0
        %1953 = vmatpush1.msra.mxu0 %v1387
        %1954 = vmatprep.subr.mxu0 0.0
        %1955 = vmatpush1.msra.mxu0 %v1386
        %1956 = vmatprep.subr.mxu0 0.0
        %1957 = vmatpush1.msra.mxu0 %v1385
        %1958 = vmatprep.subr.mxu0 0.0
        %1959 = vmatpush1.msra.mxu0 %v1384
        %1960 = vmatprep.subr.mxu0 0.0
        %1961 = vmatpush1.msra.mxu0 %v1383
        %1962 = vmatprep.subr.mxu0 0.0
        %1963 = vmatpush1.msra.mxu0 %v1382
        %1964 = vmatprep.subr.mxu0 0.0
        %1965 = vmatpush2.msra.mxu0 %v1413
        %1966 = vmatprep.subr.mxu0 0.0
        %1967 = vmatpush2.msra.mxu0 %v1412
        %1968 = vmatprep.subr.mxu0 0.0
        %1969 = vmatpush2.msra.mxu0 %v1411
        %1970 = vmatprep.subr.mxu0 0.0
        %1971 = vmatpush2.msra.mxu0 %v1410
        %1972 = vmatprep.subr.mxu0 0.0
        %1973 = vmatpush2.msra.mxu0 %v1409
        %1974 = vmatprep.subr.mxu0 0.0
        %1975 = vmatpush2.msra.mxu0 %v1408
        %1976 = vmatprep.subr.mxu0 0.0
        %1977 = vmatpush2.msra.mxu0 %v1407
        %1978 = vmatprep.subr.mxu0 0.0
        %1979 = vmatpush2.msra.mxu0 %v1406
        %1980 = vmatprep.subr.mxu0 0.0
        %1981 = vmatpush2.msra.mxu0 %v1405
        %1982 = vmatprep.subr.mxu0 0.0
        %1983 = vmatpush2.msra.mxu0 %v1404
        %1984 = vmatprep.subr.mxu0 0.0
        %1985 = vmatpush2.msra.mxu0 %v1403
        %1986 = vmatprep.subr.mxu0 0.0
        %1987 = vmatpush2.msra.mxu0 %v1402
        %1988 = vmatprep.subr.mxu0 0.0
        %1989 = vmatpush2.msra.mxu0 %v1401
        %1990 = vmatprep.subr.mxu0 0.0
        %1991 = vmatpush2.msra.mxu0 %v1400
        %1992 = vmatprep.subr.mxu0 0.0
        %1993 = vmatpush2.msra.mxu0 %v1399
        %1994 = vmatprep.subr.mxu0 0.0
        %1995 = vmatpush2.msra.mxu0 %v1398
        %1996 = vmatprep.mubr.f32.mxu0 %v922
        %1997 = vmatmul.mubr.f32.gmra.mxu0 %v920
        %v1998 = vpop.f32.mrf.mxu0
        %v1999 = vadd.f32 %v1929, %v1998
        %v2000 = vpop.f32.mrf.mxu0
        %2001 = vdwg.mxu0
        %2002 = vmatprep.subr.mxu0 0.0
        %2003 = vmatpush1.msra.mxu0 %v1429
        %2004 = vmatprep.subr.mxu0 0.0
        %2005 = vmatpush1.msra.mxu0 %v1428
        %2006 = vmatprep.subr.mxu0 0.0
        %2007 = vmatpush1.msra.mxu0 %v1427
        %2008 = vmatprep.subr.mxu0 0.0
        %2009 = vmatpush1.msra.mxu0 %v1426
        %2010 = vmatprep.subr.mxu0 0.0
        %2011 = vmatpush1.msra.mxu0 %v1425
        %2012 = vmatprep.subr.mxu0 0.0
        %2013 = vmatpush1.msra.mxu0 %v1424
        %2014 = vmatprep.subr.mxu0 0.0
        %2015 = vmatpush1.msra.mxu0 %v1423
        %2016 = vmatprep.subr.mxu0 0.0
        %2017 = vmatpush1.msra.mxu0 %v1422
        %2018 = vmatprep.subr.mxu0 0.0
        %2019 = vmatpush1.msra.mxu0 %v1421
        %2020 = vmatprep.subr.mxu0 0.0
        %2021 = vmatpush1.msra.mxu0 %v1420
        %2022 = vmatprep.subr.mxu0 0.0
        %2023 = vmatpush1.msra.mxu0 %v1419
        %2024 = vmatprep.subr.mxu0 0.0
        %2025 = vmatpush1.msra.mxu0 %v1418
        %2026 = vmatprep.subr.mxu0 0.0
        %2027 = vmatpush1.msra.mxu0 %v1417
        %2028 = vmatprep.subr.mxu0 0.0
        %2029 = vmatpush1.msra.mxu0 %v1416
        %2030 = vmatprep.subr.mxu0 0.0
        %2031 = vmatpush1.msra.mxu0 %v1415
        %2032 = vmatprep.subr.mxu0 0.0
        %2033 = vmatpush1.msra.mxu0 %v1414
        %2034 = vmatprep.subr.mxu0 0.0
        %2035 = vmatpush2.msra.mxu0 %v1445
        %2036 = vmatprep.subr.mxu0 0.0
        %2037 = vmatpush2.msra.mxu0 %v1444
        %2038 = vmatprep.subr.mxu0 0.0
        %2039 = vmatpush2.msra.mxu0 %v1443
        %2040 = vmatprep.subr.mxu0 0.0
        %2041 = vmatpush2.msra.mxu0 %v1442
        %2042 = vmatprep.subr.mxu0 0.0
        %2043 = vmatpush2.msra.mxu0 %v1441
        %2044 = vmatprep.subr.mxu0 0.0
        %2045 = vmatpush2.msra.mxu0 %v1440
        %2046 = vmatprep.subr.mxu0 0.0
        %2047 = vmatpush2.msra.mxu0 %v1439
        %2048 = vmatprep.subr.mxu0 0.0
        %2049 = vmatpush2.msra.mxu0 %v1438
        %2050 = vmatprep.subr.mxu0 0.0
        %2051 = vmatpush2.msra.mxu0 %v1437
        %2052 = vmatprep.subr.mxu0 0.0
        %2053 = vmatpush2.msra.mxu0 %v1436
        %2054 = vmatprep.subr.mxu0 0.0
        %2055 = vmatpush2.msra.mxu0 %v1435
        %2056 = vmatprep.subr.mxu0 0.0
        %2057 = vmatpush2.msra.mxu0 %v1434
        %2058 = vmatprep.subr.mxu0 0.0
        %2059 = vmatpush2.msra.mxu0 %v1433
        %2060 = vmatprep.subr.mxu0 0.0
        %2061 = vmatpush2.msra.mxu0 %v1432
        %2062 = vmatprep.subr.mxu0 0.0
        %2063 = vmatpush2.msra.mxu0 %v1431
        %2064 = vmatprep.subr.mxu0 0.0
        %2065 = vmatpush2.msra.mxu0 %v1430
        %2066 = vmatprep.mubr.f32.mxu0 %v993
        %2067 = vmatmul.mubr.f32.gmra.mxu0 %v991
        %v2068 = vpop.f32.mrf.mxu0
        %v2069 = vadd.f32 %v1999, %v2068
        %v2070 = vpop.f32.mrf.mxu0
        %2071 = vdwg.mxu0
        %2072 = vmatprep.subr.mxu0 0.0
        %2073 = vmatpush1.msra.mxu0 %v1461
        %2074 = vmatprep.subr.mxu0 0.0
        %2075 = vmatpush1.msra.mxu0 %v1460
        %2076 = vmatprep.subr.mxu0 0.0
        %2077 = vmatpush1.msra.mxu0 %v1459
        %2078 = vmatprep.subr.mxu0 0.0
        %2079 = vmatpush1.msra.mxu0 %v1458
        %2080 = vmatprep.subr.mxu0 0.0
        %2081 = vmatpush1.msra.mxu0 %v1457
        %2082 = vmatprep.subr.mxu0 0.0
        %2083 = vmatpush1.msra.mxu0 %v1456
        %2084 = vmatprep.subr.mxu0 0.0
        %2085 = vmatpush1.msra.mxu0 %v1455
        %2086 = vmatprep.subr.mxu0 0.0
        %2087 = vmatpush1.msra.mxu0 %v1454
        %2088 = vmatprep.subr.mxu0 0.0
        %2089 = vmatpush1.msra.mxu0 %v1453
        %2090 = vmatprep.subr.mxu0 0.0
        %2091 = vmatpush1.msra.mxu0 %v1452
        %2092 = vmatprep.subr.mxu0 0.0
        %2093 = vmatpush1.msra.mxu0 %v1451
        %2094 = vmatprep.subr.mxu0 0.0
        %2095 = vmatpush1.msra.mxu0 %v1450
        %2096 = vmatprep.subr.mxu0 0.0
        %2097 = vmatpush1.msra.mxu0 %v1449
        %2098 = vmatprep.subr.mxu0 0.0
        %2099 = vmatpush1.msra.mxu0 %v1448
        %2100 = vmatprep.subr.mxu0 0.0
        %2101 = vmatpush1.msra.mxu0 %v1447
        %2102 = vmatprep.subr.mxu0 0.0
        %2103 = vmatpush1.msra.mxu0 %v1446
        %2104 = vmatprep.subr.mxu0 0.0
        %2105 = vmatpush2.msra.mxu0 %v1477
        %2106 = vmatprep.subr.mxu0 0.0
        %2107 = vmatpush2.msra.mxu0 %v1476
        %2108 = vmatprep.subr.mxu0 0.0
        %2109 = vmatpush2.msra.mxu0 %v1475
        %2110 = vmatprep.subr.mxu0 0.0
        %2111 = vmatpush2.msra.mxu0 %v1474
        %2112 = vmatprep.subr.mxu0 0.0
        %2113 = vmatpush2.msra.mxu0 %v1473
        %2114 = vmatprep.subr.mxu0 0.0
        %2115 = vmatpush2.msra.mxu0 %v1472
        %2116 = vmatprep.subr.mxu0 0.0
        %2117 = vmatpush2.msra.mxu0 %v1471
        %2118 = vmatprep.subr.mxu0 0.0
        %2119 = vmatpush2.msra.mxu0 %v1470
        %2120 = vmatprep.subr.mxu0 0.0
        %2121 = vmatpush2.msra.mxu0 %v1469
        %2122 = vmatprep.subr.mxu0 0.0
        %2123 = vmatpush2.msra.mxu0 %v1468
        %2124 = vmatprep.subr.mxu0 0.0
        %2125 = vmatpush2.msra.mxu0 %v1467
        %2126 = vmatprep.subr.mxu0 0.0
        %2127 = vmatpush2.msra.mxu0 %v1466
        %2128 = vmatprep.subr.mxu0 0.0
        %2129 = vmatpush2.msra.mxu0 %v1465
        %2130 = vmatprep.subr.mxu0 0.0
        %2131 = vmatpush2.msra.mxu0 %v1464
        %2132 = vmatprep.subr.mxu0 0.0
        %2133 = vmatpush2.msra.mxu0 %v1463
        %2134 = vmatprep.subr.mxu0 0.0
        %2135 = vmatpush2.msra.mxu0 %v1462
        %2136 = vmatprep.mubr.f32.mxu0 %v1064
        %2137 = vmatmul.mubr.f32.gmra.mxu0 %v1062
        %v2138 = vpop.f32.mrf.mxu0
        %v2139 = vadd.f32 %v2069, %v2138
        %v2140 = vpop.f32.mrf.mxu0
        %2141 = vdwg.mxu0
        %2142 = vmatprep.subr.mxu0 0.0
        %2143 = vmatpush1.msra.mxu0 %v1493
        %2144 = vmatprep.subr.mxu0 0.0
        %2145 = vmatpush1.msra.mxu0 %v1492
        %2146 = vmatprep.subr.mxu0 0.0
        %2147 = vmatpush1.msra.mxu0 %v1491
        %2148 = vmatprep.subr.mxu0 0.0
        %2149 = vmatpush1.msra.mxu0 %v1490
        %2150 = vmatprep.subr.mxu0 0.0
        %2151 = vmatpush1.msra.mxu0 %v1489
        %2152 = vmatprep.subr.mxu0 0.0
        %2153 = vmatpush1.msra.mxu0 %v1488
        %2154 = vmatprep.subr.mxu0 0.0
        %2155 = vmatpush1.msra.mxu0 %v1487
        %2156 = vmatprep.subr.mxu0 0.0
        %2157 = vmatpush1.msra.mxu0 %v1486
        %2158 = vmatprep.subr.mxu0 0.0
        %2159 = vmatpush1.msra.mxu0 %v1485
        %2160 = vmatprep.subr.mxu0 0.0
        %2161 = vmatpush1.msra.mxu0 %v1484
        %2162 = vmatprep.subr.mxu0 0.0
        %2163 = vmatpush1.msra.mxu0 %v1483
        %2164 = vmatprep.subr.mxu0 0.0
        %2165 = vmatpush1.msra.mxu0 %v1482
        %2166 = vmatprep.subr.mxu0 0.0
        %2167 = vmatpush1.msra.mxu0 %v1481
        %2168 = vmatprep.subr.mxu0 0.0
        %2169 = vmatpush1.msra.mxu0 %v1480
        %2170 = vmatprep.subr.mxu0 0.0
        %2171 = vmatpush1.msra.mxu0 %v1479
        %2172 = vmatprep.subr.mxu0 0.0
        %2173 = vmatpush1.msra.mxu0 %v1478
        %2174 = vmatprep.subr.mxu0 0.0
        %2175 = vmatpush2.msra.mxu0 %v1509
        %2176 = vmatprep.subr.mxu0 0.0
        %2177 = vmatpush2.msra.mxu0 %v1508
        %2178 = vmatprep.subr.mxu0 0.0
        %2179 = vmatpush2.msra.mxu0 %v1507
        %2180 = vmatprep.subr.mxu0 0.0
        %2181 = vmatpush2.msra.mxu0 %v1506
        %2182 = vmatprep.subr.mxu0 0.0
        %2183 = vmatpush2.msra.mxu0 %v1505
        %2184 = vmatprep.subr.mxu0 0.0
        %2185 = vmatpush2.msra.mxu0 %v1504
        %2186 = vmatprep.subr.mxu0 0.0
        %2187 = vmatpush2.msra.mxu0 %v1503
        %2188 = vmatprep.subr.mxu0 0.0
        %2189 = vmatpush2.msra.mxu0 %v1502
        %2190 = vmatprep.subr.mxu0 0.0
        %2191 = vmatpush2.msra.mxu0 %v1501
        %2192 = vmatprep.subr.mxu0 0.0
        %2193 = vmatpush2.msra.mxu0 %v1500
        %2194 = vmatprep.subr.mxu0 0.0
        %2195 = vmatpush2.msra.mxu0 %v1499
        %2196 = vmatprep.subr.mxu0 0.0
        %2197 = vmatpush2.msra.mxu0 %v1498
        %2198 = vmatprep.subr.mxu0 0.0
        %2199 = vmatpush2.msra.mxu0 %v1497
        %2200 = vmatprep.subr.mxu0 0.0
        %2201 = vmatpush2.msra.mxu0 %v1496
        %2202 = vmatprep.subr.mxu0 0.0
        %2203 = vmatpush2.msra.mxu0 %v1495
        %2204 = vmatprep.subr.mxu0 0.0
        %2205 = vmatpush2.msra.mxu0 %v1494
        %2206 = vmatprep.mubr.f32.mxu0 %v1135
        %2207 = vmatmul.mubr.f32.gmra.mxu0 %v1133
        %v2208 = vpop.f32.mrf.mxu0
        %v2209 = vadd.f32 %v2139, %v2208
        %v2210 = vpop.f32.mrf.mxu0
        %2211 = vdwg.mxu0
        %2212 = vmatprep.subr.mxu0 0.0
        %2213 = vmatpush1.msra.mxu0 %v1525
        %2214 = vmatprep.subr.mxu0 0.0
        %2215 = vmatpush1.msra.mxu0 %v1524
        %2216 = vmatprep.subr.mxu0 0.0
        %2217 = vmatpush1.msra.mxu0 %v1523
        %2218 = vmatprep.subr.mxu0 0.0
        %2219 = vmatpush1.msra.mxu0 %v1522
        %2220 = vmatprep.subr.mxu0 0.0
        %2221 = vmatpush1.msra.mxu0 %v1521
        %2222 = vmatprep.subr.mxu0 0.0
        %2223 = vmatpush1.msra.mxu0 %v1520
        %2224 = vmatprep.subr.mxu0 0.0
        %2225 = vmatpush1.msra.mxu0 %v1519
        %2226 = vmatprep.subr.mxu0 0.0
        %2227 = vmatpush1.msra.mxu0 %v1518
        %2228 = vmatprep.subr.mxu0 0.0
        %2229 = vmatpush1.msra.mxu0 %v1517
        %2230 = vmatprep.subr.mxu0 0.0
        %2231 = vmatpush1.msra.mxu0 %v1516
        %2232 = vmatprep.subr.mxu0 0.0
        %2233 = vmatpush1.msra.mxu0 %v1515
        %2234 = vmatprep.subr.mxu0 0.0
        %2235 = vmatpush1.msra.mxu0 %v1514
        %2236 = vmatprep.subr.mxu0 0.0
        %2237 = vmatpush1.msra.mxu0 %v1513
        %2238 = vmatprep.subr.mxu0 0.0
        %2239 = vmatpush1.msra.mxu0 %v1512
        %2240 = vmatprep.subr.mxu0 0.0
        %2241 = vmatpush1.msra.mxu0 %v1511
        %2242 = vmatprep.subr.mxu0 0.0
        %2243 = vmatpush1.msra.mxu0 %v1510
        %2244 = vmatprep.subr.mxu0 0.0
        %2245 = vmatpush2.msra.mxu0 %v1541
        %2246 = vmatprep.subr.mxu0 0.0
        %2247 = vmatpush2.msra.mxu0 %v1540
        %2248 = vmatprep.subr.mxu0 0.0
        %2249 = vmatpush2.msra.mxu0 %v1539
        %2250 = vmatprep.subr.mxu0 0.0
        %2251 = vmatpush2.msra.mxu0 %v1538
        %2252 = vmatprep.subr.mxu0 0.0
        %2253 = vmatpush2.msra.mxu0 %v1537
        %2254 = vmatprep.subr.mxu0 0.0
        %2255 = vmatpush2.msra.mxu0 %v1536
        %2256 = vmatprep.subr.mxu0 0.0
        %2257 = vmatpush2.msra.mxu0 %v1535
        %2258 = vmatprep.subr.mxu0 0.0
        %2259 = vmatpush2.msra.mxu0 %v1534
        %2260 = vmatprep.subr.mxu0 0.0
        %2261 = vmatpush2.msra.mxu0 %v1533
        %2262 = vmatprep.subr.mxu0 0.0
        %2263 = vmatpush2.msra.mxu0 %v1532
        %2264 = vmatprep.subr.mxu0 0.0
        %2265 = vmatpush2.msra.mxu0 %v1531
        %2266 = vmatprep.subr.mxu0 0.0
        %2267 = vmatpush2.msra.mxu0 %v1530
        %2268 = vmatprep.subr.mxu0 0.0
        %2269 = vmatpush2.msra.mxu0 %v1529
        %2270 = vmatprep.subr.mxu0 0.0
        %2271 = vmatpush2.msra.mxu0 %v1528
        %2272 = vmatprep.subr.mxu0 0.0
        %2273 = vmatpush2.msra.mxu0 %v1527
        %2274 = vmatprep.subr.mxu0 0.0
        %2275 = vmatpush2.msra.mxu0 %v1526
        %2276 = vmatprep.mubr.f32.mxu0 %v1206
        %2277 = vmatmul.mubr.f32.gmra.mxu0 %v1204
        %v2278 = vpop.f32.mrf.mxu0
        %v2279 = vadd.f32 %v2209, %v2278
        %v2280 = vpop.f32.mrf.mxu0
        %2281 = vdwg.mxu0
        %2282 = vmatprep.subr.mxu0 0.0
        %2283 = vmatpush1.msra.mxu0 %v1557
        %2284 = vmatprep.subr.mxu0 0.0
        %2285 = vmatpush1.msra.mxu0 %v1556
        %2286 = vmatprep.subr.mxu0 0.0
        %2287 = vmatpush1.msra.mxu0 %v1555
        %2288 = vmatprep.subr.mxu0 0.0
        %2289 = vmatpush1.msra.mxu0 %v1554
        %2290 = vmatprep.subr.mxu0 0.0
        %2291 = vmatpush1.msra.mxu0 %v1553
        %2292 = vmatprep.subr.mxu0 0.0
        %2293 = vmatpush1.msra.mxu0 %v1552
        %2294 = vmatprep.subr.mxu0 0.0
        %2295 = vmatpush1.msra.mxu0 %v1551
        %2296 = vmatprep.subr.mxu0 0.0
        %2297 = vmatpush1.msra.mxu0 %v1550
        %2298 = vmatprep.subr.mxu0 0.0
        %2299 = vmatpush1.msra.mxu0 %v1549
        %2300 = vmatprep.subr.mxu0 0.0
        %2301 = vmatpush1.msra.mxu0 %v1548
        %2302 = vmatprep.subr.mxu0 0.0
        %2303 = vmatpush1.msra.mxu0 %v1547
        %2304 = vmatprep.subr.mxu0 0.0
        %2305 = vmatpush1.msra.mxu0 %v1546
        %2306 = vmatprep.subr.mxu0 0.0
        %2307 = vmatpush1.msra.mxu0 %v1545
        %2308 = vmatprep.subr.mxu0 0.0
        %2309 = vmatpush1.msra.mxu0 %v1544
        %2310 = vmatprep.subr.mxu0 0.0
        %2311 = vmatpush1.msra.mxu0 %v1543
        %2312 = vmatprep.subr.mxu0 0.0
        %2313 = vmatpush1.msra.mxu0 %v1542
        %2314 = vmatprep.subr.mxu0 0.0
        %2315 = vmatpush2.msra.mxu0 %v1573
        %2316 = vmatprep.subr.mxu0 0.0
        %2317 = vmatpush2.msra.mxu0 %v1572
        %2318 = vmatprep.subr.mxu0 0.0
        %2319 = vmatpush2.msra.mxu0 %v1571
        %2320 = vmatprep.subr.mxu0 0.0
        %2321 = vmatpush2.msra.mxu0 %v1570
        %2322 = vmatprep.subr.mxu0 0.0
        %2323 = vmatpush2.msra.mxu0 %v1569
        %2324 = vmatprep.subr.mxu0 0.0
        %2325 = vmatpush2.msra.mxu0 %v1568
        %2326 = vmatprep.subr.mxu0 0.0
        %2327 = vmatpush2.msra.mxu0 %v1567
        %2328 = vmatprep.subr.mxu0 0.0
        %2329 = vmatpush2.msra.mxu0 %v1566
        %2330 = vmatprep.subr.mxu0 0.0
        %2331 = vmatpush2.msra.mxu0 %v1565
        %2332 = vmatprep.subr.mxu0 0.0
        %2333 = vmatpush2.msra.mxu0 %v1564
        %2334 = vmatprep.subr.mxu0 0.0
        %2335 = vmatpush2.msra.mxu0 %v1563
        %2336 = vmatprep.subr.mxu0 0.0
        %2337 = vmatpush2.msra.mxu0 %v1562
        %2338 = vmatprep.subr.mxu0 0.0
        %2339 = vmatpush2.msra.mxu0 %v1561
        %2340 = vmatprep.subr.mxu0 0.0
        %2341 = vmatpush2.msra.mxu0 %v1560
        %2342 = vmatprep.subr.mxu0 0.0
        %2343 = vmatpush2.msra.mxu0 %v1559
        %2344 = vmatprep.subr.mxu0 0.0
        %2345 = vmatpush2.msra.mxu0 %v1558
        %2346 = vmatprep.mubr.f32.mxu0 %v1277
        %2347 = vmatmul.mubr.f32.gmra.mxu0 %v1275
        %v2348 = vpop.f32.mrf.mxu0
        %v2349 = vadd.f32 %v2279, %v2348
        %v2350 = vpop.f32.mrf.mxu0
        %2351 = vdwg.mxu0
        %2352 = vmatprep.subr.mxu0 0.0
        %2353 = vmatpush1.msra.mxu0 %v1589
        %2354 = vmatprep.subr.mxu0 0.0
        %2355 = vmatpush1.msra.mxu0 %v1588
        %2356 = vmatprep.subr.mxu0 0.0
        %2357 = vmatpush1.msra.mxu0 %v1587
        %2358 = vmatprep.subr.mxu0 0.0
        %2359 = vmatpush1.msra.mxu0 %v1586
        %2360 = vmatprep.subr.mxu0 0.0
        %2361 = vmatpush1.msra.mxu0 %v1585
        %2362 = vmatprep.subr.mxu0 0.0
        %2363 = vmatpush1.msra.mxu0 %v1584
        %2364 = vmatprep.subr.mxu0 0.0
        %2365 = vmatpush1.msra.mxu0 %v1583
        %2366 = vmatprep.subr.mxu0 0.0
        %2367 = vmatpush1.msra.mxu0 %v1582
        %2368 = vmatprep.subr.mxu0 0.0
        %2369 = vmatpush1.msra.mxu0 %v1581
        %2370 = vmatprep.subr.mxu0 0.0
        %2371 = vmatpush1.msra.mxu0 %v1580
        %2372 = vmatprep.subr.mxu0 0.0
        %2373 = vmatpush1.msra.mxu0 %v1579
        %2374 = vmatprep.subr.mxu0 0.0
        %2375 = vmatpush1.msra.mxu0 %v1578
        %2376 = vmatprep.subr.mxu0 0.0
        %2377 = vmatpush1.msra.mxu0 %v1577
        %2378 = vmatprep.subr.mxu0 0.0
        %2379 = vmatpush1.msra.mxu0 %v1576
        %2380 = vmatprep.subr.mxu0 0.0
        %2381 = vmatpush1.msra.mxu0 %v1575
        %2382 = vmatprep.subr.mxu0 0.0
        %2383 = vmatpush1.msra.mxu0 %v1574
        %2384 = vmatprep.subr.mxu0 0.0
        %2385 = vmatpush2.msra.mxu0 %v1605
        %2386 = vmatprep.subr.mxu0 0.0
        %2387 = vmatpush2.msra.mxu0 %v1604
        %2388 = vmatprep.subr.mxu0 0.0
        %2389 = vmatpush2.msra.mxu0 %v1603
        %2390 = vmatprep.subr.mxu0 0.0
        %2391 = vmatpush2.msra.mxu0 %v1602
        %2392 = vmatprep.subr.mxu0 0.0
        %2393 = vmatpush2.msra.mxu0 %v1601
        %2394 = vmatprep.subr.mxu0 0.0
        %2395 = vmatpush2.msra.mxu0 %v1600
        %2396 = vmatprep.subr.mxu0 0.0
        %2397 = vmatpush2.msra.mxu0 %v1599
        %2398 = vmatprep.subr.mxu0 0.0
        %2399 = vmatpush2.msra.mxu0 %v1598
        %2400 = vmatprep.subr.mxu0 0.0
        %2401 = vmatpush2.msra.mxu0 %v1597
        %2402 = vmatprep.subr.mxu0 0.0
        %2403 = vmatpush2.msra.mxu0 %v1596
        %2404 = vmatprep.subr.mxu0 0.0
        %2405 = vmatpush2.msra.mxu0 %v1595
        %2406 = vmatprep.subr.mxu0 0.0
        %2407 = vmatpush2.msra.mxu0 %v1594
        %2408 = vmatprep.subr.mxu0 0.0
        %2409 = vmatpush2.msra.mxu0 %v1593
        %2410 = vmatprep.subr.mxu0 0.0
        %2411 = vmatpush2.msra.mxu0 %v1592
        %2412 = vmatprep.subr.mxu0 0.0
        %2413 = vmatpush2.msra.mxu0 %v1591
        %2414 = vmatprep.subr.mxu0 0.0
        %2415 = vmatpush2.msra.mxu0 %v1590
        %2416 = vmatprep.mubr.f32.mxu0 %v1348
        %2417 = vmatmul.mubr.f32.gmra.mxu0 %v1346
        %v2418 = vpop.f32.mrf.mxu0
        %v2419 = vadd.f32 %v2349, %v2418
        %v2420 = vpop.f32.mrf.mxu0
        %2421 = vdwg.mxu0
        %2422 = vmatprep.subr.mxu0 %v1847
        %2423 = vmatpush1.msra.mxu0 %v1846
        %2424 = vmatprep.subr.mxu0 %v1831
        %2425 = vmatpush1.msra.mxu0 %v1830
        %2426 = vmatprep.subr.mxu0 %v1815
        %2427 = vmatpush1.msra.mxu0 %v1814
        %2428 = vmatprep.subr.mxu0 %v1799
        %2429 = vmatpush1.msra.mxu0 %v1798
        %2430 = vmatprep.subr.mxu0 %v1783
        %2431 = vmatpush1.msra.mxu0 %v1782
        %2432 = vmatprep.subr.mxu0 %v1767
        %2433 = vmatpush1.msra.mxu0 %v1766
        %2434 = vmatprep.subr.mxu0 %v1751
        %2435 = vmatpush1.msra.mxu0 %v1750
        %2436 = vmatprep.subr.mxu0 %v1735
        %2437 = vmatpush1.msra.mxu0 %v1734
        %2438 = vmatprep.subr.mxu0 %v1719
        %2439 = vmatpush1.msra.mxu0 %v1718
        %2440 = vmatprep.subr.mxu0 %v1703
        %2441 = vmatpush1.msra.mxu0 %v1702
        %2442 = vmatprep.subr.mxu0 %v1687
        %2443 = vmatpush1.msra.mxu0 %v1686
        %2444 = vmatprep.subr.mxu0 %v1671
        %2445 = vmatpush1.msra.mxu0 %v1670
        %2446 = vmatprep.subr.mxu0 %v1655
        %2447 = vmatpush1.msra.mxu0 %v1654
        %2448 = vmatprep.subr.mxu0 %v1639
        %2449 = vmatpush1.msra.mxu0 %v1638
        %2450 = vmatprep.subr.mxu0 %v1623
        %2451 = vmatpush1.msra.mxu0 %v1622
        %2452 = vmatprep.subr.mxu0 %v1607
        %2453 = vmatpush1.msra.mxu0 %v1606
        %2454 = vmatprep.subr.mxu0 0.0
        %2455 = vmatpush2.msra.mxu0 0.0
        %2456 = vmatprep.subr.mxu0 0.0
        %2457 = vmatpush2.msra.mxu0 0.0
        %2458 = vmatprep.subr.mxu0 0.0
        %2459 = vmatpush2.msra.mxu0 0.0
        %2460 = vmatprep.subr.mxu0 0.0
        %2461 = vmatpush2.msra.mxu0 0.0
        %2462 = vmatprep.subr.mxu0 0.0
        %2463 = vmatpush2.msra.mxu0 0.0
        %2464 = vmatprep.subr.mxu0 0.0
        %2465 = vmatpush2.msra.mxu0 0.0
        %2466 = vmatprep.subr.mxu0 0.0
        %2467 = vmatpush2.msra.mxu0 0.0
        %2468 = vmatprep.subr.mxu0 0.0
        %2469 = vmatpush2.msra.mxu0 0.0
        %2470 = vmatprep.subr.mxu0 0.0
        %2471 = vmatpush2.msra.mxu0 0.0
        %2472 = vmatprep.subr.mxu0 0.0
        %2473 = vmatpush2.msra.mxu0 0.0
        %2474 = vmatprep.subr.mxu0 0.0
        %2475 = vmatpush2.msra.mxu0 0.0
        %2476 = vmatprep.subr.mxu0 0.0
        %2477 = vmatpush2.msra.mxu0 0.0
        %2478 = vmatprep.subr.mxu0 0.0
        %2479 = vmatpush2.msra.mxu0 0.0
        %2480 = vmatprep.subr.mxu0 0.0
        %2481 = vmatpush2.msra.mxu0 0.0
        %2482 = vmatprep.subr.mxu0 0.0
        %2483 = vmatpush2.msra.mxu0 0.0
        %2484 = vmatprep.subr.mxu0 0.0
        %2485 = vmatpush2.msra.mxu0 0.0
        %2486 = vmatprep.mubr.f32.mxu0 0.0
        %2487 = vmatmul.mubr.f32.gmra.mxu0 %v2419
        %v2488 = vpop.f32.mrf.mxu0
        %v2489 = vadd.f32 0.0, %v2488
        %v2490 = vpop.f32.mrf.mxu0
        %v2491 = vadd.f32 0.0, %v2490
        %2492 = vdwg.mxu0
        %2493 = vmatprep.subr.mxu0 %v1849
        %2494 = vmatpush1.msra.mxu0 %v1848
        %2495 = vmatprep.subr.mxu0 %v1833
        %2496 = vmatpush1.msra.mxu0 %v1832
        %2497 = vmatprep.subr.mxu0 %v1817
        %2498 = vmatpush1.msra.mxu0 %v1816
        %2499 = vmatprep.subr.mxu0 %v1801
        %2500 = vmatpush1.msra.mxu0 %v1800
        %2501 = vmatprep.subr.mxu0 %v1785
        %2502 = vmatpush1.msra.mxu0 %v1784
        %2503 = vmatprep.subr.mxu0 %v1769
        %2504 = vmatpush1.msra.mxu0 %v1768
        %2505 = vmatprep.subr.mxu0 %v1753
        %2506 = vmatpush1.msra.mxu0 %v1752
        %2507 = vmatprep.subr.mxu0 %v1737
        %2508 = vmatpush1.msra.mxu0 %v1736
        %2509 = vmatprep.subr.mxu0 %v1721
        %2510 = vmatpush1.msra.mxu0 %v1720
        %2511 = vmatprep.subr.mxu0 %v1705
        %2512 = vmatpush1.msra.mxu0 %v1704
        %2513 = vmatprep.subr.mxu0 %v1689
        %2514 = vmatpush1.msra.mxu0 %v1688
        %2515 = vmatprep.subr.mxu0 %v1673
        %2516 = vmatpush1.msra.mxu0 %v1672
        %2517 = vmatprep.subr.mxu0 %v1657
        %2518 = vmatpush1.msra.mxu0 %v1656
        %2519 = vmatprep.subr.mxu0 %v1641
        %2520 = vmatpush1.msra.mxu0 %v1640
        %2521 = vmatprep.subr.mxu0 %v1625
        %2522 = vmatpush1.msra.mxu0 %v1624
        %2523 = vmatprep.subr.mxu0 %v1609
        %2524 = vmatpush1.msra.mxu0 %v1608
        %2525 = vmatprep.subr.mxu0 0.0
        %2526 = vmatpush2.msra.mxu0 0.0
        %2527 = vmatprep.subr.mxu0 0.0
        %2528 = vmatpush2.msra.mxu0 0.0
        %2529 = vmatprep.subr.mxu0 0.0
        %2530 = vmatpush2.msra.mxu0 0.0
        %2531 = vmatprep.subr.mxu0 0.0
        %2532 = vmatpush2.msra.mxu0 0.0
        %2533 = vmatprep.subr.mxu0 0.0
        %2534 = vmatpush2.msra.mxu0 0.0
        %2535 = vmatprep.subr.mxu0 0.0
        %2536 = vmatpush2.msra.mxu0 0.0
        %2537 = vmatprep.subr.mxu0 0.0
        %2538 = vmatpush2.msra.mxu0 0.0
        %2539 = vmatprep.subr.mxu0 0.0
        %2540 = vmatpush2.msra.mxu0 0.0
        %2541 = vmatprep.subr.mxu0 0.0
        %2542 = vmatpush2.msra.mxu0 0.0
        %2543 = vmatprep.subr.mxu0 0.0
        %2544 = vmatpush2.msra.mxu0 0.0
        %2545 = vmatprep.subr.mxu0 0.0
        %2546 = vmatpush2.msra.mxu0 0.0
        %2547 = vmatprep.subr.mxu0 0.0
        %2548 = vmatpush2.msra.mxu0 0.0
        %2549 = vmatprep.subr.mxu0 0.0
        %2550 = vmatpush2.msra.mxu0 0.0
        %2551 = vmatprep.subr.mxu0 0.0
        %2552 = vmatpush2.msra.mxu0 0.0
        %2553 = vmatprep.subr.mxu0 0.0
        %2554 = vmatpush2.msra.mxu0 0.0
        %2555 = vmatprep.subr.mxu0 0.0
        %2556 = vmatpush2.msra.mxu0 0.0
        %2557 = vmatprep.mubr.f32.mxu0 0.0
        %2558 = vmatmul.mubr.f32.gmra.mxu0 %v2419
        %v2559 = vpop.f32.mrf.mxu0
        %v2560 = vadd.f32 0.0, %v2559
        %v2561 = vpop.f32.mrf.mxu0
        %v2562 = vadd.f32 0.0, %v2561
        %2563 = vdwg.mxu0
        %2564 = vmatprep.subr.mxu0 %v1851
        %2565 = vmatpush1.msra.mxu0 %v1850
        %2566 = vmatprep.subr.mxu0 %v1835
        %2567 = vmatpush1.msra.mxu0 %v1834
        %2568 = vmatprep.subr.mxu0 %v1819
        %2569 = vmatpush1.msra.mxu0 %v1818
        %2570 = vmatprep.subr.mxu0 %v1803
        %2571 = vmatpush1.msra.mxu0 %v1802
        %2572 = vmatprep.subr.mxu0 %v1787
        %2573 = vmatpush1.msra.mxu0 %v1786
        %2574 = vmatprep.subr.mxu0 %v1771
        %2575 = vmatpush1.msra.mxu0 %v1770
        %2576 = vmatprep.subr.mxu0 %v1755
        %2577 = vmatpush1.msra.mxu0 %v1754
        %2578 = vmatprep.subr.mxu0 %v1739
        %2579 = vmatpush1.msra.mxu0 %v1738
        %2580 = vmatprep.subr.mxu0 %v1723
        %2581 = vmatpush1.msra.mxu0 %v1722
        %2582 = vmatprep.subr.mxu0 %v1707
        %2583 = vmatpush1.msra.mxu0 %v1706
        %2584 = vmatprep.subr.mxu0 %v1691
        %2585 = vmatpush1.msra.mxu0 %v1690
        %2586 = vmatprep.subr.mxu0 %v1675
        %2587 = vmatpush1.msra.mxu0 %v1674
        %2588 = vmatprep.subr.mxu0 %v1659
        %2589 = vmatpush1.msra.mxu0 %v1658
        %2590 = vmatprep.subr.mxu0 %v1643
        %2591 = vmatpush1.msra.mxu0 %v1642
        %2592 = vmatprep.subr.mxu0 %v1627
        %2593 = vmatpush1.msra.mxu0 %v1626
        %2594 = vmatprep.subr.mxu0 %v1611
        %2595 = vmatpush1.msra.mxu0 %v1610
        %2596 = vmatprep.subr.mxu0 0.0
        %2597 = vmatpush2.msra.mxu0 0.0
        %2598 = vmatprep.subr.mxu0 0.0
        %2599 = vmatpush2.msra.mxu0 0.0
        %2600 = vmatprep.subr.mxu0 0.0
        %2601 = vmatpush2.msra.mxu0 0.0
        %2602 = vmatprep.subr.mxu0 0.0
        %2603 = vmatpush2.msra.mxu0 0.0
        %2604 = vmatprep.subr.mxu0 0.0
        %2605 = vmatpush2.msra.mxu0 0.0
        %2606 = vmatprep.subr.mxu0 0.0
        %2607 = vmatpush2.msra.mxu0 0.0
        %2608 = vmatprep.subr.mxu0 0.0
        %2609 = vmatpush2.msra.mxu0 0.0
        %2610 = vmatprep.subr.mxu0 0.0
        %2611 = vmatpush2.msra.mxu0 0.0
        %2612 = vmatprep.subr.mxu0 0.0
        %2613 = vmatpush2.msra.mxu0 0.0
        %2614 = vmatprep.subr.mxu0 0.0
        %2615 = vmatpush2.msra.mxu0 0.0
        %2616 = vmatprep.subr.mxu0 0.0
        %2617 = vmatpush2.msra.mxu0 0.0
        %2618 = vmatprep.subr.mxu0 0.0
        %2619 = vmatpush2.msra.mxu0 0.0
        %2620 = vmatprep.subr.mxu0 0.0
        %2621 = vmatpush2.msra.mxu0 0.0
        %2622 = vmatprep.subr.mxu0 0.0
        %2623 = vmatpush2.msra.mxu0 0.0
        %2624 = vmatprep.subr.mxu0 0.0
        %2625 = vmatpush2.msra.mxu0 0.0
        %2626 = vmatprep.subr.mxu0 0.0
        %2627 = vmatpush2.msra.mxu0 0.0
        %2628 = vmatprep.mubr.f32.mxu0 0.0
        %2629 = vmatmul.mubr.f32.gmra.mxu0 %v2419
        %v2630 = vpop.f32.mrf.mxu0
        %v2631 = vadd.f32 0.0, %v2630
        %v2632 = vpop.f32.mrf.mxu0
        %v2633 = vadd.f32 0.0, %v2632
        %2634 = vdwg.mxu0
        %2635 = vmatprep.subr.mxu0 %v1853
        %2636 = vmatpush1.msra.mxu0 %v1852
        %2637 = vmatprep.subr.mxu0 %v1837
        %2638 = vmatpush1.msra.mxu0 %v1836
        %2639 = vmatprep.subr.mxu0 %v1821
        %2640 = vmatpush1.msra.mxu0 %v1820
        %2641 = vmatprep.subr.mxu0 %v1805
        %2642 = vmatpush1.msra.mxu0 %v1804
        %2643 = vmatprep.subr.mxu0 %v1789
        %2644 = vmatpush1.msra.mxu0 %v1788
        %2645 = vmatprep.subr.mxu0 %v1773
        %2646 = vmatpush1.msra.mxu0 %v1772
        %2647 = vmatprep.subr.mxu0 %v1757
        %2648 = vmatpush1.msra.mxu0 %v1756
        %2649 = vmatprep.subr.mxu0 %v1741
        %2650 = vmatpush1.msra.mxu0 %v1740
        %2651 = vmatprep.subr.mxu0 %v1725
        %2652 = vmatpush1.msra.mxu0 %v1724
        %2653 = vmatprep.subr.mxu0 %v1709
        %2654 = vmatpush1.msra.mxu0 %v1708
        %2655 = vmatprep.subr.mxu0 %v1693
        %2656 = vmatpush1.msra.mxu0 %v1692
        %2657 = vmatprep.subr.mxu0 %v1677
        %2658 = vmatpush1.msra.mxu0 %v1676
        %2659 = vmatprep.subr.mxu0 %v1661
        %2660 = vmatpush1.msra.mxu0 %v1660
        %2661 = vmatprep.subr.mxu0 %v1645
        %2662 = vmatpush1.msra.mxu0 %v1644
        %2663 = vmatprep.subr.mxu0 %v1629
        %2664 = vmatpush1.msra.mxu0 %v1628
        %2665 = vmatprep.subr.mxu0 %v1613
        %2666 = vmatpush1.msra.mxu0 %v1612
        %2667 = vmatprep.subr.mxu0 0.0
        %2668 = vmatpush2.msra.mxu0 0.0
        %2669 = vmatprep.subr.mxu0 0.0
        %2670 = vmatpush2.msra.mxu0 0.0
        %2671 = vmatprep.subr.mxu0 0.0
        %2672 = vmatpush2.msra.mxu0 0.0
        %2673 = vmatprep.subr.mxu0 0.0
        %2674 = vmatpush2.msra.mxu0 0.0
        %2675 = vmatprep.subr.mxu0 0.0
        %2676 = vmatpush2.msra.mxu0 0.0
        %2677 = vmatprep.subr.mxu0 0.0
        %2678 = vmatpush2.msra.mxu0 0.0
        %2679 = vmatprep.subr.mxu0 0.0
        %2680 = vmatpush2.msra.mxu0 0.0
        %2681 = vmatprep.subr.mxu0 0.0
        %2682 = vmatpush2.msra.mxu0 0.0
        %2683 = vmatprep.subr.mxu0 0.0
        %2684 = vmatpush2.msra.mxu0 0.0
        %2685 = vmatprep.subr.mxu0 0.0
        %2686 = vmatpush2.msra.mxu0 0.0
        %2687 = vmatprep.subr.mxu0 0.0
        %2688 = vmatpush2.msra.mxu0 0.0
        %2689 = vmatprep.subr.mxu0 0.0
        %2690 = vmatpush2.msra.mxu0 0.0
        %2691 = vmatprep.subr.mxu0 0.0
        %2692 = vmatpush2.msra.mxu0 0.0
        %2693 = vmatprep.subr.mxu0 0.0
        %2694 = vmatpush2.msra.mxu0 0.0
        %2695 = vmatprep.subr.mxu0 0.0
        %2696 = vmatpush2.msra.mxu0 0.0
        %2697 = vmatprep.subr.mxu0 0.0
        %2698 = vmatpush2.msra.mxu0 0.0
        %2699 = vmatprep.mubr.f32.mxu0 0.0
        %2700 = vmatmul.mubr.f32.gmra.mxu0 %v2419
        %v2701 = vpop.f32.mrf.mxu0
        %v2702 = vadd.f32 0.0, %v2701
        %v2703 = vpop.f32.mrf.mxu0
        %v2704 = vadd.f32 0.0, %v2703
        %2705 = vdwg.mxu0
        %2706 = vmatprep.subr.mxu0 %v1855
        %2707 = vmatpush1.msra.mxu0 %v1854
        %2708 = vmatprep.subr.mxu0 %v1839
        %2709 = vmatpush1.msra.mxu0 %v1838
        %2710 = vmatprep.subr.mxu0 %v1823
        %2711 = vmatpush1.msra.mxu0 %v1822
        %2712 = vmatprep.subr.mxu0 %v1807
        %2713 = vmatpush1.msra.mxu0 %v1806
        %2714 = vmatprep.subr.mxu0 %v1791
        %2715 = vmatpush1.msra.mxu0 %v1790
        %2716 = vmatprep.subr.mxu0 %v1775
        %2717 = vmatpush1.msra.mxu0 %v1774
        %2718 = vmatprep.subr.mxu0 %v1759
        %2719 = vmatpush1.msra.mxu0 %v1758
        %2720 = vmatprep.subr.mxu0 %v1743
        %2721 = vmatpush1.msra.mxu0 %v1742
        %2722 = vmatprep.subr.mxu0 %v1727
        %2723 = vmatpush1.msra.mxu0 %v1726
        %2724 = vmatprep.subr.mxu0 %v1711
        %2725 = vmatpush1.msra.mxu0 %v1710
        %2726 = vmatprep.subr.mxu0 %v1695
        %2727 = vmatpush1.msra.mxu0 %v1694
        %2728 = vmatprep.subr.mxu0 %v1679
        %2729 = vmatpush1.msra.mxu0 %v1678
        %2730 = vmatprep.subr.mxu0 %v1663
        %2731 = vmatpush1.msra.mxu0 %v1662
        %2732 = vmatprep.subr.mxu0 %v1647
        %2733 = vmatpush1.msra.mxu0 %v1646
        %2734 = vmatprep.subr.mxu0 %v1631
        %2735 = vmatpush1.msra.mxu0 %v1630
        %2736 = vmatprep.subr.mxu0 %v1615
        %2737 = vmatpush1.msra.mxu0 %v1614
        %2738 = vmatprep.subr.mxu0 0.0
        %2739 = vmatpush2.msra.mxu0 0.0
        %2740 = vmatprep.subr.mxu0 0.0
        %2741 = vmatpush2.msra.mxu0 0.0
        %2742 = vmatprep.subr.mxu0 0.0
        %2743 = vmatpush2.msra.mxu0 0.0
        %2744 = vmatprep.subr.mxu0 0.0
        %2745 = vmatpush2.msra.mxu0 0.0
        %2746 = vmatprep.subr.mxu0 0.0
        %2747 = vmatpush2.msra.mxu0 0.0
        %2748 = vmatprep.subr.mxu0 0.0
        %2749 = vmatpush2.msra.mxu0 0.0
        %2750 = vmatprep.subr.mxu0 0.0
        %2751 = vmatpush2.msra.mxu0 0.0
        %2752 = vmatprep.subr.mxu0 0.0
        %2753 = vmatpush2.msra.mxu0 0.0
        %2754 = vmatprep.subr.mxu0 0.0
        %2755 = vmatpush2.msra.mxu0 0.0
        %2756 = vmatprep.subr.mxu0 0.0
        %2757 = vmatpush2.msra.mxu0 0.0
        %2758 = vmatprep.subr.mxu0 0.0
        %2759 = vmatpush2.msra.mxu0 0.0
        %2760 = vmatprep.subr.mxu0 0.0
        %2761 = vmatpush2.msra.mxu0 0.0
        %2762 = vmatprep.subr.mxu0 0.0
        %2763 = vmatpush2.msra.mxu0 0.0
        %2764 = vmatprep.subr.mxu0 0.0
        %2765 = vmatpush2.msra.mxu0 0.0
        %2766 = vmatprep.subr.mxu0 0.0
        %2767 = vmatpush2.msra.mxu0 0.0
        %2768 = vmatprep.subr.mxu0 0.0
        %2769 = vmatpush2.msra.mxu0 0.0
        %2770 = vmatprep.mubr.f32.mxu0 0.0
        %2771 = vmatmul.mubr.f32.gmra.mxu0 %v2419
        %v2772 = vpop.f32.mrf.mxu0
        %v2773 = vadd.f32 0.0, %v2772
        %v2774 = vpop.f32.mrf.mxu0
        %v2775 = vadd.f32 0.0, %v2774
        %2776 = vdwg.mxu0
        %2777 = vmatprep.subr.mxu0 %v1857
        %2778 = vmatpush1.msra.mxu0 %v1856
        %2779 = vmatprep.subr.mxu0 %v1841
        %2780 = vmatpush1.msra.mxu0 %v1840
        %2781 = vmatprep.subr.mxu0 %v1825
        %2782 = vmatpush1.msra.mxu0 %v1824
        %2783 = vmatprep.subr.mxu0 %v1809
        %2784 = vmatpush1.msra.mxu0 %v1808
        %2785 = vmatprep.subr.mxu0 %v1793
        %2786 = vmatpush1.msra.mxu0 %v1792
        %2787 = vmatprep.subr.mxu0 %v1777
        %2788 = vmatpush1.msra.mxu0 %v1776
        %2789 = vmatprep.subr.mxu0 %v1761
        %2790 = vmatpush1.msra.mxu0 %v1760
        %2791 = vmatprep.subr.mxu0 %v1745
        %2792 = vmatpush1.msra.mxu0 %v1744
        %2793 = vmatprep.subr.mxu0 %v1729
        %2794 = vmatpush1.msra.mxu0 %v1728
        %2795 = vmatprep.subr.mxu0 %v1713
        %2796 = vmatpush1.msra.mxu0 %v1712
        %2797 = vmatprep.subr.mxu0 %v1697
        %2798 = vmatpush1.msra.mxu0 %v1696
        %2799 = vmatprep.subr.mxu0 %v1681
        %2800 = vmatpush1.msra.mxu0 %v1680
        %2801 = vmatprep.subr.mxu0 %v1665
        %2802 = vmatpush1.msra.mxu0 %v1664
        %2803 = vmatprep.subr.mxu0 %v1649
        %2804 = vmatpush1.msra.mxu0 %v1648
        %2805 = vmatprep.subr.mxu0 %v1633
        %2806 = vmatpush1.msra.mxu0 %v1632
        %2807 = vmatprep.subr.mxu0 %v1617
        %2808 = vmatpush1.msra.mxu0 %v1616
        %2809 = vmatprep.subr.mxu0 0.0
        %2810 = vmatpush2.msra.mxu0 0.0
        %2811 = vmatprep.subr.mxu0 0.0
        %2812 = vmatpush2.msra.mxu0 0.0
        %2813 = vmatprep.subr.mxu0 0.0
        %2814 = vmatpush2.msra.mxu0 0.0
        %2815 = vmatprep.subr.mxu0 0.0
        %2816 = vmatpush2.msra.mxu0 0.0
        %2817 = vmatprep.subr.mxu0 0.0
        %2818 = vmatpush2.msra.mxu0 0.0
        %2819 = vmatprep.subr.mxu0 0.0
        %2820 = vmatpush2.msra.mxu0 0.0
        %2821 = vmatprep.subr.mxu0 0.0
        %2822 = vmatpush2.msra.mxu0 0.0
        %2823 = vmatprep.subr.mxu0 0.0
        %2824 = vmatpush2.msra.mxu0 0.0
        %2825 = vmatprep.subr.mxu0 0.0
        %2826 = vmatpush2.msra.mxu0 0.0
        %2827 = vmatprep.subr.mxu0 0.0
        %2828 = vmatpush2.msra.mxu0 0.0
        %2829 = vmatprep.subr.mxu0 0.0
        %2830 = vmatpush2.msra.mxu0 0.0
        %2831 = vmatprep.subr.mxu0 0.0
        %2832 = vmatpush2.msra.mxu0 0.0
        %2833 = vmatprep.subr.mxu0 0.0
        %2834 = vmatpush2.msra.mxu0 0.0
        %2835 = vmatprep.subr.mxu0 0.0
        %2836 = vmatpush2.msra.mxu0 0.0
        %2837 = vmatprep.subr.mxu0 0.0
        %2838 = vmatpush2.msra.mxu0 0.0
        %2839 = vmatprep.subr.mxu0 0.0
        %2840 = vmatpush2.msra.mxu0 0.0
        %2841 = vmatprep.mubr.f32.mxu0 0.0
        %2842 = vmatmul.mubr.f32.gmra.mxu0 %v2419
        %v2843 = vpop.f32.mrf.mxu0
        %v2844 = vadd.f32 0.0, %v2843
        %v2845 = vpop.f32.mrf.mxu0
        %v2846 = vadd.f32 0.0, %v2845
        %2847 = vdwg.mxu0
        %2848 = vmatprep.subr.mxu0 %v1859
        %2849 = vmatpush1.msra.mxu0 %v1858
        %2850 = vmatprep.subr.mxu0 %v1843
        %2851 = vmatpush1.msra.mxu0 %v1842
        %2852 = vmatprep.subr.mxu0 %v1827
        %2853 = vmatpush1.msra.mxu0 %v1826
        %2854 = vmatprep.subr.mxu0 %v1811
        %2855 = vmatpush1.msra.mxu0 %v1810
        %2856 = vmatprep.subr.mxu0 %v1795
        %2857 = vmatpush1.msra.mxu0 %v1794
        %2858 = vmatprep.subr.mxu0 %v1779
        %2859 = vmatpush1.msra.mxu0 %v1778
        %2860 = vmatprep.subr.mxu0 %v1763
        %2861 = vmatpush1.msra.mxu0 %v1762
        %2862 = vmatprep.subr.mxu0 %v1747
        %2863 = vmatpush1.msra.mxu0 %v1746
        %2864 = vmatprep.subr.mxu0 %v1731
        %2865 = vmatpush1.msra.mxu0 %v1730
        %2866 = vmatprep.subr.mxu0 %v1715
        %2867 = vmatpush1.msra.mxu0 %v1714
        %2868 = vmatprep.subr.mxu0 %v1699
        %2869 = vmatpush1.msra.mxu0 %v1698
        %2870 = vmatprep.subr.mxu0 %v1683
        %2871 = vmatpush1.msra.mxu0 %v1682
        %2872 = vmatprep.subr.mxu0 %v1667
        %2873 = vmatpush1.msra.mxu0 %v1666
        %2874 = vmatprep.subr.mxu0 %v1651
        %2875 = vmatpush1.msra.mxu0 %v1650
        %2876 = vmatprep.subr.mxu0 %v1635
        %2877 = vmatpush1.msra.mxu0 %v1634
        %2878 = vmatprep.subr.mxu0 %v1619
        %2879 = vmatpush1.msra.mxu0 %v1618
        %2880 = vmatprep.subr.mxu0 0.0
        %2881 = vmatpush2.msra.mxu0 0.0
        %2882 = vmatprep.subr.mxu0 0.0
        %2883 = vmatpush2.msra.mxu0 0.0
        %2884 = vmatprep.subr.mxu0 0.0
        %2885 = vmatpush2.msra.mxu0 0.0
        %2886 = vmatprep.subr.mxu0 0.0
        %2887 = vmatpush2.msra.mxu0 0.0
        %2888 = vmatprep.subr.mxu0 0.0
        %2889 = vmatpush2.msra.mxu0 0.0
        %2890 = vmatprep.subr.mxu0 0.0
        %2891 = vmatpush2.msra.mxu0 0.0
        %2892 = vmatprep.subr.mxu0 0.0
        %2893 = vmatpush2.msra.mxu0 0.0
        %2894 = vmatprep.subr.mxu0 0.0
        %2895 = vmatpush2.msra.mxu0 0.0
        %2896 = vmatprep.subr.mxu0 0.0
        %2897 = vmatpush2.msra.mxu0 0.0
        %2898 = vmatprep.subr.mxu0 0.0
        %2899 = vmatpush2.msra.mxu0 0.0
        %2900 = vmatprep.subr.mxu0 0.0
        %2901 = vmatpush2.msra.mxu0 0.0
        %2902 = vmatprep.subr.mxu0 0.0
        %2903 = vmatpush2.msra.mxu0 0.0
        %2904 = vmatprep.subr.mxu0 0.0
        %2905 = vmatpush2.msra.mxu0 0.0
        %2906 = vmatprep.subr.mxu0 0.0
        %2907 = vmatpush2.msra.mxu0 0.0
        %2908 = vmatprep.subr.mxu0 0.0
        %2909 = vmatpush2.msra.mxu0 0.0
        %2910 = vmatprep.subr.mxu0 0.0
        %2911 = vmatpush2.msra.mxu0 0.0
        %2912 = vmatprep.mubr.f32.mxu0 0.0
        %2913 = vmatmul.mubr.f32.gmra.mxu0 %v2419
        %v2914 = vpop.f32.mrf.mxu0
        %v2915 = vadd.f32 0.0, %v2914
        %v2916 = vpop.f32.mrf.mxu0
        %v2917 = vadd.f32 0.0, %v2916
        %2918 = vdwg.mxu0
        %2919 = vmatprep.subr.mxu0 %v1861
        %2920 = vmatpush1.msra.mxu0 %v1860
        %2921 = vmatprep.subr.mxu0 %v1845
        %2922 = vmatpush1.msra.mxu0 %v1844
        %2923 = vmatprep.subr.mxu0 %v1829
        %2924 = vmatpush1.msra.mxu0 %v1828
        %2925 = vmatprep.subr.mxu0 %v1813
        %2926 = vmatpush1.msra.mxu0 %v1812
        %2927 = vmatprep.subr.mxu0 %v1797
        %2928 = vmatpush1.msra.mxu0 %v1796
        %2929 = vmatprep.subr.mxu0 %v1781
        %2930 = vmatpush1.msra.mxu0 %v1780
        %2931 = vmatprep.subr.mxu0 %v1765
        %2932 = vmatpush1.msra.mxu0 %v1764
        %2933 = vmatprep.subr.mxu0 %v1749
        %2934 = vmatpush1.msra.mxu0 %v1748
        %2935 = vmatprep.subr.mxu0 %v1733
        %2936 = vmatpush1.msra.mxu0 %v1732
        %2937 = vmatprep.subr.mxu0 %v1717
        %2938 = vmatpush1.msra.mxu0 %v1716
        %2939 = vmatprep.subr.mxu0 %v1701
        %2940 = vmatpush1.msra.mxu0 %v1700
        %2941 = vmatprep.subr.mxu0 %v1685
        %2942 = vmatpush1.msra.mxu0 %v1684
        %2943 = vmatprep.subr.mxu0 %v1669
        %2944 = vmatpush1.msra.mxu0 %v1668
        %2945 = vmatprep.subr.mxu0 %v1653
        %2946 = vmatpush1.msra.mxu0 %v1652
        %2947 = vmatprep.subr.mxu0 %v1637
        %2948 = vmatpush1.msra.mxu0 %v1636
        %2949 = vmatprep.subr.mxu0 %v1621
        %2950 = vmatpush1.msra.mxu0 %v1620
        %2951 = vmatprep.subr.mxu0 0.0
        %2952 = vmatpush2.msra.mxu0 0.0
        %2953 = vmatprep.subr.mxu0 0.0
        %2954 = vmatpush2.msra.mxu0 0.0
        %2955 = vmatprep.subr.mxu0 0.0
        %2956 = vmatpush2.msra.mxu0 0.0
        %2957 = vmatprep.subr.mxu0 0.0
        %2958 = vmatpush2.msra.mxu0 0.0
        %2959 = vmatprep.subr.mxu0 0.0
        %2960 = vmatpush2.msra.mxu0 0.0
        %2961 = vmatprep.subr.mxu0 0.0
        %2962 = vmatpush2.msra.mxu0 0.0
        %2963 = vmatprep.subr.mxu0 0.0
        %2964 = vmatpush2.msra.mxu0 0.0
        %2965 = vmatprep.subr.mxu0 0.0
        %2966 = vmatpush2.msra.mxu0 0.0
        %2967 = vmatprep.subr.mxu0 0.0
        %2968 = vmatpush2.msra.mxu0 0.0
        %2969 = vmatprep.subr.mxu0 0.0
        %2970 = vmatpush2.msra.mxu0 0.0
        %2971 = vmatprep.subr.mxu0 0.0
        %2972 = vmatpush2.msra.mxu0 0.0
        %2973 = vmatprep.subr.mxu0 0.0
        %2974 = vmatpush2.msra.mxu0 0.0
        %2975 = vmatprep.subr.mxu0 0.0
        %2976 = vmatpush2.msra.mxu0 0.0
        %2977 = vmatprep.subr.mxu0 0.0
        %2978 = vmatpush2.msra.mxu0 0.0
        %2979 = vmatprep.subr.mxu0 0.0
        %2980 = vmatpush2.msra.mxu0 0.0
        %2981 = vmatprep.subr.mxu0 0.0
        %2982 = vmatpush2.msra.mxu0 0.0
        %2983 = vmatprep.mubr.f32.mxu0 0.0
        %2984 = vmatmul.mubr.f32.gmra.mxu0 %v2419
        %v2985 = vpop.f32.mrf.mxu0
        %v2986 = vadd.f32 0.0, %v2985
        %v2987 = vpop.f32.mrf.mxu0
        %v2988 = vadd.f32 0.0, %v2987
        %2989 = vdwg.mxu0
        %v2990 = vsub.f32 %v849, %v2489
        %v2991 = vsub.f32 %v851, %v2491
        %v2992 = vsub.f32 %v920, %v2560
        %v2993 = vsub.f32 %v922, %v2562
        %v2994 = vsub.f32 %v991, %v2631
        %v2995 = vsub.f32 %v993, %v2633
        %v2996 = vsub.f32 %v1062, %v2702
        %v2997 = vsub.f32 %v1064, %v2704
        %v2998 = vsub.f32 %v1133, %v2773
        %v2999 = vsub.f32 %v1135, %v2775
        %v3000 = vsub.f32 %v1204, %v2844
        %v3001 = vsub.f32 %v1206, %v2846
        %v3002 = vsub.f32 %v1275, %v2915
        %v3003 = vsub.f32 %v1277, %v2917
        %v3004 = vsub.f32 %v1346, %v2986
        %v3005 = vsub.f32 %v1348, %v2988
        %v3006 = vmul.f32 %v2990, %v2990
        %v3007 = vmul.f32 %v2991, %v2991
        %v3008 = vmul.f32 %v2992, %v2992
        %v3009 = vmul.f32 %v2993, %v2993
        %v3010 = vmul.f32 %v2994, %v2994
        %v3011 = vmul.f32 %v2995, %v2995
        %v3012 = vmul.f32 %v2996, %v2996
        %v3013 = vmul.f32 %v2997, %v2997
        %v3014 = vmul.f32 %v2998, %v2998
        %v3015 = vmul.f32 %v2999, %v2999
        %v3016 = vmul.f32 %v3000, %v3000
        %v3017 = vmul.f32 %v3001, %v3001
        %v3018 = vmul.f32 %v3002, %v3002
        %v3019 = vmul.f32 %v3003, %v3003
        %v3020 = vmul.f32 %v3004, %v3004
        %v3021 = vmul.f32 %v3005, %v3005
        %3022 = vmatprep.subr.mxu0 0.0
        %3023 = vmatpush1.msra.mxu0 %v1365
        %3024 = vmatprep.subr.mxu0 0.0
        %3025 = vmatpush1.msra.mxu0 %v1364
        %3026 = vmatprep.subr.mxu0 0.0
        %3027 = vmatpush1.msra.mxu0 %v1363
        %3028 = vmatprep.subr.mxu0 0.0
        %3029 = vmatpush1.msra.mxu0 %v1362
        %3030 = vmatprep.subr.mxu0 0.0
        %3031 = vmatpush1.msra.mxu0 %v1361
        %3032 = vmatprep.subr.mxu0 0.0
        %3033 = vmatpush1.msra.mxu0 %v1360
        %3034 = vmatprep.subr.mxu0 0.0
        %3035 = vmatpush1.msra.mxu0 %v1359
        %3036 = vmatprep.subr.mxu0 0.0
        %3037 = vmatpush1.msra.mxu0 %v1358
        %3038 = vmatprep.subr.mxu0 0.0
        %3039 = vmatpush1.msra.mxu0 %v1357
        %3040 = vmatprep.subr.mxu0 0.0
        %3041 = vmatpush1.msra.mxu0 %v1356
        %3042 = vmatprep.subr.mxu0 0.0
        %3043 = vmatpush1.msra.mxu0 %v1355
        %3044 = vmatprep.subr.mxu0 0.0
        %3045 = vmatpush1.msra.mxu0 %v1354
        %3046 = vmatprep.subr.mxu0 0.0
        %3047 = vmatpush1.msra.mxu0 %v1353
        %3048 = vmatprep.subr.mxu0 0.0
        %3049 = vmatpush1.msra.mxu0 %v1352
        %3050 = vmatprep.subr.mxu0 0.0
        %3051 = vmatpush1.msra.mxu0 %v1351
        %3052 = vmatprep.subr.mxu0 0.0
        %3053 = vmatpush1.msra.mxu0 %v1350
        %3054 = vmatprep.subr.mxu0 0.0
        %3055 = vmatpush2.msra.mxu0 %v1381
        %3056 = vmatprep.subr.mxu0 0.0
        %3057 = vmatpush2.msra.mxu0 %v1380
        %3058 = vmatprep.subr.mxu0 0.0
        %3059 = vmatpush2.msra.mxu0 %v1379
        %3060 = vmatprep.subr.mxu0 0.0
        %3061 = vmatpush2.msra.mxu0 %v1378
        %3062 = vmatprep.subr.mxu0 0.0
        %3063 = vmatpush2.msra.mxu0 %v1377
        %3064 = vmatprep.subr.mxu0 0.0
        %3065 = vmatpush2.msra.mxu0 %v1376
        %3066 = vmatprep.subr.mxu0 0.0
        %3067 = vmatpush2.msra.mxu0 %v1375
        %3068 = vmatprep.subr.mxu0 0.0
        %3069 = vmatpush2.msra.mxu0 %v1374
        %3070 = vmatprep.subr.mxu0 0.0
        %3071 = vmatpush2.msra.mxu0 %v1373
        %3072 = vmatprep.subr.mxu0 0.0
        %3073 = vmatpush2.msra.mxu0 %v1372
        %3074 = vmatprep.subr.mxu0 0.0
        %3075 = vmatpush2.msra.mxu0 %v1371
        %3076 = vmatprep.subr.mxu0 0.0
        %3077 = vmatpush2.msra.mxu0 %v1370
        %3078 = vmatprep.subr.mxu0 0.0
        %3079 = vmatpush2.msra.mxu0 %v1369
        %3080 = vmatprep.subr.mxu0 0.0
        %3081 = vmatpush2.msra.mxu0 %v1368
        %3082 = vmatprep.subr.mxu0 0.0
        %3083 = vmatpush2.msra.mxu0 %v1367
        %3084 = vmatprep.subr.mxu0 0.0
        %3085 = vmatpush2.msra.mxu0 %v1366
        %3086 = vmatprep.mubr.f32.mxu0 %v3007
        %3087 = vmatmul.mubr.f32.gmra.mxu0 %v3006
        %v3088 = vpop.f32.mrf.mxu0
        %v3089 = vadd.f32 1e-05, %v3088
        %v3090 = vpop.f32.mrf.mxu0
        %3091 = vdwg.mxu0
        %3092 = vmatprep.subr.mxu0 0.0
        %3093 = vmatpush1.msra.mxu0 %v1397
        %3094 = vmatprep.subr.mxu0 0.0
        %3095 = vmatpush1.msra.mxu0 %v1396
        %3096 = vmatprep.subr.mxu0 0.0
        %3097 = vmatpush1.msra.mxu0 %v1395
        %3098 = vmatprep.subr.mxu0 0.0
        %3099 = vmatpush1.msra.mxu0 %v1394
        %3100 = vmatprep.subr.mxu0 0.0
        %3101 = vmatpush1.msra.mxu0 %v1393
        %3102 = vmatprep.subr.mxu0 0.0
        %3103 = vmatpush1.msra.mxu0 %v1392
        %3104 = vmatprep.subr.mxu0 0.0
        %3105 = vmatpush1.msra.mxu0 %v1391
        %3106 = vmatprep.subr.mxu0 0.0
        %3107 = vmatpush1.msra.mxu0 %v1390
        %3108 = vmatprep.subr.mxu0 0.0
        %3109 = vmatpush1.msra.mxu0 %v1389
        %3110 = vmatprep.subr.mxu0 0.0
        %3111 = vmatpush1.msra.mxu0 %v1388
        %3112 = vmatprep.subr.mxu0 0.0
        %3113 = vmatpush1.msra.mxu0 %v1387
        %3114 = vmatprep.subr.mxu0 0.0
        %3115 = vmatpush1.msra.mxu0 %v1386
        %3116 = vmatprep.subr.mxu0 0.0
        %3117 = vmatpush1.msra.mxu0 %v1385
        %3118 = vmatprep.subr.mxu0 0.0
        %3119 = vmatpush1.msra.mxu0 %v1384
        %3120 = vmatprep.subr.mxu0 0.0
        %3121 = vmatpush1.msra.mxu0 %v1383
        %3122 = vmatprep.subr.mxu0 0.0
        %3123 = vmatpush1.msra.mxu0 %v1382
        %3124 = vmatprep.subr.mxu0 0.0
        %3125 = vmatpush2.msra.mxu0 %v1413
        %3126 = vmatprep.subr.mxu0 0.0
        %3127 = vmatpush2.msra.mxu0 %v1412
        %3128 = vmatprep.subr.mxu0 0.0
        %3129 = vmatpush2.msra.mxu0 %v1411
        %3130 = vmatprep.subr.mxu0 0.0
        %3131 = vmatpush2.msra.mxu0 %v1410
        %3132 = vmatprep.subr.mxu0 0.0
        %3133 = vmatpush2.msra.mxu0 %v1409
        %3134 = vmatprep.subr.mxu0 0.0
        %3135 = vmatpush2.msra.mxu0 %v1408
        %3136 = vmatprep.subr.mxu0 0.0
        %3137 = vmatpush2.msra.mxu0 %v1407
        %3138 = vmatprep.subr.mxu0 0.0
        %3139 = vmatpush2.msra.mxu0 %v1406
        %3140 = vmatprep.subr.mxu0 0.0
        %3141 = vmatpush2.msra.mxu0 %v1405
        %3142 = vmatprep.subr.mxu0 0.0
        %3143 = vmatpush2.msra.mxu0 %v1404
        %3144 = vmatprep.subr.mxu0 0.0
        %3145 = vmatpush2.msra.mxu0 %v1403
        %3146 = vmatprep.subr.mxu0 0.0
        %3147 = vmatpush2.msra.mxu0 %v1402
        %3148 = vmatprep.subr.mxu0 0.0
        %3149 = vmatpush2.msra.mxu0 %v1401
        %3150 = vmatprep.subr.mxu0 0.0
        %3151 = vmatpush2.msra.mxu0 %v1400
        %3152 = vmatprep.subr.mxu0 0.0
        %3153 = vmatpush2.msra.mxu0 %v1399
        %3154 = vmatprep.subr.mxu0 0.0
        %3155 = vmatpush2.msra.mxu0 %v1398
        %3156 = vmatprep.mubr.f32.mxu0 %v3009
        %3157 = vmatmul.mubr.f32.gmra.mxu0 %v3008
        %v3158 = vpop.f32.mrf.mxu0
        %v3159 = vadd.f32 %v3089, %v3158
        %v3160 = vpop.f32.mrf.mxu0
        %3161 = vdwg.mxu0
        %3162 = vmatprep.subr.mxu0 0.0
        %3163 = vmatpush1.msra.mxu0 %v1429
        %3164 = vmatprep.subr.mxu0 0.0
        %3165 = vmatpush1.msra.mxu0 %v1428
        %3166 = vmatprep.subr.mxu0 0.0
        %3167 = vmatpush1.msra.mxu0 %v1427
        %3168 = vmatprep.subr.mxu0 0.0
        %3169 = vmatpush1.msra.mxu0 %v1426
        %3170 = vmatprep.subr.mxu0 0.0
        %3171 = vmatpush1.msra.mxu0 %v1425
        %3172 = vmatprep.subr.mxu0 0.0
        %3173 = vmatpush1.msra.mxu0 %v1424
        %3174 = vmatprep.subr.mxu0 0.0
        %3175 = vmatpush1.msra.mxu0 %v1423
        %3176 = vmatprep.subr.mxu0 0.0
        %3177 = vmatpush1.msra.mxu0 %v1422
        %3178 = vmatprep.subr.mxu0 0.0
        %3179 = vmatpush1.msra.mxu0 %v1421
        %3180 = vmatprep.subr.mxu0 0.0
        %3181 = vmatpush1.msra.mxu0 %v1420
        %3182 = vmatprep.subr.mxu0 0.0
        %3183 = vmatpush1.msra.mxu0 %v1419
        %3184 = vmatprep.subr.mxu0 0.0
        %3185 = vmatpush1.msra.mxu0 %v1418
        %3186 = vmatprep.subr.mxu0 0.0
        %3187 = vmatpush1.msra.mxu0 %v1417
        %3188 = vmatprep.subr.mxu0 0.0
        %3189 = vmatpush1.msra.mxu0 %v1416
        %3190 = vmatprep.subr.mxu0 0.0
        %3191 = vmatpush1.msra.mxu0 %v1415
        %3192 = vmatprep.subr.mxu0 0.0
        %3193 = vmatpush1.msra.mxu0 %v1414
        %3194 = vmatprep.subr.mxu0 0.0
        %3195 = vmatpush2.msra.mxu0 %v1445
        %3196 = vmatprep.subr.mxu0 0.0
        %3197 = vmatpush2.msra.mxu0 %v1444
        %3198 = vmatprep.subr.mxu0 0.0
        %3199 = vmatpush2.msra.mxu0 %v1443
        %3200 = vmatprep.subr.mxu0 0.0
        %3201 = vmatpush2.msra.mxu0 %v1442
        %3202 = vmatprep.subr.mxu0 0.0
        %3203 = vmatpush2.msra.mxu0 %v1441
        %3204 = vmatprep.subr.mxu0 0.0
        %3205 = vmatpush2.msra.mxu0 %v1440
        %3206 = vmatprep.subr.mxu0 0.0
        %3207 = vmatpush2.msra.mxu0 %v1439
        %3208 = vmatprep.subr.mxu0 0.0
        %3209 = vmatpush2.msra.mxu0 %v1438
        %3210 = vmatprep.subr.mxu0 0.0
        %3211 = vmatpush2.msra.mxu0 %v1437
        %3212 = vmatprep.subr.mxu0 0.0
        %3213 = vmatpush2.msra.mxu0 %v1436
        %3214 = vmatprep.subr.mxu0 0.0
        %3215 = vmatpush2.msra.mxu0 %v1435
        %3216 = vmatprep.subr.mxu0 0.0
        %3217 = vmatpush2.msra.mxu0 %v1434
        %3218 = vmatprep.subr.mxu0 0.0
        %3219 = vmatpush2.msra.mxu0 %v1433
        %3220 = vmatprep.subr.mxu0 0.0
        %3221 = vmatpush2.msra.mxu0 %v1432
        %3222 = vmatprep.subr.mxu0 0.0
        %3223 = vmatpush2.msra.mxu0 %v1431
        %3224 = vmatprep.subr.mxu0 0.0
        %3225 = vmatpush2.msra.mxu0 %v1430
        %3226 = vmatprep.mubr.f32.mxu0 %v3011
        %3227 = vmatmul.mubr.f32.gmra.mxu0 %v3010
        %v3228 = vpop.f32.mrf.mxu0
        %v3229 = vadd.f32 %v3159, %v3228
        %v3230 = vpop.f32.mrf.mxu0
        %3231 = vdwg.mxu0
        %3232 = vmatprep.subr.mxu0 0.0
        %3233 = vmatpush1.msra.mxu0 %v1461
        %3234 = vmatprep.subr.mxu0 0.0
        %3235 = vmatpush1.msra.mxu0 %v1460
        %3236 = vmatprep.subr.mxu0 0.0
        %3237 = vmatpush1.msra.mxu0 %v1459
        %3238 = vmatprep.subr.mxu0 0.0
        %3239 = vmatpush1.msra.mxu0 %v1458
        %3240 = vmatprep.subr.mxu0 0.0
        %3241 = vmatpush1.msra.mxu0 %v1457
        %3242 = vmatprep.subr.mxu0 0.0
        %3243 = vmatpush1.msra.mxu0 %v1456
        %3244 = vmatprep.subr.mxu0 0.0
        %3245 = vmatpush1.msra.mxu0 %v1455
        %3246 = vmatprep.subr.mxu0 0.0
        %3247 = vmatpush1.msra.mxu0 %v1454
        %3248 = vmatprep.subr.mxu0 0.0
        %3249 = vmatpush1.msra.mxu0 %v1453
        %3250 = vmatprep.subr.mxu0 0.0
        %3251 = vmatpush1.msra.mxu0 %v1452
        %3252 = vmatprep.subr.mxu0 0.0
        %3253 = vmatpush1.msra.mxu0 %v1451
        %3254 = vmatprep.subr.mxu0 0.0
        %3255 = vmatpush1.msra.mxu0 %v1450
        %3256 = vmatprep.subr.mxu0 0.0
        %3257 = vmatpush1.msra.mxu0 %v1449
        %3258 = vmatprep.subr.mxu0 0.0
        %3259 = vmatpush1.msra.mxu0 %v1448
        %3260 = vmatprep.subr.mxu0 0.0
        %3261 = vmatpush1.msra.mxu0 %v1447
        %3262 = vmatprep.subr.mxu0 0.0
        %3263 = vmatpush1.msra.mxu0 %v1446
        %3264 = vmatprep.subr.mxu0 0.0
        %3265 = vmatpush2.msra.mxu0 %v1477
        %3266 = vmatprep.subr.mxu0 0.0
        %3267 = vmatpush2.msra.mxu0 %v1476
        %3268 = vmatprep.subr.mxu0 0.0
        %3269 = vmatpush2.msra.mxu0 %v1475
        %3270 = vmatprep.subr.mxu0 0.0
        %3271 = vmatpush2.msra.mxu0 %v1474
        %3272 = vmatprep.subr.mxu0 0.0
        %3273 = vmatpush2.msra.mxu0 %v1473
        %3274 = vmatprep.subr.mxu0 0.0
        %3275 = vmatpush2.msra.mxu0 %v1472
        %3276 = vmatprep.subr.mxu0 0.0
        %3277 = vmatpush2.msra.mxu0 %v1471
        %3278 = vmatprep.subr.mxu0 0.0
        %3279 = vmatpush2.msra.mxu0 %v1470
        %3280 = vmatprep.subr.mxu0 0.0
        %3281 = vmatpush2.msra.mxu0 %v1469
        %3282 = vmatprep.subr.mxu0 0.0
        %3283 = vmatpush2.msra.mxu0 %v1468
        %3284 = vmatprep.subr.mxu0 0.0
        %3285 = vmatpush2.msra.mxu0 %v1467
        %3286 = vmatprep.subr.mxu0 0.0
        %3287 = vmatpush2.msra.mxu0 %v1466
        %3288 = vmatprep.subr.mxu0 0.0
        %3289 = vmatpush2.msra.mxu0 %v1465
        %3290 = vmatprep.subr.mxu0 0.0
        %3291 = vmatpush2.msra.mxu0 %v1464
        %3292 = vmatprep.subr.mxu0 0.0
        %3293 = vmatpush2.msra.mxu0 %v1463
        %3294 = vmatprep.subr.mxu0 0.0
        %3295 = vmatpush2.msra.mxu0 %v1462
        %3296 = vmatprep.mubr.f32.mxu0 %v3013
        %3297 = vmatmul.mubr.f32.gmra.mxu0 %v3012
        %v3298 = vpop.f32.mrf.mxu0
        %v3299 = vadd.f32 %v3229, %v3298
        %v3300 = vpop.f32.mrf.mxu0
        %3301 = vdwg.mxu0
        %3302 = vmatprep.subr.mxu0 0.0
        %3303 = vmatpush1.msra.mxu0 %v1493
        %3304 = vmatprep.subr.mxu0 0.0
        %3305 = vmatpush1.msra.mxu0 %v1492
        %3306 = vmatprep.subr.mxu0 0.0
        %3307 = vmatpush1.msra.mxu0 %v1491
        %3308 = vmatprep.subr.mxu0 0.0
        %3309 = vmatpush1.msra.mxu0 %v1490
        %3310 = vmatprep.subr.mxu0 0.0
        %3311 = vmatpush1.msra.mxu0 %v1489
        %3312 = vmatprep.subr.mxu0 0.0
        %3313 = vmatpush1.msra.mxu0 %v1488
        %3314 = vmatprep.subr.mxu0 0.0
        %3315 = vmatpush1.msra.mxu0 %v1487
        %3316 = vmatprep.subr.mxu0 0.0
        %3317 = vmatpush1.msra.mxu0 %v1486
        %3318 = vmatprep.subr.mxu0 0.0
        %3319 = vmatpush1.msra.mxu0 %v1485
        %3320 = vmatprep.subr.mxu0 0.0
        %3321 = vmatpush1.msra.mxu0 %v1484
        %3322 = vmatprep.subr.mxu0 0.0
        %3323 = vmatpush1.msra.mxu0 %v1483
        %3324 = vmatprep.subr.mxu0 0.0
        %3325 = vmatpush1.msra.mxu0 %v1482
        %3326 = vmatprep.subr.mxu0 0.0
        %3327 = vmatpush1.msra.mxu0 %v1481
        %3328 = vmatprep.subr.mxu0 0.0
        %3329 = vmatpush1.msra.mxu0 %v1480
        %3330 = vmatprep.subr.mxu0 0.0
        %3331 = vmatpush1.msra.mxu0 %v1479
        %3332 = vmatprep.subr.mxu0 0.0
        %3333 = vmatpush1.msra.mxu0 %v1478
        %3334 = vmatprep.subr.mxu0 0.0
        %3335 = vmatpush2.msra.mxu0 %v1509
        %3336 = vmatprep.subr.mxu0 0.0
        %3337 = vmatpush2.msra.mxu0 %v1508
        %3338 = vmatprep.subr.mxu0 0.0
        %3339 = vmatpush2.msra.mxu0 %v1507
        %3340 = vmatprep.subr.mxu0 0.0
        %3341 = vmatpush2.msra.mxu0 %v1506
        %3342 = vmatprep.subr.mxu0 0.0
        %3343 = vmatpush2.msra.mxu0 %v1505
        %3344 = vmatprep.subr.mxu0 0.0
        %3345 = vmatpush2.msra.mxu0 %v1504
        %3346 = vmatprep.subr.mxu0 0.0
        %3347 = vmatpush2.msra.mxu0 %v1503
        %3348 = vmatprep.subr.mxu0 0.0
        %3349 = vmatpush2.msra.mxu0 %v1502
        %3350 = vmatprep.subr.mxu0 0.0
        %3351 = vmatpush2.msra.mxu0 %v1501
        %3352 = vmatprep.subr.mxu0 0.0
        %3353 = vmatpush2.msra.mxu0 %v1500
        %3354 = vmatprep.subr.mxu0 0.0
        %3355 = vmatpush2.msra.mxu0 %v1499
        %3356 = vmatprep.subr.mxu0 0.0
        %3357 = vmatpush2.msra.mxu0 %v1498
        %3358 = vmatprep.subr.mxu0 0.0
        %3359 = vmatpush2.msra.mxu0 %v1497
        %3360 = vmatprep.subr.mxu0 0.0
        %3361 = vmatpush2.msra.mxu0 %v1496
        %3362 = vmatprep.subr.mxu0 0.0
        %3363 = vmatpush2.msra.mxu0 %v1495
        %3364 = vmatprep.subr.mxu0 0.0
        %3365 = vmatpush2.msra.mxu0 %v1494
        %3366 = vmatprep.mubr.f32.mxu0 %v3015
        %3367 = vmatmul.mubr.f32.gmra.mxu0 %v3014
        %v3368 = vpop.f32.mrf.mxu0
        %v3369 = vadd.f32 %v3299, %v3368
        %v3370 = vpop.f32.mrf.mxu0
        %3371 = vdwg.mxu0
        %3372 = vmatprep.subr.mxu0 0.0
        %3373 = vmatpush1.msra.mxu0 %v1525
        %3374 = vmatprep.subr.mxu0 0.0
        %3375 = vmatpush1.msra.mxu0 %v1524
        %3376 = vmatprep.subr.mxu0 0.0
        %3377 = vmatpush1.msra.mxu0 %v1523
        %3378 = vmatprep.subr.mxu0 0.0
        %3379 = vmatpush1.msra.mxu0 %v1522
        %3380 = vmatprep.subr.mxu0 0.0
        %3381 = vmatpush1.msra.mxu0 %v1521
        %3382 = vmatprep.subr.mxu0 0.0
        %3383 = vmatpush1.msra.mxu0 %v1520
        %3384 = vmatprep.subr.mxu0 0.0
        %3385 = vmatpush1.msra.mxu0 %v1519
        %3386 = vmatprep.subr.mxu0 0.0
        %3387 = vmatpush1.msra.mxu0 %v1518
        %3388 = vmatprep.subr.mxu0 0.0
        %3389 = vmatpush1.msra.mxu0 %v1517
        %3390 = vmatprep.subr.mxu0 0.0
        %3391 = vmatpush1.msra.mxu0 %v1516
        %3392 = vmatprep.subr.mxu0 0.0
        %3393 = vmatpush1.msra.mxu0 %v1515
        %3394 = vmatprep.subr.mxu0 0.0
        %3395 = vmatpush1.msra.mxu0 %v1514
        %3396 = vmatprep.subr.mxu0 0.0
        %3397 = vmatpush1.msra.mxu0 %v1513
        %3398 = vmatprep.subr.mxu0 0.0
        %3399 = vmatpush1.msra.mxu0 %v1512
        %3400 = vmatprep.subr.mxu0 0.0
        %3401 = vmatpush1.msra.mxu0 %v1511
        %3402 = vmatprep.subr.mxu0 0.0
        %3403 = vmatpush1.msra.mxu0 %v1510
        %3404 = vmatprep.subr.mxu0 0.0
        %3405 = vmatpush2.msra.mxu0 %v1541
        %3406 = vmatprep.subr.mxu0 0.0
        %3407 = vmatpush2.msra.mxu0 %v1540
        %3408 = vmatprep.subr.mxu0 0.0
        %3409 = vmatpush2.msra.mxu0 %v1539
        %3410 = vmatprep.subr.mxu0 0.0
        %3411 = vmatpush2.msra.mxu0 %v1538
        %3412 = vmatprep.subr.mxu0 0.0
        %3413 = vmatpush2.msra.mxu0 %v1537
        %3414 = vmatprep.subr.mxu0 0.0
        %3415 = vmatpush2.msra.mxu0 %v1536
        %3416 = vmatprep.subr.mxu0 0.0
        %3417 = vmatpush2.msra.mxu0 %v1535
        %3418 = vmatprep.subr.mxu0 0.0
        %3419 = vmatpush2.msra.mxu0 %v1534
        %3420 = vmatprep.subr.mxu0 0.0
        %3421 = vmatpush2.msra.mxu0 %v1533
        %3422 = vmatprep.subr.mxu0 0.0
        %3423 = vmatpush2.msra.mxu0 %v1532
        %3424 = vmatprep.subr.mxu0 0.0
        %3425 = vmatpush2.msra.mxu0 %v1531
        %3426 = vmatprep.subr.mxu0 0.0
        %3427 = vmatpush2.msra.mxu0 %v1530
        %3428 = vmatprep.subr.mxu0 0.0
        %3429 = vmatpush2.msra.mxu0 %v1529
        %3430 = vmatprep.subr.mxu0 0.0
        %3431 = vmatpush2.msra.mxu0 %v1528
        %3432 = vmatprep.subr.mxu0 0.0
        %3433 = vmatpush2.msra.mxu0 %v1527
        %3434 = vmatprep.subr.mxu0 0.0
        %3435 = vmatpush2.msra.mxu0 %v1526
        %3436 = vmatprep.mubr.f32.mxu0 %v3017
        %3437 = vmatmul.mubr.f32.gmra.mxu0 %v3016
        %v3438 = vpop.f32.mrf.mxu0
        %v3439 = vadd.f32 %v3369, %v3438
        %v3440 = vpop.f32.mrf.mxu0
        %3441 = vdwg.mxu0
        %3442 = vmatprep.subr.mxu0 0.0
        %3443 = vmatpush1.msra.mxu0 %v1557
        %3444 = vmatprep.subr.mxu0 0.0
        %3445 = vmatpush1.msra.mxu0 %v1556
        %3446 = vmatprep.subr.mxu0 0.0
        %3447 = vmatpush1.msra.mxu0 %v1555
        %3448 = vmatprep.subr.mxu0 0.0
        %3449 = vmatpush1.msra.mxu0 %v1554
        %3450 = vmatprep.subr.mxu0 0.0
        %3451 = vmatpush1.msra.mxu0 %v1553
        %3452 = vmatprep.subr.mxu0 0.0
        %3453 = vmatpush1.msra.mxu0 %v1552
        %3454 = vmatprep.subr.mxu0 0.0
        %3455 = vmatpush1.msra.mxu0 %v1551
        %3456 = vmatprep.subr.mxu0 0.0
        %3457 = vmatpush1.msra.mxu0 %v1550
        %3458 = vmatprep.subr.mxu0 0.0
        %3459 = vmatpush1.msra.mxu0 %v1549
        %3460 = vmatprep.subr.mxu0 0.0
        %3461 = vmatpush1.msra.mxu0 %v1548
        %3462 = vmatprep.subr.mxu0 0.0
        %3463 = vmatpush1.msra.mxu0 %v1547
        %3464 = vmatprep.subr.mxu0 0.0
        %3465 = vmatpush1.msra.mxu0 %v1546
        %3466 = vmatprep.subr.mxu0 0.0
        %3467 = vmatpush1.msra.mxu0 %v1545
        %3468 = vmatprep.subr.mxu0 0.0
        %3469 = vmatpush1.msra.mxu0 %v1544
        %3470 = vmatprep.subr.mxu0 0.0
        %3471 = vmatpush1.msra.mxu0 %v1543
        %3472 = vmatprep.subr.mxu0 0.0
        %3473 = vmatpush1.msra.mxu0 %v1542
        %3474 = vmatprep.subr.mxu0 0.0
        %3475 = vmatpush2.msra.mxu0 %v1573
        %3476 = vmatprep.subr.mxu0 0.0
        %3477 = vmatpush2.msra.mxu0 %v1572
        %3478 = vmatprep.subr.mxu0 0.0
        %3479 = vmatpush2.msra.mxu0 %v1571
        %3480 = vmatprep.subr.mxu0 0.0
        %3481 = vmatpush2.msra.mxu0 %v1570
        %3482 = vmatprep.subr.mxu0 0.0
        %3483 = vmatpush2.msra.mxu0 %v1569
        %3484 = vmatprep.subr.mxu0 0.0
        %3485 = vmatpush2.msra.mxu0 %v1568
        %3486 = vmatprep.subr.mxu0 0.0
        %3487 = vmatpush2.msra.mxu0 %v1567
        %3488 = vmatprep.subr.mxu0 0.0
        %3489 = vmatpush2.msra.mxu0 %v1566
        %3490 = vmatprep.subr.mxu0 0.0
        %3491 = vmatpush2.msra.mxu0 %v1565
        %3492 = vmatprep.subr.mxu0 0.0
        %3493 = vmatpush2.msra.mxu0 %v1564
        %3494 = vmatprep.subr.mxu0 0.0
        %3495 = vmatpush2.msra.mxu0 %v1563
        %3496 = vmatprep.subr.mxu0 0.0
        %3497 = vmatpush2.msra.mxu0 %v1562
        %3498 = vmatprep.subr.mxu0 0.0
        %3499 = vmatpush2.msra.mxu0 %v1561
        %3500 = vmatprep.subr.mxu0 0.0
        %3501 = vmatpush2.msra.mxu0 %v1560
        %3502 = vmatprep.subr.mxu0 0.0
        %3503 = vmatpush2.msra.mxu0 %v1559
        %3504 = vmatprep.subr.mxu0 0.0
        %3505 = vmatpush2.msra.mxu0 %v1558
        %3506 = vmatprep.mubr.f32.mxu0 %v3019
        %3507 = vmatmul.mubr.f32.gmra.mxu0 %v3018
        %v3508 = vpop.f32.mrf.mxu0
        %v3509 = vadd.f32 %v3439, %v3508
        %v3510 = vpop.f32.mrf.mxu0
        %3511 = vdwg.mxu0
        %3512 = vmatprep.subr.mxu0 0.0
        %3513 = vmatpush1.msra.mxu0 %v1589
        %3514 = vmatprep.subr.mxu0 0.0
        %3515 = vmatpush1.msra.mxu0 %v1588
        %3516 = vmatprep.subr.mxu0 0.0
        %3517 = vmatpush1.msra.mxu0 %v1587
        %3518 = vmatprep.subr.mxu0 0.0
        %3519 = vmatpush1.msra.mxu0 %v1586
        %3520 = vmatprep.subr.mxu0 0.0
        %3521 = vmatpush1.msra.mxu0 %v1585
        %3522 = vmatprep.subr.mxu0 0.0
        %3523 = vmatpush1.msra.mxu0 %v1584
        %3524 = vmatprep.subr.mxu0 0.0
        %3525 = vmatpush1.msra.mxu0 %v1583
        %3526 = vmatprep.subr.mxu0 0.0
        %3527 = vmatpush1.msra.mxu0 %v1582
        %3528 = vmatprep.subr.mxu0 0.0
        %3529 = vmatpush1.msra.mxu0 %v1581
        %3530 = vmatprep.subr.mxu0 0.0
        %3531 = vmatpush1.msra.mxu0 %v1580
        %3532 = vmatprep.subr.mxu0 0.0
        %3533 = vmatpush1.msra.mxu0 %v1579
        %3534 = vmatprep.subr.mxu0 0.0
        %3535 = vmatpush1.msra.mxu0 %v1578
        %3536 = vmatprep.subr.mxu0 0.0
        %3537 = vmatpush1.msra.mxu0 %v1577
        %3538 = vmatprep.subr.mxu0 0.0
        %3539 = vmatpush1.msra.mxu0 %v1576
        %3540 = vmatprep.subr.mxu0 0.0
        %3541 = vmatpush1.msra.mxu0 %v1575
        %3542 = vmatprep.subr.mxu0 0.0
        %3543 = vmatpush1.msra.mxu0 %v1574
        %3544 = vmatprep.subr.mxu0 0.0
        %3545 = vmatpush2.msra.mxu0 %v1605
        %3546 = vmatprep.subr.mxu0 0.0
        %3547 = vmatpush2.msra.mxu0 %v1604
        %3548 = vmatprep.subr.mxu0 0.0
        %3549 = vmatpush2.msra.mxu0 %v1603
        %3550 = vmatprep.subr.mxu0 0.0
        %3551 = vmatpush2.msra.mxu0 %v1602
        %3552 = vmatprep.subr.mxu0 0.0
        %3553 = vmatpush2.msra.mxu0 %v1601
        %3554 = vmatprep.subr.mxu0 0.0
        %3555 = vmatpush2.msra.mxu0 %v1600
        %3556 = vmatprep.subr.mxu0 0.0
        %3557 = vmatpush2.msra.mxu0 %v1599
        %3558 = vmatprep.subr.mxu0 0.0
        %3559 = vmatpush2.msra.mxu0 %v1598
        %3560 = vmatprep.subr.mxu0 0.0
        %3561 = vmatpush2.msra.mxu0 %v1597
        %3562 = vmatprep.subr.mxu0 0.0
        %3563 = vmatpush2.msra.mxu0 %v1596
        %3564 = vmatprep.subr.mxu0 0.0
        %3565 = vmatpush2.msra.mxu0 %v1595
        %3566 = vmatprep.subr.mxu0 0.0
        %3567 = vmatpush2.msra.mxu0 %v1594
        %3568 = vmatprep.subr.mxu0 0.0
        %3569 = vmatpush2.msra.mxu0 %v1593
        %3570 = vmatprep.subr.mxu0 0.0
        %3571 = vmatpush2.msra.mxu0 %v1592
        %3572 = vmatprep.subr.mxu0 0.0
        %3573 = vmatpush2.msra.mxu0 %v1591
        %3574 = vmatprep.subr.mxu0 0.0
        %3575 = vmatpush2.msra.mxu0 %v1590
        %3576 = vmatprep.mubr.f32.mxu0 %v3021
        %3577 = vmatmul.mubr.f32.gmra.mxu0 %v3020
        %v3578 = vpop.f32.mrf.mxu0
        %v3579 = vadd.f32 %v3509, %v3578
        %v3580 = vpop.f32.mrf.mxu0
        %3581 = vdwg.mxu0
        %v3582 = vrsqrt.pop %v3579
        %3583 = vmatprep.subr.mxu0 %v1847
        %3584 = vmatpush1.msra.mxu0 %v1846
        %3585 = vmatprep.subr.mxu0 %v1831
        %3586 = vmatpush1.msra.mxu0 %v1830
        %3587 = vmatprep.subr.mxu0 %v1815
        %3588 = vmatpush1.msra.mxu0 %v1814
        %3589 = vmatprep.subr.mxu0 %v1799
        %3590 = vmatpush1.msra.mxu0 %v1798
        %3591 = vmatprep.subr.mxu0 %v1783
        %3592 = vmatpush1.msra.mxu0 %v1782
        %3593 = vmatprep.subr.mxu0 %v1767
        %3594 = vmatpush1.msra.mxu0 %v1766
        %3595 = vmatprep.subr.mxu0 %v1751
        %3596 = vmatpush1.msra.mxu0 %v1750
        %3597 = vmatprep.subr.mxu0 %v1735
        %3598 = vmatpush1.msra.mxu0 %v1734
        %3599 = vmatprep.subr.mxu0 %v1719
        %3600 = vmatpush1.msra.mxu0 %v1718
        %3601 = vmatprep.subr.mxu0 %v1703
        %3602 = vmatpush1.msra.mxu0 %v1702
        %3603 = vmatprep.subr.mxu0 %v1687
        %3604 = vmatpush1.msra.mxu0 %v1686
        %3605 = vmatprep.subr.mxu0 %v1671
        %3606 = vmatpush1.msra.mxu0 %v1670
        %3607 = vmatprep.subr.mxu0 %v1655
        %3608 = vmatpush1.msra.mxu0 %v1654
        %3609 = vmatprep.subr.mxu0 %v1639
        %3610 = vmatpush1.msra.mxu0 %v1638
        %3611 = vmatprep.subr.mxu0 %v1623
        %3612 = vmatpush1.msra.mxu0 %v1622
        %3613 = vmatprep.subr.mxu0 %v1607
        %3614 = vmatpush1.msra.mxu0 %v1606
        %3615 = vmatprep.subr.mxu0 0.0
        %3616 = vmatpush2.msra.mxu0 0.0
        %3617 = vmatprep.subr.mxu0 0.0
        %3618 = vmatpush2.msra.mxu0 0.0
        %3619 = vmatprep.subr.mxu0 0.0
        %3620 = vmatpush2.msra.mxu0 0.0
        %3621 = vmatprep.subr.mxu0 0.0
        %3622 = vmatpush2.msra.mxu0 0.0
        %3623 = vmatprep.subr.mxu0 0.0
        %3624 = vmatpush2.msra.mxu0 0.0
        %3625 = vmatprep.subr.mxu0 0.0
        %3626 = vmatpush2.msra.mxu0 0.0
        %3627 = vmatprep.subr.mxu0 0.0
        %3628 = vmatpush2.msra.mxu0 0.0
        %3629 = vmatprep.subr.mxu0 0.0
        %3630 = vmatpush2.msra.mxu0 0.0
        %3631 = vmatprep.subr.mxu0 0.0
        %3632 = vmatpush2.msra.mxu0 0.0
        %3633 = vmatprep.subr.mxu0 0.0
        %3634 = vmatpush2.msra.mxu0 0.0
        %3635 = vmatprep.subr.mxu0 0.0
        %3636 = vmatpush2.msra.mxu0 0.0
        %3637 = vmatprep.subr.mxu0 0.0
        %3638 = vmatpush2.msra.mxu0 0.0
        %3639 = vmatprep.subr.mxu0 0.0
        %3640 = vmatpush2.msra.mxu0 0.0
        %3641 = vmatprep.subr.mxu0 0.0
        %3642 = vmatpush2.msra.mxu0 0.0
        %3643 = vmatprep.subr.mxu0 0.0
        %3644 = vmatpush2.msra.mxu0 0.0
        %3645 = vmatprep.subr.mxu0 0.0
        %3646 = vmatpush2.msra.mxu0 0.0
        %3647 = vmatprep.mubr.f32.mxu0 0.0
        %3648 = vmatmul.mubr.f32.gmra.mxu0 %v3582
        %v3649 = vpop.f32.mrf.mxu0
        %v3650 = vadd.f32 0.0, %v3649
        %v3651 = vpop.f32.mrf.mxu0
        %v3652 = vadd.f32 0.0, %v3651
        %3653 = vdwg.mxu0
        %3654 = vmatprep.subr.mxu0 %v1849
        %3655 = vmatpush1.msra.mxu0 %v1848
        %3656 = vmatprep.subr.mxu0 %v1833
        %3657 = vmatpush1.msra.mxu0 %v1832
        %3658 = vmatprep.subr.mxu0 %v1817
        %3659 = vmatpush1.msra.mxu0 %v1816
        %3660 = vmatprep.subr.mxu0 %v1801
        %3661 = vmatpush1.msra.mxu0 %v1800
        %3662 = vmatprep.subr.mxu0 %v1785
        %3663 = vmatpush1.msra.mxu0 %v1784
        %3664 = vmatprep.subr.mxu0 %v1769
        %3665 = vmatpush1.msra.mxu0 %v1768
        %3666 = vmatprep.subr.mxu0 %v1753
        %3667 = vmatpush1.msra.mxu0 %v1752
        %3668 = vmatprep.subr.mxu0 %v1737
        %3669 = vmatpush1.msra.mxu0 %v1736
        %3670 = vmatprep.subr.mxu0 %v1721
        %3671 = vmatpush1.msra.mxu0 %v1720
        %3672 = vmatprep.subr.mxu0 %v1705
        %3673 = vmatpush1.msra.mxu0 %v1704
        %3674 = vmatprep.subr.mxu0 %v1689
        %3675 = vmatpush1.msra.mxu0 %v1688
        %3676 = vmatprep.subr.mxu0 %v1673
        %3677 = vmatpush1.msra.mxu0 %v1672
        %3678 = vmatprep.subr.mxu0 %v1657
        %3679 = vmatpush1.msra.mxu0 %v1656
        %3680 = vmatprep.subr.mxu0 %v1641
        %3681 = vmatpush1.msra.mxu0 %v1640
        %3682 = vmatprep.subr.mxu0 %v1625
        %3683 = vmatpush1.msra.mxu0 %v1624
        %3684 = vmatprep.subr.mxu0 %v1609
        %3685 = vmatpush1.msra.mxu0 %v1608
        %3686 = vmatprep.subr.mxu0 0.0
        %3687 = vmatpush2.msra.mxu0 0.0
        %3688 = vmatprep.subr.mxu0 0.0
        %3689 = vmatpush2.msra.mxu0 0.0
        %3690 = vmatprep.subr.mxu0 0.0
        %3691 = vmatpush2.msra.mxu0 0.0
        %3692 = vmatprep.subr.mxu0 0.0
        %3693 = vmatpush2.msra.mxu0 0.0
        %3694 = vmatprep.subr.mxu0 0.0
        %3695 = vmatpush2.msra.mxu0 0.0
        %3696 = vmatprep.subr.mxu0 0.0
        %3697 = vmatpush2.msra.mxu0 0.0
        %3698 = vmatprep.subr.mxu0 0.0
        %3699 = vmatpush2.msra.mxu0 0.0
        %3700 = vmatprep.subr.mxu0 0.0
        %3701 = vmatpush2.msra.mxu0 0.0
        %3702 = vmatprep.subr.mxu0 0.0
        %3703 = vmatpush2.msra.mxu0 0.0
        %3704 = vmatprep.subr.mxu0 0.0
        %3705 = vmatpush2.msra.mxu0 0.0
        %3706 = vmatprep.subr.mxu0 0.0
        %3707 = vmatpush2.msra.mxu0 0.0
        %3708 = vmatprep.subr.mxu0 0.0
        %3709 = vmatpush2.msra.mxu0 0.0
        %3710 = vmatprep.subr.mxu0 0.0
        %3711 = vmatpush2.msra.mxu0 0.0
        %3712 = vmatprep.subr.mxu0 0.0
        %3713 = vmatpush2.msra.mxu0 0.0
        %3714 = vmatprep.subr.mxu0 0.0
        %3715 = vmatpush2.msra.mxu0 0.0
        %3716 = vmatprep.subr.mxu0 0.0
        %3717 = vmatpush2.msra.mxu0 0.0
        %3718 = vmatprep.mubr.f32.mxu0 0.0
        %3719 = vmatmul.mubr.f32.gmra.mxu0 %v3582
        %v3720 = vpop.f32.mrf.mxu0
        %v3721 = vadd.f32 0.0, %v3720
        %v3722 = vpop.f32.mrf.mxu0
        %v3723 = vadd.f32 0.0, %v3722
        %3724 = vdwg.mxu0
        %3725 = vmatprep.subr.mxu0 %v1851
        %3726 = vmatpush1.msra.mxu0 %v1850
        %3727 = vmatprep.subr.mxu0 %v1835
        %3728 = vmatpush1.msra.mxu0 %v1834
        %3729 = vmatprep.subr.mxu0 %v1819
        %3730 = vmatpush1.msra.mxu0 %v1818
        %3731 = vmatprep.subr.mxu0 %v1803
        %3732 = vmatpush1.msra.mxu0 %v1802
        %3733 = vmatprep.subr.mxu0 %v1787
        %3734 = vmatpush1.msra.mxu0 %v1786
        %3735 = vmatprep.subr.mxu0 %v1771
        %3736 = vmatpush1.msra.mxu0 %v1770
        %3737 = vmatprep.subr.mxu0 %v1755
        %3738 = vmatpush1.msra.mxu0 %v1754
        %3739 = vmatprep.subr.mxu0 %v1739
        %3740 = vmatpush1.msra.mxu0 %v1738
        %3741 = vmatprep.subr.mxu0 %v1723
        %3742 = vmatpush1.msra.mxu0 %v1722
        %3743 = vmatprep.subr.mxu0 %v1707
        %3744 = vmatpush1.msra.mxu0 %v1706
        %3745 = vmatprep.subr.mxu0 %v1691
        %3746 = vmatpush1.msra.mxu0 %v1690
        %3747 = vmatprep.subr.mxu0 %v1675
        %3748 = vmatpush1.msra.mxu0 %v1674
        %3749 = vmatprep.subr.mxu0 %v1659
        %3750 = vmatpush1.msra.mxu0 %v1658
        %3751 = vmatprep.subr.mxu0 %v1643
        %3752 = vmatpush1.msra.mxu0 %v1642
        %3753 = vmatprep.subr.mxu0 %v1627
        %3754 = vmatpush1.msra.mxu0 %v1626
        %3755 = vmatprep.subr.mxu0 %v1611
        %3756 = vmatpush1.msra.mxu0 %v1610
        %3757 = vmatprep.subr.mxu0 0.0
        %3758 = vmatpush2.msra.mxu0 0.0
        %3759 = vmatprep.subr.mxu0 0.0
        %3760 = vmatpush2.msra.mxu0 0.0
        %3761 = vmatprep.subr.mxu0 0.0
        %3762 = vmatpush2.msra.mxu0 0.0
        %3763 = vmatprep.subr.mxu0 0.0
        %3764 = vmatpush2.msra.mxu0 0.0
        %3765 = vmatprep.subr.mxu0 0.0
        %3766 = vmatpush2.msra.mxu0 0.0
        %3767 = vmatprep.subr.mxu0 0.0
        %3768 = vmatpush2.msra.mxu0 0.0
        %3769 = vmatprep.subr.mxu0 0.0
        %3770 = vmatpush2.msra.mxu0 0.0
        %3771 = vmatprep.subr.mxu0 0.0
        %3772 = vmatpush2.msra.mxu0 0.0
        %3773 = vmatprep.subr.mxu0 0.0
        %3774 = vmatpush2.msra.mxu0 0.0
        %3775 = vmatprep.subr.mxu0 0.0
        %3776 = vmatpush2.msra.mxu0 0.0
        %3777 = vmatprep.subr.mxu0 0.0
        %3778 = vmatpush2.msra.mxu0 0.0
        %3779 = vmatprep.subr.mxu0 0.0
        %3780 = vmatpush2.msra.mxu0 0.0
        %3781 = vmatprep.subr.mxu0 0.0
        %3782 = vmatpush2.msra.mxu0 0.0
        %3783 = vmatprep.subr.mxu0 0.0
        %3784 = vmatpush2.msra.mxu0 0.0
        %3785 = vmatprep.subr.mxu0 0.0
        %3786 = vmatpush2.msra.mxu0 0.0
        %3787 = vmatprep.subr.mxu0 0.0
        %3788 = vmatpush2.msra.mxu0 0.0
        %3789 = vmatprep.mubr.f32.mxu0 0.0
        %3790 = vmatmul.mubr.f32.gmra.mxu0 %v3582
        %v3791 = vpop.f32.mrf.mxu0
        %v3792 = vadd.f32 0.0, %v3791
        %v3793 = vpop.f32.mrf.mxu0
        %v3794 = vadd.f32 0.0, %v3793
        %3795 = vdwg.mxu0
        %3796 = vmatprep.subr.mxu0 %v1853
        %3797 = vmatpush1.msra.mxu0 %v1852
        %3798 = vmatprep.subr.mxu0 %v1837
        %3799 = vmatpush1.msra.mxu0 %v1836
        %3800 = vmatprep.subr.mxu0 %v1821
        %3801 = vmatpush1.msra.mxu0 %v1820
        %3802 = vmatprep.subr.mxu0 %v1805
        %3803 = vmatpush1.msra.mxu0 %v1804
        %3804 = vmatprep.subr.mxu0 %v1789
        %3805 = vmatpush1.msra.mxu0 %v1788
        %3806 = vmatprep.subr.mxu0 %v1773
        %3807 = vmatpush1.msra.mxu0 %v1772
        %3808 = vmatprep.subr.mxu0 %v1757
        %3809 = vmatpush1.msra.mxu0 %v1756
        %3810 = vmatprep.subr.mxu0 %v1741
        %3811 = vmatpush1.msra.mxu0 %v1740
        %3812 = vmatprep.subr.mxu0 %v1725
        %3813 = vmatpush1.msra.mxu0 %v1724
        %3814 = vmatprep.subr.mxu0 %v1709
        %3815 = vmatpush1.msra.mxu0 %v1708
        %3816 = vmatprep.subr.mxu0 %v1693
        %3817 = vmatpush1.msra.mxu0 %v1692
        %3818 = vmatprep.subr.mxu0 %v1677
        %3819 = vmatpush1.msra.mxu0 %v1676
        %3820 = vmatprep.subr.mxu0 %v1661
        %3821 = vmatpush1.msra.mxu0 %v1660
        %3822 = vmatprep.subr.mxu0 %v1645
        %3823 = vmatpush1.msra.mxu0 %v1644
        %3824 = vmatprep.subr.mxu0 %v1629
        %3825 = vmatpush1.msra.mxu0 %v1628
        %3826 = vmatprep.subr.mxu0 %v1613
        %3827 = vmatpush1.msra.mxu0 %v1612
        %3828 = vmatprep.subr.mxu0 0.0
        %3829 = vmatpush2.msra.mxu0 0.0
        %3830 = vmatprep.subr.mxu0 0.0
        %3831 = vmatpush2.msra.mxu0 0.0
        %3832 = vmatprep.subr.mxu0 0.0
        %3833 = vmatpush2.msra.mxu0 0.0
        %3834 = vmatprep.subr.mxu0 0.0
        %3835 = vmatpush2.msra.mxu0 0.0
        %3836 = vmatprep.subr.mxu0 0.0
        %3837 = vmatpush2.msra.mxu0 0.0
        %3838 = vmatprep.subr.mxu0 0.0
        %3839 = vmatpush2.msra.mxu0 0.0
        %3840 = vmatprep.subr.mxu0 0.0
        %3841 = vmatpush2.msra.mxu0 0.0
        %3842 = vmatprep.subr.mxu0 0.0
        %3843 = vmatpush2.msra.mxu0 0.0
        %3844 = vmatprep.subr.mxu0 0.0
        %3845 = vmatpush2.msra.mxu0 0.0
        %3846 = vmatprep.subr.mxu0 0.0
        %3847 = vmatpush2.msra.mxu0 0.0
        %3848 = vmatprep.subr.mxu0 0.0
        %3849 = vmatpush2.msra.mxu0 0.0
        %3850 = vmatprep.subr.mxu0 0.0
        %3851 = vmatpush2.msra.mxu0 0.0
        %3852 = vmatprep.subr.mxu0 0.0
        %3853 = vmatpush2.msra.mxu0 0.0
        %3854 = vmatprep.subr.mxu0 0.0
        %3855 = vmatpush2.msra.mxu0 0.0
        %3856 = vmatprep.subr.mxu0 0.0
        %3857 = vmatpush2.msra.mxu0 0.0
        %3858 = vmatprep.subr.mxu0 0.0
        %3859 = vmatpush2.msra.mxu0 0.0
        %3860 = vmatprep.mubr.f32.mxu0 0.0
        %3861 = vmatmul.mubr.f32.gmra.mxu0 %v3582
        %v3862 = vpop.f32.mrf.mxu0
        %v3863 = vadd.f32 0.0, %v3862
        %v3864 = vpop.f32.mrf.mxu0
        %v3865 = vadd.f32 0.0, %v3864
        %3866 = vdwg.mxu0
        %3867 = vmatprep.subr.mxu0 %v1855
        %3868 = vmatpush1.msra.mxu0 %v1854
        %3869 = vmatprep.subr.mxu0 %v1839
        %3870 = vmatpush1.msra.mxu0 %v1838
        %3871 = vmatprep.subr.mxu0 %v1823
        %3872 = vmatpush1.msra.mxu0 %v1822
        %3873 = vmatprep.subr.mxu0 %v1807
        %3874 = vmatpush1.msra.mxu0 %v1806
        %3875 = vmatprep.subr.mxu0 %v1791
        %3876 = vmatpush1.msra.mxu0 %v1790
        %3877 = vmatprep.subr.mxu0 %v1775
        %3878 = vmatpush1.msra.mxu0 %v1774
        %3879 = vmatprep.subr.mxu0 %v1759
        %3880 = vmatpush1.msra.mxu0 %v1758
        %3881 = vmatprep.subr.mxu0 %v1743
        %3882 = vmatpush1.msra.mxu0 %v1742
        %3883 = vmatprep.subr.mxu0 %v1727
        %3884 = vmatpush1.msra.mxu0 %v1726
        %3885 = vmatprep.subr.mxu0 %v1711
        %3886 = vmatpush1.msra.mxu0 %v1710
        %3887 = vmatprep.subr.mxu0 %v1695
        %3888 = vmatpush1.msra.mxu0 %v1694
        %3889 = vmatprep.subr.mxu0 %v1679
        %3890 = vmatpush1.msra.mxu0 %v1678
        %3891 = vmatprep.subr.mxu0 %v1663
        %3892 = vmatpush1.msra.mxu0 %v1662
        %3893 = vmatprep.subr.mxu0 %v1647
        %3894 = vmatpush1.msra.mxu0 %v1646
        %3895 = vmatprep.subr.mxu0 %v1631
        %3896 = vmatpush1.msra.mxu0 %v1630
        %3897 = vmatprep.subr.mxu0 %v1615
        %3898 = vmatpush1.msra.mxu0 %v1614
        %3899 = vmatprep.subr.mxu0 0.0
        %3900 = vmatpush2.msra.mxu0 0.0
        %3901 = vmatprep.subr.mxu0 0.0
        %3902 = vmatpush2.msra.mxu0 0.0
        %3903 = vmatprep.subr.mxu0 0.0
        %3904 = vmatpush2.msra.mxu0 0.0
        %3905 = vmatprep.subr.mxu0 0.0
        %3906 = vmatpush2.msra.mxu0 0.0
        %3907 = vmatprep.subr.mxu0 0.0
        %3908 = vmatpush2.msra.mxu0 0.0
        %3909 = vmatprep.subr.mxu0 0.0
        %3910 = vmatpush2.msra.mxu0 0.0
        %3911 = vmatprep.subr.mxu0 0.0
        %3912 = vmatpush2.msra.mxu0 0.0
        %3913 = vmatprep.subr.mxu0 0.0
        %3914 = vmatpush2.msra.mxu0 0.0
        %3915 = vmatprep.subr.mxu0 0.0
        %3916 = vmatpush2.msra.mxu0 0.0
        %3917 = vmatprep.subr.mxu0 0.0
        %3918 = vmatpush2.msra.mxu0 0.0
        %3919 = vmatprep.subr.mxu0 0.0
        %3920 = vmatpush2.msra.mxu0 0.0
        %3921 = vmatprep.subr.mxu0 0.0
        %3922 = vmatpush2.msra.mxu0 0.0
        %3923 = vmatprep.subr.mxu0 0.0
        %3924 = vmatpush2.msra.mxu0 0.0
        %3925 = vmatprep.subr.mxu0 0.0
        %3926 = vmatpush2.msra.mxu0 0.0
        %3927 = vmatprep.subr.mxu0 0.0
        %3928 = vmatpush2.msra.mxu0 0.0
        %3929 = vmatprep.subr.mxu0 0.0
        %3930 = vmatpush2.msra.mxu0 0.0
        %3931 = vmatprep.mubr.f32.mxu0 0.0
        %3932 = vmatmul.mubr.f32.gmra.mxu0 %v3582
        %v3933 = vpop.f32.mrf.mxu0
        %v3934 = vadd.f32 0.0, %v3933
        %v3935 = vpop.f32.mrf.mxu0
        %v3936 = vadd.f32 0.0, %v3935
        %3937 = vdwg.mxu0
        %3938 = vmatprep.subr.mxu0 %v1857
        %3939 = vmatpush1.msra.mxu0 %v1856
        %3940 = vmatprep.subr.mxu0 %v1841
        %3941 = vmatpush1.msra.mxu0 %v1840
        %3942 = vmatprep.subr.mxu0 %v1825
        %3943 = vmatpush1.msra.mxu0 %v1824
        %3944 = vmatprep.subr.mxu0 %v1809
        %3945 = vmatpush1.msra.mxu0 %v1808
        %3946 = vmatprep.subr.mxu0 %v1793
        %3947 = vmatpush1.msra.mxu0 %v1792
        %3948 = vmatprep.subr.mxu0 %v1777
        %3949 = vmatpush1.msra.mxu0 %v1776
        %3950 = vmatprep.subr.mxu0 %v1761
        %3951 = vmatpush1.msra.mxu0 %v1760
        %3952 = vmatprep.subr.mxu0 %v1745
        %3953 = vmatpush1.msra.mxu0 %v1744
        %3954 = vmatprep.subr.mxu0 %v1729
        %3955 = vmatpush1.msra.mxu0 %v1728
        %3956 = vmatprep.subr.mxu0 %v1713
        %3957 = vmatpush1.msra.mxu0 %v1712
        %3958 = vmatprep.subr.mxu0 %v1697
        %3959 = vmatpush1.msra.mxu0 %v1696
        %3960 = vmatprep.subr.mxu0 %v1681
        %3961 = vmatpush1.msra.mxu0 %v1680
        %3962 = vmatprep.subr.mxu0 %v1665
        %3963 = vmatpush1.msra.mxu0 %v1664
        %3964 = vmatprep.subr.mxu0 %v1649
        %3965 = vmatpush1.msra.mxu0 %v1648
        %3966 = vmatprep.subr.mxu0 %v1633
        %3967 = vmatpush1.msra.mxu0 %v1632
        %3968 = vmatprep.subr.mxu0 %v1617
        %3969 = vmatpush1.msra.mxu0 %v1616
        %3970 = vmatprep.subr.mxu0 0.0
        %3971 = vmatpush2.msra.mxu0 0.0
        %3972 = vmatprep.subr.mxu0 0.0
        %3973 = vmatpush2.msra.mxu0 0.0
        %3974 = vmatprep.subr.mxu0 0.0
        %3975 = vmatpush2.msra.mxu0 0.0
        %3976 = vmatprep.subr.mxu0 0.0
        %3977 = vmatpush2.msra.mxu0 0.0
        %3978 = vmatprep.subr.mxu0 0.0
        %3979 = vmatpush2.msra.mxu0 0.0
        %3980 = vmatprep.subr.mxu0 0.0
        %3981 = vmatpush2.msra.mxu0 0.0
        %3982 = vmatprep.subr.mxu0 0.0
        %3983 = vmatpush2.msra.mxu0 0.0
        %3984 = vmatprep.subr.mxu0 0.0
        %3985 = vmatpush2.msra.mxu0 0.0
        %3986 = vmatprep.subr.mxu0 0.0
        %3987 = vmatpush2.msra.mxu0 0.0
        %3988 = vmatprep.subr.mxu0 0.0
        %3989 = vmatpush2.msra.mxu0 0.0
        %3990 = vmatprep.subr.mxu0 0.0
        %3991 = vmatpush2.msra.mxu0 0.0
        %3992 = vmatprep.subr.mxu0 0.0
        %3993 = vmatpush2.msra.mxu0 0.0
        %3994 = vmatprep.subr.mxu0 0.0
        %3995 = vmatpush2.msra.mxu0 0.0
        %3996 = vmatprep.subr.mxu0 0.0
        %3997 = vmatpush2.msra.mxu0 0.0
        %3998 = vmatprep.subr.mxu0 0.0
        %3999 = vmatpush2.msra.mxu0 0.0
        %4000 = vmatprep.subr.mxu0 0.0
        %4001 = vmatpush2.msra.mxu0 0.0
        %4002 = vmatprep.mubr.f32.mxu0 0.0
        %4003 = vmatmul.mubr.f32.gmra.mxu0 %v3582
        %v4004 = vpop.f32.mrf.mxu0
        %v4005 = vadd.f32 0.0, %v4004
        %v4006 = vpop.f32.mrf.mxu0
        %v4007 = vadd.f32 0.0, %v4006
        %4008 = vdwg.mxu0
        %4009 = vmatprep.subr.mxu0 %v1859
        %4010 = vmatpush1.msra.mxu0 %v1858
        %4011 = vmatprep.subr.mxu0 %v1843
        %4012 = vmatpush1.msra.mxu0 %v1842
        %4013 = vmatprep.subr.mxu0 %v1827
        %4014 = vmatpush1.msra.mxu0 %v1826
        %4015 = vmatprep.subr.mxu0 %v1811
        %4016 = vmatpush1.msra.mxu0 %v1810
        %4017 = vmatprep.subr.mxu0 %v1795
        %4018 = vmatpush1.msra.mxu0 %v1794
        %4019 = vmatprep.subr.mxu0 %v1779
        %4020 = vmatpush1.msra.mxu0 %v1778
        %4021 = vmatprep.subr.mxu0 %v1763
        %4022 = vmatpush1.msra.mxu0 %v1762
        %4023 = vmatprep.subr.mxu0 %v1747
        %4024 = vmatpush1.msra.mxu0 %v1746
        %4025 = vmatprep.subr.mxu0 %v1731
        %4026 = vmatpush1.msra.mxu0 %v1730
        %4027 = vmatprep.subr.mxu0 %v1715
        %4028 = vmatpush1.msra.mxu0 %v1714
        %4029 = vmatprep.subr.mxu0 %v1699
        %4030 = vmatpush1.msra.mxu0 %v1698
        %4031 = vmatprep.subr.mxu0 %v1683
        %4032 = vmatpush1.msra.mxu0 %v1682
        %4033 = vmatprep.subr.mxu0 %v1667
        %4034 = vmatpush1.msra.mxu0 %v1666
        %4035 = vmatprep.subr.mxu0 %v1651
        %4036 = vmatpush1.msra.mxu0 %v1650
        %4037 = vmatprep.subr.mxu0 %v1635
        %4038 = vmatpush1.msra.mxu0 %v1634
        %4039 = vmatprep.subr.mxu0 %v1619
        %4040 = vmatpush1.msra.mxu0 %v1618
        %4041 = vmatprep.subr.mxu0 0.0
        %4042 = vmatpush2.msra.mxu0 0.0
        %4043 = vmatprep.subr.mxu0 0.0
        %4044 = vmatpush2.msra.mxu0 0.0
        %4045 = vmatprep.subr.mxu0 0.0
        %4046 = vmatpush2.msra.mxu0 0.0
        %4047 = vmatprep.subr.mxu0 0.0
        %4048 = vmatpush2.msra.mxu0 0.0
        %4049 = vmatprep.subr.mxu0 0.0
        %4050 = vmatpush2.msra.mxu0 0.0
        %4051 = vmatprep.subr.mxu0 0.0
        %4052 = vmatpush2.msra.mxu0 0.0
        %4053 = vmatprep.subr.mxu0 0.0
        %4054 = vmatpush2.msra.mxu0 0.0
        %4055 = vmatprep.subr.mxu0 0.0
        %4056 = vmatpush2.msra.mxu0 0.0
        %4057 = vmatprep.subr.mxu0 0.0
        %4058 = vmatpush2.msra.mxu0 0.0
        %4059 = vmatprep.subr.mxu0 0.0
        %4060 = vmatpush2.msra.mxu0 0.0
        %4061 = vmatprep.subr.mxu0 0.0
        %4062 = vmatpush2.msra.mxu0 0.0
        %4063 = vmatprep.subr.mxu0 0.0
        %4064 = vmatpush2.msra.mxu0 0.0
        %4065 = vmatprep.subr.mxu0 0.0
        %4066 = vmatpush2.msra.mxu0 0.0
        %4067 = vmatprep.subr.mxu0 0.0
        %4068 = vmatpush2.msra.mxu0 0.0
        %4069 = vmatprep.subr.mxu0 0.0
        %4070 = vmatpush2.msra.mxu0 0.0
        %4071 = vmatprep.subr.mxu0 0.0
        %4072 = vmatpush2.msra.mxu0 0.0
        %4073 = vmatprep.mubr.f32.mxu0 0.0
        %4074 = vmatmul.mubr.f32.gmra.mxu0 %v3582
        %v4075 = vpop.f32.mrf.mxu0
        %v4076 = vadd.f32 0.0, %v4075
        %v4077 = vpop.f32.mrf.mxu0
        %v4078 = vadd.f32 0.0, %v4077
        %4079 = vdwg.mxu0
        %4080 = vmatprep.subr.mxu0 %v1861
        %4081 = vmatpush1.msra.mxu0 %v1860
        %4082 = vmatprep.subr.mxu0 %v1845
        %4083 = vmatpush1.msra.mxu0 %v1844
        %4084 = vmatprep.subr.mxu0 %v1829
        %4085 = vmatpush1.msra.mxu0 %v1828
        %4086 = vmatprep.subr.mxu0 %v1813
        %4087 = vmatpush1.msra.mxu0 %v1812
        %4088 = vmatprep.subr.mxu0 %v1797
        %4089 = vmatpush1.msra.mxu0 %v1796
        %4090 = vmatprep.subr.mxu0 %v1781
        %4091 = vmatpush1.msra.mxu0 %v1780
        %4092 = vmatprep.subr.mxu0 %v1765
        %4093 = vmatpush1.msra.mxu0 %v1764
        %4094 = vmatprep.subr.mxu0 %v1749
        %4095 = vmatpush1.msra.mxu0 %v1748
        %4096 = vmatprep.subr.mxu0 %v1733
        %4097 = vmatpush1.msra.mxu0 %v1732
        %4098 = vmatprep.subr.mxu0 %v1717
        %4099 = vmatpush1.msra.mxu0 %v1716
        %4100 = vmatprep.subr.mxu0 %v1701
        %4101 = vmatpush1.msra.mxu0 %v1700
        %4102 = vmatprep.subr.mxu0 %v1685
        %4103 = vmatpush1.msra.mxu0 %v1684
        %4104 = vmatprep.subr.mxu0 %v1669
        %4105 = vmatpush1.msra.mxu0 %v1668
        %4106 = vmatprep.subr.mxu0 %v1653
        %4107 = vmatpush1.msra.mxu0 %v1652
        %4108 = vmatprep.subr.mxu0 %v1637
        %4109 = vmatpush1.msra.mxu0 %v1636
        %4110 = vmatprep.subr.mxu0 %v1621
        %4111 = vmatpush1.msra.mxu0 %v1620
        %4112 = vmatprep.subr.mxu0 0.0
        %4113 = vmatpush2.msra.mxu0 0.0
        %4114 = vmatprep.subr.mxu0 0.0
        %4115 = vmatpush2.msra.mxu0 0.0
        %4116 = vmatprep.subr.mxu0 0.0
        %4117 = vmatpush2.msra.mxu0 0.0
        %4118 = vmatprep.subr.mxu0 0.0
        %4119 = vmatpush2.msra.mxu0 0.0
        %4120 = vmatprep.subr.mxu0 0.0
        %4121 = vmatpush2.msra.mxu0 0.0
        %4122 = vmatprep.subr.mxu0 0.0
        %4123 = vmatpush2.msra.mxu0 0.0
        %4124 = vmatprep.subr.mxu0 0.0
        %4125 = vmatpush2.msra.mxu0 0.0
        %4126 = vmatprep.subr.mxu0 0.0
        %4127 = vmatpush2.msra.mxu0 0.0
        %4128 = vmatprep.subr.mxu0 0.0
        %4129 = vmatpush2.msra.mxu0 0.0
        %4130 = vmatprep.subr.mxu0 0.0
        %4131 = vmatpush2.msra.mxu0 0.0
        %4132 = vmatprep.subr.mxu0 0.0
        %4133 = vmatpush2.msra.mxu0 0.0
        %4134 = vmatprep.subr.mxu0 0.0
        %4135 = vmatpush2.msra.mxu0 0.0
        %4136 = vmatprep.subr.mxu0 0.0
        %4137 = vmatpush2.msra.mxu0 0.0
        %4138 = vmatprep.subr.mxu0 0.0
        %4139 = vmatpush2.msra.mxu0 0.0
        %4140 = vmatprep.subr.mxu0 0.0
        %4141 = vmatpush2.msra.mxu0 0.0
        %4142 = vmatprep.subr.mxu0 0.0
        %4143 = vmatpush2.msra.mxu0 0.0
        %4144 = vmatprep.mubr.f32.mxu0 0.0
        %4145 = vmatmul.mubr.f32.gmra.mxu0 %v3582
        %v4146 = vpop.f32.mrf.mxu0
        %v4147 = vadd.f32 0.0, %v4146
        %v4148 = vpop.f32.mrf.mxu0
        %v4149 = vadd.f32 0.0, %v4148
        %4150 = vdwg.mxu0
        %v4151 = vmul.f32 %v2990, %v3650
        %v4152 = vmul.f32 %v2991, %v3652
        %v4153 = vmul.f32 %v2992, %v3721
        %v4154 = vmul.f32 %v2993, %v3723
        %v4155 = vmul.f32 %v2994, %v3792
        %v4156 = vmul.f32 %v2995, %v3794
        %v4157 = vmul.f32 %v2996, %v3863
        %v4158 = vmul.f32 %v2997, %v3865
        %v4159 = vmul.f32 %v2998, %v3934
        %v4160 = vmul.f32 %v2999, %v3936
        %v4161 = vmul.f32 %v3000, %v4005
        %v4162 = vmul.f32 %v3001, %v4007
        %v4163 = vmul.f32 %v3002, %v4076
        %v4164 = vmul.f32 %v3003, %v4078
        %v4165 = vmul.f32 %v3004, %v4147
        %v4166 = vmul.f32 %v3005, %v4149
        %vm4167 = vcmp.ge.f32.partialorder %v4151, 0.0
        %vm4168 = vcmp.ge.f32.partialorder %v4152, 0.0
        %vm4169 = vcmp.ge.f32.partialorder %v4153, 0.0
        %vm4170 = vcmp.ge.f32.partialorder %v4154, 0.0
        %vm4171 = vcmp.ge.f32.partialorder %v4155, 0.0
        %vm4172 = vcmp.ge.f32.partialorder %v4156, 0.0
        %vm4173 = vcmp.ge.f32.partialorder %v4157, 0.0
        %vm4174 = vcmp.ge.f32.partialorder %v4158, 0.0
        %vm4175 = vcmp.ge.f32.partialorder %v4159, 0.0
        %vm4176 = vcmp.ge.f32.partialorder %v4160, 0.0
        %vm4177 = vcmp.ge.f32.partialorder %v4161, 0.0
        %vm4178 = vcmp.ge.f32.partialorder %v4162, 0.0
        %vm4179 = vcmp.ge.f32.partialorder %v4163, 0.0
        %vm4180 = vcmp.ge.f32.partialorder %v4164, 0.0
        %vm4181 = vcmp.ge.f32.partialorder %v4165, 0.0
        %vm4182 = vcmp.ge.f32.partialorder %v4166, 0.0
        %v4183 = vmul.f32 %v4151, 0.2
        %v4184 = vmul.f32 %v4152, 0.2
        %v4185 = vmul.f32 %v4153, 0.2
        %v4186 = vmul.f32 %v4154, 0.2
        %v4187 = vmul.f32 %v4155, 0.2
        %v4188 = vmul.f32 %v4156, 0.2
        %v4189 = vmul.f32 %v4157, 0.2
        %v4190 = vmul.f32 %v4158, 0.2
        %v4191 = vmul.f32 %v4159, 0.2
        %v4192 = vmul.f32 %v4160, 0.2
        %v4193 = vmul.f32 %v4161, 0.2
        %v4194 = vmul.f32 %v4162, 0.2
        %v4195 = vmul.f32 %v4163, 0.2
        %v4196 = vmul.f32 %v4164, 0.2
        %v4197 = vmul.f32 %v4165, 0.2
        %v4198 = vmul.f32 %v4166, 0.2
        %v4199 = vsel %vm4167, %v4151, %v4183
        %v4200 = vsel %vm4168, %v4152, %v4184
        %v4201 = vsel %vm4169, %v4153, %v4185
        %v4202 = vsel %vm4170, %v4154, %v4186
        %v4203 = vsel %vm4171, %v4155, %v4187
        %v4204 = vsel %vm4172, %v4156, %v4188
        %v4205 = vsel %vm4173, %v4157, %v4189
        %v4206 = vsel %vm4174, %v4158, %v4190
        %v4207 = vsel %vm4175, %v4159, %v4191
        %v4208 = vsel %vm4176, %v4160, %v4192
        %v4209 = vsel %vm4177, %v4161, %v4193
        %v4210 = vsel %vm4178, %v4162, %v4194
        %v4211 = vsel %vm4179, %v4163, %v4195
        %v4212 = vsel %vm4180, %v4164, %v4196
        %v4213 = vsel %vm4181, %v4165, %v4197
        %v4214 = vsel %vm4182, %v4166, %v4198
        %v4231 = vcombine.low %v4199, %v4200
        %v4232 = vcombine.low %v4201, %v4202
        %v4233 = vcombine.low %v4203, %v4204
        %v4234 = vcombine.low %v4205, %v4206
        %v4236 = vunpack.c.l.s4 1966171168
        %v4237 = vunpack.c.0.s8 %v4236
        %v4238 = vlaneseq
        %v4239 = vshrl.u32 %v4238, 7
        %v4240 = vsub.s32 %v4237, %v4239
        %v4241 = vrot.slane %v4231, %v4240
        %v4243 = vunpack.c.l.s4 1966171168
        %v4244 = vunpack.c.0.s8 %v4243
        %v4245 = vlaneseq
        %v4246 = vshrl.u32 %v4245, 7
        %v4247 = vsub.s32 %v4244, %v4246
        %v4248 = vrot.slane %v4232, %v4247
        %v4250 = vunpack.c.l.s4 1966171168
        %v4251 = vunpack.c.0.s8 %v4250
        %v4252 = vlaneseq
        %v4253 = vshrl.u32 %v4252, 7
        %v4254 = vsub.s32 %v4251, %v4253
        %v4255 = vrot.slane %v4233, %v4254
        %v4257 = vunpack.c.l.s4 1966171168
        %v4258 = vunpack.c.0.s8 %v4257
        %v4259 = vlaneseq
        %v4260 = vshrl.u32 %v4259, 7
        %v4261 = vsub.s32 %v4258, %v4260
        %v4262 = vrot.slane %v4234, %v4261
        %v4263 = vcombine.low %v4241, %v4248
        %v4264 = vcombine.low %v4255, %v4262
        %v4266 = vunpack.c.l.s4 1966171168
        %v4267 = vunpack.c.0.s8 %v4266
        %v4268 = vlaneseq
        %v4269 = vshrl.u32 %v4268, 7
        %v4270 = vsub.s32 %v4267, %v4269
        %v4271 = vrot.slane %v4263, %v4270
        %v4273 = vunpack.c.l.s4 1966171168
        %v4274 = vunpack.c.0.s8 %v4273
        %v4275 = vlaneseq
        %v4276 = vshrl.u32 %v4275, 7
        %v4277 = vsub.s32 %v4274, %v4276
        %v4278 = vrot.slane %v4264, %v4277
        %v4279 = vcombine.low %v4271, %v4278
        %v4280 = vcombine.low %v4207, %v4208
        %v4281 = vcombine.low %v4209, %v4210
        %v4282 = vcombine.low %v4211, %v4212
        %v4283 = vcombine.low %v4213, %v4214
        %v4285 = vunpack.c.l.s4 1966171168
        %v4286 = vunpack.c.0.s8 %v4285
        %v4287 = vlaneseq
        %v4288 = vshrl.u32 %v4287, 7
        %v4289 = vsub.s32 %v4286, %v4288
        %v4290 = vrot.slane %v4280, %v4289
        %v4292 = vunpack.c.l.s4 1966171168
        %v4293 = vunpack.c.0.s8 %v4292
        %v4294 = vlaneseq
        %v4295 = vshrl.u32 %v4294, 7
        %v4296 = vsub.s32 %v4293, %v4295
        %v4297 = vrot.slane %v4281, %v4296
        %v4299 = vunpack.c.l.s4 1966171168
        %v4300 = vunpack.c.0.s8 %v4299
        %v4301 = vlaneseq
        %v4302 = vshrl.u32 %v4301, 7
        %v4303 = vsub.s32 %v4300, %v4302
        %v4304 = vrot.slane %v4282, %v4303
        %v4306 = vunpack.c.l.s4 1966171168
        %v4307 = vunpack.c.0.s8 %v4306
        %v4308 = vlaneseq
        %v4309 = vshrl.u32 %v4308, 7
        %v4310 = vsub.s32 %v4307, %v4309
        %v4311 = vrot.slane %v4283, %v4310
        %v4312 = vcombine.low %v4290, %v4297
        %v4313 = vcombine.low %v4304, %v4311
        %v4315 = vunpack.c.l.s4 1966171168
        %v4316 = vunpack.c.0.s8 %v4315
        %v4317 = vlaneseq
        %v4318 = vshrl.u32 %v4317, 7
        %v4319 = vsub.s32 %v4316, %v4318
        %v4320 = vrot.slane %v4312, %v4319
        %v4322 = vunpack.c.l.s4 1966171168
        %v4323 = vunpack.c.0.s8 %v4322
        %v4324 = vlaneseq
        %v4325 = vshrl.u32 %v4324, 7
        %v4326 = vsub.s32 %v4323, %v4325
        %v4327 = vrot.slane %v4313, %v4326
        %v4328 = vcombine.low %v4320, %v4327
        %4331 = vst [vmem:[%s257] sm:$0xff] %v4279
        %4332 = vst [vmem:[%s257 + $0x8] sm:$0xff] %v4328
        %s4333 = sand.u32 %s120, 1
        %s4334 = scalar_lea.sflag [#allocation4], %s4333
        %s4335 = sand.u32 %s120, 1
        %s4336 = smul.addr %s4335, 16
        %s4337 = scalar_lea.vmem [#allocation10], %s4336
        // Predicated region
        $region53: #{tpu_custom_call.1} parent=35 // pred_check
          %p4338 = pneg %p130
        $region54: #{tpu_custom_call.1} parent=35 // pred_check_branch
          %4340 = sbr.rel (%p4338) target = $region56
        $region55: #{tpu_custom_call.1} parent=35 // pred_region
          %s4342 = ssub.s32 256, 256
          %4343 = vsyncadd %s4334, %s4342
          %s4344 = smul.addr %s23, 16
          %s4345 = smul.addr %s4344, 16
          %s4346 = scalar_lea.hbm %s4, %s4345
          %s4348 = sshll.u32 %s4337, 4
          %s4349 = int_to_ptr.vmem [resolvable:$true] %s4348
          %4351 = dma.vmem_to_hbm [thread:$0]  %s4349, 256, %s4346, %s4334
        $region56: #{tpu_custom_call.1} parent=35 // pred_fallthru
          _
      $region36: #{tpu_custom_call.1} parent=5 // pred_fallthru
        _
      %p4352 = scmp.le.s32.totalorder 2, %s18
      // Predicated region
      $region57: #{tpu_custom_call.1} parent=5 // pred_check
        %p4353 = pneg %p4352
      $region58: #{tpu_custom_call.1} parent=5 // pred_check_branch
        %4355 = sbr.rel (%p4353) target = $region60
      $region59: #{tpu_custom_call.1} parent=5 // pred_region
        %s4356 = ssub.s32 %s18, 2
        // Predicated region
        $region61: #{tpu_custom_call.1} parent=59 // pred_check
          %p4357 = pneg %p136
        $region62: #{tpu_custom_call.1} parent=59 // pred_check_branch
          %4359 = sbr.rel (%p4357) target = $region64
        $region63: #{tpu_custom_call.1} parent=59 // pred_region
          %s4360 = sand.u32 %s121, 1
          %s4361 = scalar_lea.sflag [#allocation4], %s4360
          %s4362 = sand.u32 %s121, 1
          %s4363 = smul.addr %s4362, 16
          %s4364 = scalar_lea.vmem [#allocation10], %s4363
          %4365 = dma.done %s4361, 256
        $region64: #{tpu_custom_call.1} parent=59 // pred_fallthru
          _
      $region60: #{tpu_custom_call.1} parent=5 // pred_fallthru
        _
    $region6: #{tpu_custom_call.1} parent=1 // loop_footer
      %s22 = sadd.s32 1, %s18
    $region7: #{tpu_custom_call.1} parent=1 // loop_footer_branch
      %17 = sbr.rel target = $region3
    $region8: #{tpu_custom_call.1} parent=1 // loop_exit
      _
    %4366 = vsyncpa [#allocation3], 1
    %s4367 = scalar_lea.sflag [#allocation3], 1
    %4368 = vsyncpa %s4367, 1
    %4369 = vsyncpa [#allocation6], 1
    %4370 = vsyncpa [#allocation9], 1
    %s4371 = scalar_lea.sflag [#allocation9], 1
    %4372 = vsyncpa %s4371, 1
    %4373 = vsyncpa [#allocation4], 1
    %s4374 = scalar_lea.sflag [#allocation4], 1
    %4375 = vsyncpa %s4374, 1

</llo_original>
